<compile_context>
chip_gen: v6e
topology: v6e:2x2x1
jax: 0.10.0
libtpu: 0.0.40
codegen_flags: <defaults>
</compile_context>

<pallas_src>
import functools

import jax
import jax.numpy as jnp
from jax.experimental import pallas as pl
from jax.experimental.pallas import tpu as pltpu

# ----------------------------- config ---------------------------------------
BATCH = 8
N_CLASSES = 8
LATENT_DIM = 16
CHANNELS = 1
IMG_SIZE = 16
IMG_PROD = CHANNELS * IMG_SIZE * IMG_SIZE          # 256
IN_DIM = LATENT_DIM + N_CLASSES                    # 24
H1, H2, H3, H4 = 128, 256, 512, 1024
BN_EPS = 0.8                                       # nn.BatchNorm1d(out_feat, 0.8)
LRELU_SLOPE = 0.2

# TODO(synk): for throughput workloads raise BATCH (128-256) and add a batch
# grid axis with dimension_semantics=("parallel",) so v7x shards across its
# two TensorCores; at B=8 a grid is pure overhead, so the kernel stays gridless.


# ----------------------------- kernel ---------------------------------------
def _leaky_relu(x):
    return jnp.where(x > 0, x, LRELU_SLOPE * x)


def generator_mlp_kernel(
    labels_ref,                  # (B, 1) int32
    noise_ref,                   # (B, LATENT_DIM) f32
    emb_ref,                     # (N_CLASSES, N_CLASSES) f32 embedding table
    w1_ref, b1_ref,              # Linear 1 (no BN), f32
    w2_ref, b2_ref, g2_ref, be2_ref,   # Linear 2 (bf16 W) + BN (f32)
    w3_ref, b3_ref, g3_ref, be3_ref,   # Linear 3 (bf16 W) + BN (f32)
    w4_hbm_ref, b4_ref, g4_ref, be4_ref,   # Linear 4, W left in HBM (pl.ANY)
    w5_hbm_ref, b5_ref,          # output Linear, W left in HBM (pl.ANY)
    out_ref,                     # (B, IMG_PROD) f32
    w4_vmem, w5_vmem, dma_sems,  # scratch: manual double-use DMA targets
):
    # Kick off the big late-layer weight DMAs immediately so they overlap with
    # the embedding gather + layers 1-3 compute (manual overlap, pattern P4).
    cp_w4 = pltpu.make_async_copy(w4_hbm_ref, w4_vmem, dma_sems.at[0])
    cp_w5 = pltpu.make_async_copy(w5_hbm_ref, w5_vmem, dma_sems.at[1])
    cp_w4.start()
    cp_w5.start()

    # ---- fused label-embedding gather (exact one-hot matmul in f32) --------
    labels = labels_ref[...]                                        # (B, 1) i32
    class_iota = jax.lax.broadcasted_iota(jnp.int32, (BATCH, N_CLASSES), 1)
    one_hot = (labels == class_iota).astype(jnp.float32)            # (B, nc)
    emb = jnp.dot(one_hot, emb_ref[...],
                  preferred_element_type=jnp.float32)               # (B, nc)

    # ---- layer 1: [emb, noise] @ W1 + b1 (split-matmul == concat) ----------
    h = (jnp.dot(emb, w1_ref[:N_CLASSES, :],
                 preferred_element_type=jnp.float32)
         + jnp.dot(noise_ref[...], w1_ref[N_CLASSES:, :],
                   preferred_element_type=jnp.float32)
         + b1_ref[...])
    h = _leaky_relu(h)

    def lin(h, w, b_ref):
        # bf16 inputs on the MXU, f32 accumulation, f32 bias add.
        return jnp.dot(h.astype(jnp.bfloat16), w,
                       preferred_element_type=jnp.float32) + b_ref[...]

    def bn_lrelu(h, g_ref, be_ref):
        # Training-mode BatchNorm1d, eps=0.8; statistics in f32.
        mean = jnp.mean(h, axis=0, keepdims=True)
        mean_sq = jnp.mean(h * h, axis=0, keepdims=True)
        var = mean_sq - mean * mean                                 # biased
        scale = g_ref[...] * jax.lax.rsqrt(var + BN_EPS)
        shift = be_ref[...] - mean * scale
        return _leaky_relu(h * scale + shift)

    h = bn_lrelu(lin(h, w2_ref[...], b2_ref), g2_ref, be2_ref)      # 128 -> 256
    h = bn_lrelu(lin(h, w3_ref[...], b3_ref), g3_ref, be3_ref)      # 256 -> 512

    cp_w4.wait()
    h = bn_lrelu(lin(h, w4_vmem[...], b4_ref), g4_ref, be4_ref)     # 512 -> 1024

    cp_w5.wait()
    h = lin(h, w5_vmem[...], b5_ref)                                # 1024 -> CHW
    out_ref[...] = jnp.tanh(h)


# ----------------------------- wrapper ---------------------------------------
@functools.partial(jax.jit, static_argnames=())
def generator_forward(noise, labels, params):
    """noise: (B, LATENT_DIM) f32, labels: (B,) i32 -> (B, C, H, W) f32."""
    labels2d = labels.reshape(BATCH, 1).astype(jnp.int32)

    operands = (
        labels2d, noise, params["label_emb"],
        params["w1"], params["b1"],
        params["w2"], params["b2"], params["g2"], params["be2"],
        params["w3"], params["b3"], params["g3"], params["be3"],
        params["w4"], params["b4"], params["g4"], params["be4"],
        params["w5"], params["b5"],
    )

    vmem = pl.BlockSpec(memory_space=pltpu.MemorySpace.VMEM)
    hbm = pl.BlockSpec(memory_space=pl.ANY)
    in_specs = [
        vmem, vmem, vmem,            # labels, noise, label_emb
        vmem, vmem,                  # w1, b1
        vmem, vmem, vmem, vmem,      # w2, b2, g2, be2
        vmem, vmem, vmem, vmem,      # w3, b3, g3, be3
        hbm,  vmem, vmem, vmem,      # w4 (HBM, manual DMA), b4, g4, be4
        hbm,  vmem,                  # w5 (HBM, manual DMA), b5
    ]

    flat = pl.pallas_call(
        generator_mlp_kernel,
        out_shape=jax.ShapeDtypeStruct((BATCH, IMG_PROD), jnp.float32),
        in_specs=in_specs,
        out_specs=vmem,
        scratch_shapes=[
            pltpu.VMEM((H3, H4), jnp.bfloat16),        # w4 landing buffer
            pltpu.VMEM((H4, IMG_PROD), jnp.bfloat16),  # w5 landing buffer
            pltpu.SemaphoreType.DMA((2,)),
        ],
        compiler_params=pltpu.CompilerParams(vmem_limit_bytes=8 << 20),
        cost_estimate=pl.CostEstimate(
            flops=15_300_000,
            transcendentals=4_096,
            bytes_accessed=2_000_000,
        ),
    )(*operands)

    return flat.reshape(BATCH, CHANNELS, IMG_SIZE, IMG_SIZE)


# ----------------------------- params ---------------------------------------
def init_params(key):
    """Deterministic synthetic init mirroring the PyTorch module's shapes.

    Linear weights are stored as (in, out) so the kernel computes x @ W + b
    (equivalent to PyTorch's x @ W.T + b with W of shape (out, in)).
    Large weights (w2..w5) are stored in bfloat16 to halve the HBM weight
    stream; biases, BN affine params, w1 and the embedding stay f32.
    """
    keys = jax.random.split(key, 11)

    def linear(kw, kb, fan_in, fan_out, w_dtype=jnp.float32):
        bound = 1.0 / jnp.sqrt(fan_in)
        w = jax.random.uniform(kw, (fan_in, fan_out), jnp.float32, -bound, bound)
        b = jax.random.uniform(kb, (1, fan_out), jnp.float32, -bound, bound)
        return w.astype(w_dtype), b

    params = {}
    params["label_emb"] = jax.random.normal(keys[0], (N_CLASSES, N_CLASSES),
                                            jnp.float32)
    params["w1"], params["b1"] = linear(keys[1], keys[2], IN_DIM, H1)
    params["w2"], params["b2"] = linear(keys[3], keys[4], H1, H2, jnp.bfloat16)
    params["w3"], params["b3"] = linear(keys[5], keys[6], H2, H3, jnp.bfloat16)
    params["w4"], params["b4"] = linear(keys[7], keys[8], H3, H4, jnp.bfloat16)
    params["w5"], params["b5"] = linear(keys[9], keys[10], H4, IMG_PROD,
                                        jnp.bfloat16)
    # BatchNorm affine params (PyTorch default init: gamma=1, beta=0)
    params["g2"] = jnp.ones((1, H2), jnp.float32)
    params["be2"] = jnp.zeros((1, H2), jnp.float32)
    params["g3"] = jnp.ones((1, H3), jnp.float32)
    params["be3"] = jnp.zeros((1, H3), jnp.float32)
    params["g4"] = jnp.ones((1, H4), jnp.float32)
    params["be4"] = jnp.zeros((1, H4), jnp.float32)
    return params


# ----------------------------- main ------------------------------------------
if __name__ == "__main__":
    root = jax.random.PRNGKey(0)
    k_params, k_noise, k_labels = jax.random.split(root, 3)

    params = init_params(k_params)
    noise = jax.random.normal(k_noise, (BATCH, LATENT_DIM), jnp.float32)
    labels = jax.random.randint(k_labels, (BATCH,), 0, N_CLASSES, jnp.int32)

    img = generator_forward(noise, labels, params)
    jax.block_until_ready(img)

    assert img.shape == (BATCH, CHANNELS, IMG_SIZE, IMG_SIZE)
    assert img.dtype == jnp.float32
    assert bool(jnp.all(jnp.isfinite(img)))
    assert bool(jnp.all(jnp.abs(img) <= 1.0))   # tanh range
    print("KERNEL_OK")
</pallas_src>

<mosaic_0001>
module attributes {stable_mosaic.version = 11 : i64} {
  func.func @generator_mlp_kernel(%arg0: memref<8x1xi32, #tpu.memory_space<vmem>>, %arg1: memref<8x16xf32, #tpu.memory_space<vmem>>, %arg2: memref<8x8xf32, #tpu.memory_space<vmem>>, %arg3: memref<24x128xf32, #tpu.memory_space<vmem>>, %arg4: memref<1x128xf32, #tpu.memory_space<vmem>>, %arg5: memref<128x256xbf16, #tpu.memory_space<vmem>>, %arg6: memref<1x256xf32, #tpu.memory_space<vmem>>, %arg7: memref<1x256xf32, #tpu.memory_space<vmem>>, %arg8: memref<1x256xf32, #tpu.memory_space<vmem>>, %arg9: memref<256x512xbf16, #tpu.memory_space<vmem>>, %arg10: memref<1x512xf32, #tpu.memory_space<vmem>>, %arg11: memref<1x512xf32, #tpu.memory_space<vmem>>, %arg12: memref<1x512xf32, #tpu.memory_space<vmem>>, %arg13: memref<512x1024xbf16, #tpu.memory_space<any>>, %arg14: memref<1x1024xf32, #tpu.memory_space<vmem>>, %arg15: memref<1x1024xf32, #tpu.memory_space<vmem>>, %arg16: memref<1x1024xf32, #tpu.memory_space<vmem>>, %arg17: memref<1024x256xbf16, #tpu.memory_space<any>>, %arg18: memref<1x256xf32, #tpu.memory_space<vmem>>, %arg19: memref<8x256xf32, #tpu.memory_space<vmem>>, %arg20: memref<512x1024xbf16, #tpu.memory_space<vmem>>, %arg21: memref<1024x256xbf16, #tpu.memory_space<vmem>>, %arg22: memref<2x!tpu.dma_semaphore, #tpu.memory_space<semaphore_mem>>) attributes {dimension_semantics = [], scalar_prefetch = 0 : i64, scratch_operands = 3 : i64, tpu.core_type = #tpu.core_type<tc>} {
    %c0_i32 = arith.constant 0 : i32
    %0 = tpu.memref_slice %arg22[%c0_i32] : memref<2x!tpu.dma_semaphore, #tpu.memory_space<semaphore_mem>> -> memref<1x!tpu.dma_semaphore, #tpu.memory_space<semaphore_mem>>
    %1 = tpu.memref_squeeze %0 : memref<1x!tpu.dma_semaphore, #tpu.memory_space<semaphore_mem>> -> memref<!tpu.dma_semaphore, #tpu.memory_space<semaphore_mem>>
    tpu.enqueue_dma source(%arg13 : memref<512x1024xbf16, #tpu.memory_space<any>>) target(%arg20 : memref<512x1024xbf16, #tpu.memory_space<vmem>>) target_semaphore(%1 : memref<!tpu.dma_semaphore, #tpu.memory_space<semaphore_mem>>)
    %c1_i32 = arith.constant 1 : i32
    %2 = tpu.memref_slice %arg22[%c1_i32] : memref<2x!tpu.dma_semaphore, #tpu.memory_space<semaphore_mem>> -> memref<1x!tpu.dma_semaphore, #tpu.memory_space<semaphore_mem>>
    %3 = tpu.memref_squeeze %2 : memref<1x!tpu.dma_semaphore, #tpu.memory_space<semaphore_mem>> -> memref<!tpu.dma_semaphore, #tpu.memory_space<semaphore_mem>>
    tpu.enqueue_dma source(%arg17 : memref<1024x256xbf16, #tpu.memory_space<any>>) target(%arg21 : memref<1024x256xbf16, #tpu.memory_space<vmem>>) target_semaphore(%3 : memref<!tpu.dma_semaphore, #tpu.memory_space<semaphore_mem>>)
    %c0 = arith.constant 0 : index
    %c0_0 = arith.constant 0 : index
    %4 = vector.load %arg0[%c0, %c0_0] : memref<8x1xi32, #tpu.memory_space<vmem>>, vector<8x1xi32>
    %5 = tpu.iota {dimensions = array<i32: 1>} : vector<8x8xi32>
    %6 = vector.broadcast %4 : vector<8x1xi32> to vector<8x8xi32>
    %7 = arith.cmpi eq, %6, %5 : vector<8x8xi32>
    %8 = arith.extui %7 : vector<8x8xi1> to vector<8x8xi32>
    %9 = arith.sitofp %8 : vector<8x8xi32> to vector<8x8xf32>
    %c0_1 = arith.constant 0 : index
    %c0_2 = arith.constant 0 : index
    %10 = vector.load %arg2[%c0_1, %c0_2] : memref<8x8xf32, #tpu.memory_space<vmem>>, vector<8x8xf32>
    %cst = arith.constant dense<0.000000e+00> : vector<8x8xf32>
    %11 = tpu.matmul %9, %10, %cst {dimension_numbers = #tpu.dot_dimension_numbers<[1], [0], [0], [1], [0, 0, 1, 1], [], []>} : vector<8x8xf32>, vector<8x8xf32>, vector<8x8xf32> -> vector<8x8xf32>
    %c0_3 = arith.constant 0 : index
    %c0_4 = arith.constant 0 : index
    %12 = vector.load %arg3[%c0_3, %c0_4] : memref<24x128xf32, #tpu.memory_space<vmem>>, vector<8x128xf32>
    %cst_5 = arith.constant dense<0.000000e+00> : vector<8x128xf32>
    %13 = tpu.matmul %11, %12, %cst_5 {dimension_numbers = #tpu.dot_dimension_numbers<[1], [0], [0], [1], [0, 0, 1, 1], [], []>} : vector<8x8xf32>, vector<8x128xf32>, vector<8x128xf32> -> vector<8x128xf32>
    %c0_6 = arith.constant 0 : index
    %c0_7 = arith.constant 0 : index
    %14 = vector.load %arg1[%c0_6, %c0_7] : memref<8x16xf32, #tpu.memory_space<vmem>>, vector<8x16xf32>
    %c8 = arith.constant 8 : index
    %c0_8 = arith.constant 0 : index
    %15 = vector.load %arg3[%c8, %c0_8] : memref<24x128xf32, #tpu.memory_space<vmem>>, vector<16x128xf32>
    %cst_9 = arith.constant dense<0.000000e+00> : vector<8x128xf32>
    %16 = tpu.matmul %14, %15, %cst_9 {dimension_numbers = #tpu.dot_dimension_numbers<[1], [0], [0], [1], [0, 0, 1, 1], [], []>} : vector<8x16xf32>, vector<16x128xf32>, vector<8x128xf32> -> vector<8x128xf32>
    %17 = arith.addf %13, %16 : vector<8x128xf32>
    %c0_10 = arith.constant 0 : index
    %c0_11 = arith.constant 0 : index
    %18 = vector.load %arg4[%c0_10, %c0_11] : memref<1x128xf32, #tpu.memory_space<vmem>>, vector<1x128xf32>
    %19 = vector.broadcast %18 : vector<1x128xf32> to vector<8x128xf32>
    %20 = arith.addf %17, %19 : vector<8x128xf32>
    %cst_12 = arith.constant 0.000000e+00 : f32
    %21 = vector.broadcast %cst_12 : f32 to vector<8x128xf32>
    %22 = arith.cmpf ogt, %20, %21 : vector<8x128xf32>
    %cst_13 = arith.constant 2.000000e-01 : f32
    %23 = vector.broadcast %cst_13 : f32 to vector<8x128xf32>
    %24 = arith.mulf %23, %20 : vector<8x128xf32>
    %25 = arith.select %22, %20, %24 : vector<8x128xi1>, vector<8x128xf32>
    %c0_14 = arith.constant 0 : index
    %c0_15 = arith.constant 0 : index
    %26 = vector.load %arg5[%c0_14, %c0_15] : memref<128x256xbf16, #tpu.memory_space<vmem>>, vector<128x256xbf16>
    %27 = arith.truncf %25 : vector<8x128xf32> to vector<8x128xbf16>
    %cst_16 = arith.constant dense<0.000000e+00> : vector<8x256xf32>
    %28 = tpu.matmul %27, %26, %cst_16 {dimension_numbers = #tpu.dot_dimension_numbers<[1], [0], [0], [1], [0, 0, 1, 1], [], []>} : vector<8x128xbf16>, vector<128x256xbf16>, vector<8x256xf32> -> vector<8x256xf32>
    %c0_17 = arith.constant 0 : index
    %c0_18 = arith.constant 0 : index
    %29 = vector.load %arg6[%c0_17, %c0_18] : memref<1x256xf32, #tpu.memory_space<vmem>>, vector<1x256xf32>
    %30 = vector.broadcast %29 : vector<1x256xf32> to vector<8x256xf32>
    %31 = arith.addf %28, %30 : vector<8x256xf32>
    %cst_19 = arith.constant dense<0.000000e+00> : vector<256xf32>
    %32 = vector.multi_reduction <add>, %31, %cst_19 [0] : vector<8x256xf32> to vector<256xf32>
    %33 = vector.shape_cast %32 : vector<256xf32> to vector<1x256xf32>
    %cst_20 = arith.constant 8.000000e+00 : f32
    %34 = vector.broadcast %cst_20 : f32 to vector<1x256xf32>
    %35 = arith.divf %33, %34 : vector<1x256xf32>
    %36 = arith.mulf %31, %31 : vector<8x256xf32>
    %cst_21 = arith.constant dense<0.000000e+00> : vector<256xf32>
    %37 = vector.multi_reduction <add>, %36, %cst_21 [0] : vector<8x256xf32> to vector<256xf32>
    %38 = vector.shape_cast %37 : vector<256xf32> to vector<1x256xf32>
    %cst_22 = arith.constant 8.000000e+00 : f32
    %39 = vector.broadcast %cst_22 : f32 to vector<1x256xf32>
    %40 = arith.divf %38, %39 : vector<1x256xf32>
    %41 = arith.mulf %35, %35 : vector<1x256xf32>
    %42 = arith.subf %40, %41 : vector<1x256xf32>
    %c0_23 = arith.constant 0 : index
    %c0_24 = arith.constant 0 : index
    %43 = vector.load %arg7[%c0_23, %c0_24] : memref<1x256xf32, #tpu.memory_space<vmem>>, vector<1x256xf32>
    %cst_25 = arith.constant 8.000000e-01 : f32
    %44 = vector.broadcast %cst_25 : f32 to vector<1x256xf32>
    %45 = arith.addf %42, %44 : vector<1x256xf32>
    %46 = math.rsqrt %45 : vector<1x256xf32>
    %47 = arith.mulf %43, %46 : vector<1x256xf32>
    %c0_26 = arith.constant 0 : index
    %c0_27 = arith.constant 0 : index
    %48 = vector.load %arg8[%c0_26, %c0_27] : memref<1x256xf32, #tpu.memory_space<vmem>>, vector<1x256xf32>
    %49 = arith.mulf %35, %47 : vector<1x256xf32>
    %50 = arith.subf %48, %49 : vector<1x256xf32>
    %51 = vector.broadcast %47 : vector<1x256xf32> to vector<8x256xf32>
    %52 = arith.mulf %31, %51 : vector<8x256xf32>
    %53 = vector.broadcast %50 : vector<1x256xf32> to vector<8x256xf32>
    %54 = arith.addf %52, %53 : vector<8x256xf32>
    %cst_28 = arith.constant 0.000000e+00 : f32
    %55 = vector.broadcast %cst_28 : f32 to vector<8x256xf32>
    %56 = arith.cmpf ogt, %54, %55 : vector<8x256xf32>
    %cst_29 = arith.constant 2.000000e-01 : f32
    %57 = vector.broadcast %cst_29 : f32 to vector<8x256xf32>
    %58 = arith.mulf %57, %54 : vector<8x256xf32>
    %59 = arith.select %56, %54, %58 : vector<8x256xi1>, vector<8x256xf32>
    %c0_30 = arith.constant 0 : index
    %c0_31 = arith.constant 0 : index
    %60 = vector.load %arg9[%c0_30, %c0_31] : memref<256x512xbf16, #tpu.memory_space<vmem>>, vector<256x512xbf16>
    %61 = arith.truncf %59 : vector<8x256xf32> to vector<8x256xbf16>
    %cst_32 = arith.constant dense<0.000000e+00> : vector<8x512xf32>
    %62 = tpu.matmul %61, %60, %cst_32 {dimension_numbers = #tpu.dot_dimension_numbers<[1], [0], [0], [1], [0, 0, 1, 1], [], []>} : vector<8x256xbf16>, vector<256x512xbf16>, vector<8x512xf32> -> vector<8x512xf32>
    %c0_33 = arith.constant 0 : index
    %c0_34 = arith.constant 0 : index
    %63 = vector.load %arg10[%c0_33, %c0_34] : memref<1x512xf32, #tpu.memory_space<vmem>>, vector<1x512xf32>
    %64 = vector.broadcast %63 : vector<1x512xf32> to vector<8x512xf32>
    %65 = arith.addf %62, %64 : vector<8x512xf32>
    %cst_35 = arith.constant dense<0.000000e+00> : vector<512xf32>
    %66 = vector.multi_reduction <add>, %65, %cst_35 [0] : vector<8x512xf32> to vector<512xf32>
    %67 = vector.shape_cast %66 : vector<512xf32> to vector<1x512xf32>
    %cst_36 = arith.constant 8.000000e+00 : f32
    %68 = vector.broadcast %cst_36 : f32 to vector<1x512xf32>
    %69 = arith.divf %67, %68 : vector<1x512xf32>
    %70 = arith.mulf %65, %65 : vector<8x512xf32>
    %cst_37 = arith.constant dense<0.000000e+00> : vector<512xf32>
    %71 = vector.multi_reduction <add>, %70, %cst_37 [0] : vector<8x512xf32> to vector<512xf32>
    %72 = vector.shape_cast %71 : vector<512xf32> to vector<1x512xf32>
    %cst_38 = arith.constant 8.000000e+00 : f32
    %73 = vector.broadcast %cst_38 : f32 to vector<1x512xf32>
    %74 = arith.divf %72, %73 : vector<1x512xf32>
    %75 = arith.mulf %69, %69 : vector<1x512xf32>
    %76 = arith.subf %74, %75 : vector<1x512xf32>
    %c0_39 = arith.constant 0 : index
    %c0_40 = arith.constant 0 : index
    %77 = vector.load %arg11[%c0_39, %c0_40] : memref<1x512xf32, #tpu.memory_space<vmem>>, vector<1x512xf32>
    %cst_41 = arith.constant 8.000000e-01 : f32
    %78 = vector.broadcast %cst_41 : f32 to vector<1x512xf32>
    %79 = arith.addf %76, %78 : vector<1x512xf32>
    %80 = math.rsqrt %79 : vector<1x512xf32>
    %81 = arith.mulf %77, %80 : vector<1x512xf32>
    %c0_42 = arith.constant 0 : index
    %c0_43 = arith.constant 0 : index
    %82 = vector.load %arg12[%c0_42, %c0_43] : memref<1x512xf32, #tpu.memory_space<vmem>>, vector<1x512xf32>
    %83 = arith.mulf %69, %81 : vector<1x512xf32>
    %84 = arith.subf %82, %83 : vector<1x512xf32>
    %85 = vector.broadcast %81 : vector<1x512xf32> to vector<8x512xf32>
    %86 = arith.mulf %65, %85 : vector<8x512xf32>
    %87 = vector.broadcast %84 : vector<1x512xf32> to vector<8x512xf32>
    %88 = arith.addf %86, %87 : vector<8x512xf32>
    %cst_44 = arith.constant 0.000000e+00 : f32
    %89 = vector.broadcast %cst_44 : f32 to vector<8x512xf32>
    %90 = arith.cmpf ogt, %88, %89 : vector<8x512xf32>
    %cst_45 = arith.constant 2.000000e-01 : f32
    %91 = vector.broadcast %cst_45 : f32 to vector<8x512xf32>
    %92 = arith.mulf %91, %88 : vector<8x512xf32>
    %93 = arith.select %90, %88, %92 : vector<8x512xi1>, vector<8x512xf32>
    %c0_i32_46 = arith.constant 0 : i32
    %94 = tpu.memref_slice %arg22[%c0_i32_46] : memref<2x!tpu.dma_semaphore, #tpu.memory_space<semaphore_mem>> -> memref<1x!tpu.dma_semaphore, #tpu.memory_space<semaphore_mem>>
    %95 = tpu.memref_squeeze %94 : memref<1x!tpu.dma_semaphore, #tpu.memory_space<semaphore_mem>> -> memref<!tpu.dma_semaphore, #tpu.memory_space<semaphore_mem>>
    tpu.wait_dma2 semaphore(%95 : memref<!tpu.dma_semaphore, #tpu.memory_space<semaphore_mem>>) src(%arg13 : memref<512x1024xbf16, #tpu.memory_space<any>>) dst(%arg20 : memref<512x1024xbf16, #tpu.memory_space<vmem>>)
    %c0_47 = arith.constant 0 : index
    %c0_48 = arith.constant 0 : index
    %96 = vector.load %arg20[%c0_47, %c0_48] : memref<512x1024xbf16, #tpu.memory_space<vmem>>, vector<512x1024xbf16>
    %97 = arith.truncf %93 : vector<8x512xf32> to vector<8x512xbf16>
    %cst_49 = arith.constant dense<0.000000e+00> : vector<8x1024xf32>
    %98 = tpu.matmul %97, %96, %cst_49 {dimension_numbers = #tpu.dot_dimension_numbers<[1], [0], [0], [1], [0, 0, 1, 1], [], []>} : vector<8x512xbf16>, vector<512x1024xbf16>, vector<8x1024xf32> -> vector<8x1024xf32>
    %c0_50 = arith.constant 0 : index
    %c0_51 = arith.constant 0 : index
    %99 = vector.load %arg14[%c0_50, %c0_51] : memref<1x1024xf32, #tpu.memory_space<vmem>>, vector<1x1024xf32>
    %100 = vector.broadcast %99 : vector<1x1024xf32> to vector<8x1024xf32>
    %101 = arith.addf %98, %100 : vector<8x1024xf32>
    %cst_52 = arith.constant dense<0.000000e+00> : vector<1024xf32>
    %102 = vector.multi_reduction <add>, %101, %cst_52 [0] : vector<8x1024xf32> to vector<1024xf32>
    %103 = vector.shape_cast %102 : vector<1024xf32> to vector<1x1024xf32>
    %cst_53 = arith.constant 8.000000e+00 : f32
    %104 = vector.broadcast %cst_53 : f32 to vector<1x1024xf32>
    %105 = arith.divf %103, %104 : vector<1x1024xf32>
    %106 = arith.mulf %101, %101 : vector<8x1024xf32>
    %cst_54 = arith.constant dense<0.000000e+00> : vector<1024xf32>
    %107 = vector.multi_reduction <add>, %106, %cst_54 [0] : vector<8x1024xf32> to vector<1024xf32>
    %108 = vector.shape_cast %107 : vector<1024xf32> to vector<1x1024xf32>
    %cst_55 = arith.constant 8.000000e+00 : f32
    %109 = vector.broadcast %cst_55 : f32 to vector<1x1024xf32>
    %110 = arith.divf %108, %109 : vector<1x1024xf32>
    %111 = arith.mulf %105, %105 : vector<1x1024xf32>
    %112 = arith.subf %110, %111 : vector<1x1024xf32>
    %c0_56 = arith.constant 0 : index
    %c0_57 = arith.constant 0 : index
    %113 = vector.load %arg15[%c0_56, %c0_57] : memref<1x1024xf32, #tpu.memory_space<vmem>>, vector<1x1024xf32>
    %cst_58 = arith.constant 8.000000e-01 : f32
    %114 = vector.broadcast %cst_58 : f32 to vector<1x1024xf32>
    %115 = arith.addf %112, %114 : vector<1x1024xf32>
    %116 = math.rsqrt %115 : vector<1x1024xf32>
    %117 = arith.mulf %113, %116 : vector<1x1024xf32>
    %c0_59 = arith.constant 0 : index
    %c0_60 = arith.constant 0 : index
    %118 = vector.load %arg16[%c0_59, %c0_60] : memref<1x1024xf32, #tpu.memory_space<vmem>>, vector<1x1024xf32>
    %119 = arith.mulf %105, %117 : vector<1x1024xf32>
    %120 = arith.subf %118, %119 : vector<1x1024xf32>
    %121 = vector.broadcast %117 : vector<1x1024xf32> to vector<8x1024xf32>
    %122 = arith.mulf %101, %121 : vector<8x1024xf32>
    %123 = vector.broadcast %120 : vector<1x1024xf32> to vector<8x1024xf32>
    %124 = arith.addf %122, %123 : vector<8x1024xf32>
    %cst_61 = arith.constant 0.000000e+00 : f32
    %125 = vector.broadcast %cst_61 : f32 to vector<8x1024xf32>
    %126 = arith.cmpf ogt, %124, %125 : vector<8x1024xf32>
    %cst_62 = arith.constant 2.000000e-01 : f32
    %127 = vector.broadcast %cst_62 : f32 to vector<8x1024xf32>
    %128 = arith.mulf %127, %124 : vector<8x1024xf32>
    %129 = arith.select %126, %124, %128 : vector<8x1024xi1>, vector<8x1024xf32>
    %c1_i32_63 = arith.constant 1 : i32
    %130 = tpu.memref_slice %arg22[%c1_i32_63] : memref<2x!tpu.dma_semaphore, #tpu.memory_space<semaphore_mem>> -> memref<1x!tpu.dma_semaphore, #tpu.memory_space<semaphore_mem>>
    %131 = tpu.memref_squeeze %130 : memref<1x!tpu.dma_semaphore, #tpu.memory_space<semaphore_mem>> -> memref<!tpu.dma_semaphore, #tpu.memory_space<semaphore_mem>>
    tpu.wait_dma2 semaphore(%131 : memref<!tpu.dma_semaphore, #tpu.memory_space<semaphore_mem>>) src(%arg17 : memref<1024x256xbf16, #tpu.memory_space<any>>) dst(%arg21 : memref<1024x256xbf16, #tpu.memory_space<vmem>>)
    %c0_64 = arith.constant 0 : index
    %c0_65 = arith.constant 0 : index
    %132 = vector.load %arg21[%c0_64, %c0_65] : memref<1024x256xbf16, #tpu.memory_space<vmem>>, vector<1024x256xbf16>
    %133 = arith.truncf %129 : vector<8x1024xf32> to vector<8x1024xbf16>
    %cst_66 = arith.constant dense<0.000000e+00> : vector<8x256xf32>
    %134 = tpu.matmul %133, %132, %cst_66 {dimension_numbers = #tpu.dot_dimension_numbers<[1], [0], [0], [1], [0, 0, 1, 1], [], []>} : vector<8x1024xbf16>, vector<1024x256xbf16>, vector<8x256xf32> -> vector<8x256xf32>
    %c0_67 = arith.constant 0 : index
    %c0_68 = arith.constant 0 : index
    %135 = vector.load %arg18[%c0_67, %c0_68] : memref<1x256xf32, #tpu.memory_space<vmem>>, vector<1x256xf32>
    %136 = vector.broadcast %135 : vector<1x256xf32> to vector<8x256xf32>
    %137 = arith.addf %134, %136 : vector<8x256xf32>
    %138 = math.tanh %137 : vector<8x256xf32>
    %c0_69 = arith.constant 0 : index
    %c0_70 = arith.constant 0 : index
    %139 = vector.load %arg19[%c0_69, %c0_70] : memref<8x256xf32, #tpu.memory_space<vmem>>, vector<8x256xf32>
    tpu.vector_store %arg19[%c0_69, %c0_70], %138 {strides = array<i32>} : memref<8x256xf32, #tpu.memory_space<vmem>>, vector<8x256xf32>,
    return
  }
}

</mosaic_0001>

<llo_original>
// kernel: generator_forward.1
$region0: #{generator_forward.1}
  #allocation0 [shape = 'u32[]', space=smem, size = 0x4, offset = 0x4, fixed_abs, tag = 'smem constant byte address 0x4 - core index']
  #allocation1 [shape = 'u32[144,128]{1,0:T(1,128)}', space=vmem, size = 0x12000, scoped, tag = 'internal scratch']
  #allocation2 [shape = 'bf16[512,1024]{1,0:T(8,128)(2,1)}', space=vmem, size = 0x100000, scoped, tag = 'scratch operand']
  #allocation3 [shape = 'bf16[1024,256]{1,0:T(8,128)(2,1)}', space=vmem, size = 0x80000, scoped, tag = 'scratch operand']
  #allocation4 [shape = 's32[2]{0}', space=sflag, size = 0x8, scoped, tag = 'scratch operand']
  #allocation25 [shape = 's32[]', space=sflag, size = 0x4, offset = 0, fixed_abs, tag = 'sflag constant byte address 0x0 - dummy sync flag']
  #allocation26 [shape = 's32[]', space=sflag, size = 0x4, offset = 0, fixed_abs, tag = 'sflag constant byte address 0x0 - dummy sync flag']
  #allocation27 [shape = 'u32[]', space=smem, size = 0x4, offset = 0x44, fixed_abs, tag = 'smem constant byte address 0x44 - assertion arg 0']
  #allocation28 [shape = 'u32[]', space=smem, size = 0x4, offset = 0x48, fixed_abs, tag = 'smem constant byte address 0x48 - assertion arg 1']
  #allocation29 [shape = 's32[]', space=sflag, size = 0x4, offset = 0, fixed_abs, tag = 'sflag constant byte address 0x0 - dummy sync flag']
  #allocation30 [shape = 's32[]', space=sflag, size = 0x4, offset = 0, fixed_abs, tag = 'sflag constant byte address 0x0 - dummy sync flag']
  %s0 = inlined_call_operand.vmem [shape: s32[8,1], index: 0, kind: input, shape index: {}]
  %s1 = inlined_call_operand.vmem [shape: f32[8,16], index: 1, kind: input, shape index: {}]
  %s2 = inlined_call_operand.hbm [shape: f32[8,8], index: 2, kind: input, shape index: {}]
  %s3 = inlined_call_operand.vmem [shape: f32[24,128], index: 3, kind: input, shape index: {}]
  %s4 = inlined_call_operand.hbm [shape: f32[1,128], index: 4, kind: input, shape index: {}]
  %s5 = inlined_call_operand.hbm [shape: bf16[128,256], index: 5, kind: input, shape index: {}]
  %s6 = inlined_call_operand.hbm [shape: f32[1,256], index: 6, kind: input, shape index: {}]
  %s7 = inlined_call_operand.hbm [shape: f32[1,256], index: 7, kind: input, shape index: {}]
  %s8 = inlined_call_operand.hbm [shape: f32[1,256], index: 8, kind: input, shape index: {}]
  %s9 = inlined_call_operand.hbm [shape: bf16[256,512], index: 9, kind: input, shape index: {}]
  %s10 = inlined_call_operand.vmem [shape: f32[1,512], index: 10, kind: input, shape index: {}]
  %s11 = inlined_call_operand.hbm [shape: f32[1,512], index: 11, kind: input, shape index: {}]
  %s12 = inlined_call_operand.hbm [shape: f32[1,512], index: 12, kind: input, shape index: {}]
  %s13 = inlined_call_operand.hbm [shape: bf16[512,1024], index: 13, kind: input, shape index: {}]
  %s14 = inlined_call_operand.hbm [shape: f32[1,1024], index: 14, kind: input, shape index: {}]
  %s15 = inlined_call_operand.hbm [shape: f32[1,1024], index: 15, kind: input, shape index: {}]
  %s16 = inlined_call_operand.hbm [shape: f32[1,1024], index: 16, kind: input, shape index: {}]
  %s17 = inlined_call_operand.hbm [shape: bf16[1024,256], index: 17, kind: input, shape index: {}]
  %s18 = inlined_call_operand.hbm [shape: f32[1,256], index: 18, kind: input, shape index: {}]
  %s19 = inlined_call_operand.vmem [shape: f32[8,256], index: 19, kind: output, shape index: {}]
  %s20 = sld [smem:[#allocation0]]
  $region138: #{generator_forward.1} parent=0
    _
  %s22 = ssub.s32 1, %s20
  %s23 = scalar_select 0, %s22, %s20
  $region1: #{generator_forward.1} parent=0
    #allocation5 [shape = 'u8[4096]{0}', space=vmem, size = 0x1000, scoped, tag = 'input window, operand 2, single buffered']
    #allocation6 [shape = 's32[1]{0}', space=sflag, size = 0x4, scoped, tag = 'scoped memory for generator_forward.1']
    #allocation7 [shape = 'u8[512]{0}', space=vmem, size = 0x400, scoped, tag = 'input window, operand 4, single buffered']
    #allocation8 [shape = 's32[1]{0}', space=sflag, size = 0x4, scoped, tag = 'scoped memory for generator_forward.1']
    #allocation9 [shape = 'u8[65536]{0}', space=vmem, size = 0x10000, scoped, tag = 'input window, operand 5, single buffered']
    #allocation10 [shape = 'u8[1024]{0}', space=vmem, size = 0x400, scoped, tag = 'input window, operand 6, single buffered']
    #allocation11 [shape = 's32[1]{0}', space=sflag, size = 0x4, scoped, tag = 'scoped memory for generator_forward.1']
    #allocation12 [shape = 'u8[1024]{0}', space=vmem, size = 0x400, scoped, tag = 'input window, operand 7, single buffered']
    #allocation13 [shape = 'u8[1024]{0}', space=vmem, size = 0x400, scoped, tag = 'input window, operand 8, single buffered']
    #allocation14 [shape = 's32[1]{0}', space=sflag, size = 0x4, scoped, tag = 'scoped memory for generator_forward.1']
    #allocation15 [shape = 'u8[262144]{0}', space=vmem, size = 0x40000, scoped, tag = 'input window, operand 9, single buffered']
    #allocation16 [shape = 'u8[2048]{0}', space=vmem, size = 0x800, scoped, tag = 'input window, operand 11, single buffered']
    #allocation17 [shape = 's32[1]{0}', space=sflag, size = 0x4, scoped, tag = 'scoped memory for generator_forward.1']
    #allocation18 [shape = 'u8[2048]{0}', space=vmem, size = 0x800, scoped, tag = 'input window, operand 12, single buffered']
    #allocation19 [shape = 'u8[4096]{0}', space=vmem, size = 0x1000, scoped, tag = 'input window, operand 14, single buffered']
    #allocation20 [shape = 's32[1]{0}', space=sflag, size = 0x4, scoped, tag = 'scoped memory for generator_forward.1']
    #allocation21 [shape = 'u8[4096]{0}', space=vmem, size = 0x1000, scoped, tag = 'input window, operand 15, single buffered']
    #allocation22 [shape = 'u8[4096]{0}', space=vmem, size = 0x1000, scoped, tag = 'input window, operand 16, single buffered']
    #allocation23 [shape = 's32[1]{0}', space=sflag, size = 0x4, scoped, tag = 'scoped memory for generator_forward.1']
    #allocation24 [shape = 'u8[1024]{0}', space=vmem, size = 0x400, scoped, tag = 'input window, operand 18, single buffered']
    %24 = vsyncpa [#allocation6], 0
    %25 = vsyncpa [#allocation8], 0
    %26 = vsyncpa [#allocation11], 0
    %27 = vsyncpa [#allocation14], 0
    %28 = vsyncpa [#allocation17], 0
    %29 = vsyncpa [#allocation20], 0
    %30 = vsyncpa [#allocation23], 0
    // Predicated region
    $region2: #{generator_forward.1} parent=1 // pred_check
      _
    $region3: #{generator_forward.1} parent=1 // pred_check_branch
      %32 = sbr.rel (0) target = $region5
    $region4: #{generator_forward.1} parent=1 // pred_region
      _
    $region5: #{generator_forward.1} parent=1 // pred_fallthru
      _
    // Predicated region
    $region6: #{generator_forward.1} parent=1 // pred_check
      _
    $region7: #{generator_forward.1} parent=1 // pred_check_branch
      %34 = sbr.rel (0) target = $region9
    $region8: #{generator_forward.1} parent=1 // pred_region
      _
    $region9: #{generator_forward.1} parent=1 // pred_fallthru
      _
    // Predicated region
    $region10: #{generator_forward.1} parent=1 // pred_check
      _
    $region11: #{generator_forward.1} parent=1 // pred_check_branch
      %36 = sbr.rel (0) target = $region13
    $region12: #{generator_forward.1} parent=1 // pred_region
      %s38 = ssub.s32 128, 128
      %39 = vsyncadd [#allocation6], %s38
      %s41 = sshll.u32 [#allocation5], 4
      %s42 = int_to_ptr.vmem [resolvable:$true] %s41
      %44 = dma.hbm_to_vmem [thread:$0]  %s2, 128, %s42, [#allocation6]
    $region13: #{generator_forward.1} parent=1 // pred_fallthru
      _
    // Predicated region
    $region14: #{generator_forward.1} parent=1 // pred_check
      _
    $region15: #{generator_forward.1} parent=1 // pred_check_branch
      %46 = sbr.rel (0) target = $region17
    $region16: #{generator_forward.1} parent=1 // pred_region
      _
    $region17: #{generator_forward.1} parent=1 // pred_fallthru
      _
    // Predicated region
    $region18: #{generator_forward.1} parent=1 // pred_check
      _
    $region19: #{generator_forward.1} parent=1 // pred_check_branch
      %48 = sbr.rel (0) target = $region21
    $region20: #{generator_forward.1} parent=1 // pred_region
      %s50 = ssub.s32 16, 16
      %51 = vsyncadd [#allocation8], %s50
      %s53 = sshll.u32 [#allocation7], 4
      %s54 = int_to_ptr.vmem [resolvable:$true] %s53
      %56 = dma.hbm_to_vmem [thread:$0]  %s4, 16, %s54, [#allocation8]
    $region21: #{generator_forward.1} parent=1 // pred_fallthru
      _
    // Predicated region
    $region22: #{generator_forward.1} parent=1 // pred_check
      _
    $region23: #{generator_forward.1} parent=1 // pred_check_branch
      %58 = sbr.rel (0) target = $region25
    $region24: #{generator_forward.1} parent=1 // pred_region
      %s60 = ssub.s32 2048, 2048
      %61 = vsyncadd [#allocation8], %s60
      %s62 = sshll.u32 [#allocation9], 4
      %s63 = int_to_ptr.vmem [resolvable:$true] %s62
      %68 = dma.hbm_to_vmem [thread:$0]  %s5, 2048, %s63, [#allocation8], 128, 128, 8
    $region25: #{generator_forward.1} parent=1 // pred_fallthru
      _
    // Predicated region
    $region26: #{generator_forward.1} parent=1 // pred_check
      _
    $region27: #{generator_forward.1} parent=1 // pred_check_branch
      %70 = sbr.rel (0) target = $region29
    $region28: #{generator_forward.1} parent=1 // pred_region
      %s72 = ssub.s32 32, 32
      %73 = vsyncadd [#allocation11], %s72
      %s75 = sshll.u32 [#allocation10], 4
      %s76 = int_to_ptr.vmem [resolvable:$true] %s75
      %78 = dma.hbm_to_vmem [thread:$0]  %s6, 32, %s76, [#allocation11]
    $region29: #{generator_forward.1} parent=1 // pred_fallthru
      _
    // Predicated region
    $region30: #{generator_forward.1} parent=1 // pred_check
      _
    $region31: #{generator_forward.1} parent=1 // pred_check_branch
      %80 = sbr.rel (0) target = $region33
    $region32: #{generator_forward.1} parent=1 // pred_region
      %s82 = ssub.s32 32, 32
      %83 = vsyncadd [#allocation11], %s82
      %s85 = sshll.u32 [#allocation12], 4
      %s86 = int_to_ptr.vmem [resolvable:$true] %s85
      %88 = dma.hbm_to_vmem [thread:$0]  %s7, 32, %s86, [#allocation11]
    $region33: #{generator_forward.1} parent=1 // pred_fallthru
      _
    // Predicated region
    $region34: #{generator_forward.1} parent=1 // pred_check
      _
    $region35: #{generator_forward.1} parent=1 // pred_check_branch
      %90 = sbr.rel (0) target = $region37
    $region36: #{generator_forward.1} parent=1 // pred_region
      %s92 = ssub.s32 32, 32
      %93 = vsyncadd [#allocation14], %s92
      %s95 = sshll.u32 [#allocation13], 4
      %s96 = int_to_ptr.vmem [resolvable:$true] %s95
      %98 = dma.hbm_to_vmem [thread:$0]  %s8, 32, %s96, [#allocation14]
    $region37: #{generator_forward.1} parent=1 // pred_fallthru
      _
    // Predicated region
    $region38: #{generator_forward.1} parent=1 // pred_check
      _
    $region39: #{generator_forward.1} parent=1 // pred_check_branch
      %100 = sbr.rel (0) target = $region41
    $region40: #{generator_forward.1} parent=1 // pred_region
      %s102 = ssub.s32 8192, 8192
      %103 = vsyncadd [#allocation14], %s102
      %s104 = sshll.u32 [#allocation15], 4
      %s105 = int_to_ptr.vmem [resolvable:$true] %s104
      %110 = dma.hbm_to_vmem [thread:$0]  %s9, 8192, %s105, [#allocation14], 256, 256, 16
    $region41: #{generator_forward.1} parent=1 // pred_fallthru
      _
    // Predicated region
    $region42: #{generator_forward.1} parent=1 // pred_check
      _
    $region43: #{generator_forward.1} parent=1 // pred_check_branch
      %112 = sbr.rel (0) target = $region45
    $region44: #{generator_forward.1} parent=1 // pred_region
      _
    $region45: #{generator_forward.1} parent=1 // pred_fallthru
      _
    // Predicated region
    $region46: #{generator_forward.1} parent=1 // pred_check
      _
    $region47: #{generator_forward.1} parent=1 // pred_check_branch
      %114 = sbr.rel (0) target = $region49
    $region48: #{generator_forward.1} parent=1 // pred_region
      %s116 = ssub.s32 64, 64
      %117 = vsyncadd [#allocation17], %s116
      %s119 = sshll.u32 [#allocation16], 4
      %s120 = int_to_ptr.vmem [resolvable:$true] %s119
      %122 = dma.hbm_to_vmem [thread:$0]  %s11, 64, %s120, [#allocation17]
    $region49: #{generator_forward.1} parent=1 // pred_fallthru
      _
    // Predicated region
    $region50: #{generator_forward.1} parent=1 // pred_check
      _
    $region51: #{generator_forward.1} parent=1 // pred_check_branch
      %124 = sbr.rel (0) target = $region53
    $region52: #{generator_forward.1} parent=1 // pred_region
      %s126 = ssub.s32 64, 64
      %127 = vsyncadd [#allocation17], %s126
      %s129 = sshll.u32 [#allocation18], 4
      %s130 = int_to_ptr.vmem [resolvable:$true] %s129
      %132 = dma.hbm_to_vmem [thread:$0]  %s12, 64, %s130, [#allocation17]
    $region53: #{generator_forward.1} parent=1 // pred_fallthru
      _
    // Predicated region
    $region54: #{generator_forward.1} parent=1 // pred_check
      _
    $region55: #{generator_forward.1} parent=1 // pred_check_branch
      %134 = sbr.rel (0) target = $region57
    $region56: #{generator_forward.1} parent=1 // pred_region
      %s136 = ssub.s32 128, 128
      %137 = vsyncadd [#allocation20], %s136
      %s139 = sshll.u32 [#allocation19], 4
      %s140 = int_to_ptr.vmem [resolvable:$true] %s139
      %142 = dma.hbm_to_vmem [thread:$0]  %s14, 128, %s140, [#allocation20]
    $region57: #{generator_forward.1} parent=1 // pred_fallthru
      _
    // Predicated region
    $region58: #{generator_forward.1} parent=1 // pred_check
      _
    $region59: #{generator_forward.1} parent=1 // pred_check_branch
      %144 = sbr.rel (0) target = $region61
    $region60: #{generator_forward.1} parent=1 // pred_region
      %s146 = ssub.s32 128, 128
      %147 = vsyncadd [#allocation20], %s146
      %s149 = sshll.u32 [#allocation21], 4
      %s150 = int_to_ptr.vmem [resolvable:$true] %s149
      %152 = dma.hbm_to_vmem [thread:$0]  %s15, 128, %s150, [#allocation20]
    $region61: #{generator_forward.1} parent=1 // pred_fallthru
      _
    // Predicated region
    $region62: #{generator_forward.1} parent=1 // pred_check
      _
    $region63: #{generator_forward.1} parent=1 // pred_check_branch
      %154 = sbr.rel (0) target = $region65
    $region64: #{generator_forward.1} parent=1 // pred_region
      %s156 = ssub.s32 128, 128
      %157 = vsyncadd [#allocation23], %s156
      %s159 = sshll.u32 [#allocation22], 4
      %s160 = int_to_ptr.vmem [resolvable:$true] %s159
      %162 = dma.hbm_to_vmem [thread:$0]  %s16, 128, %s160, [#allocation23]
    $region65: #{generator_forward.1} parent=1 // pred_fallthru
      _
    // Predicated region
    $region66: #{generator_forward.1} parent=1 // pred_check
      _
    $region67: #{generator_forward.1} parent=1 // pred_check_branch
      %164 = sbr.rel (0) target = $region69
    $region68: #{generator_forward.1} parent=1 // pred_region
      %s166 = ssub.s32 32, 32
      %167 = vsyncadd [#allocation23], %s166
      %s169 = sshll.u32 [#allocation24], 4
      %s170 = int_to_ptr.vmem [resolvable:$true] %s169
      %172 = dma.hbm_to_vmem [thread:$0]  %s18, 32, %s170, [#allocation23]
    $region69: #{generator_forward.1} parent=1 // pred_fallthru
      _
    // Predicated region
    $region70: #{generator_forward.1} parent=1 // pred_check
      _
    $region71: #{generator_forward.1} parent=1 // pred_check_branch
      %174 = sbr.rel (0) target = $region73
    $region72: #{generator_forward.1} parent=1 // pred_region
      %175 = dma.done [#allocation6], 128
    $region73: #{generator_forward.1} parent=1 // pred_fallthru
      _
    // Predicated region
    $region74: #{generator_forward.1} parent=1 // pred_check
      _
    $region75: #{generator_forward.1} parent=1 // pred_check_branch
      %177 = sbr.rel (0) target = $region77
    $region76: #{generator_forward.1} parent=1 // pred_region
      %178 = dma.done [#allocation8], 16
    $region77: #{generator_forward.1} parent=1 // pred_fallthru
      _
    // Predicated region
    $region78: #{generator_forward.1} parent=1 // pred_check
      _
    $region79: #{generator_forward.1} parent=1 // pred_check_branch
      %180 = sbr.rel (0) target = $region81
    $region80: #{generator_forward.1} parent=1 // pred_region
      %181 = dma.done [#allocation8], 2048
    $region81: #{generator_forward.1} parent=1 // pred_fallthru
      _
    // Predicated region
    $region82: #{generator_forward.1} parent=1 // pred_check
      _
    $region83: #{generator_forward.1} parent=1 // pred_check_branch
      %183 = sbr.rel (0) target = $region85
    $region84: #{generator_forward.1} parent=1 // pred_region
      %184 = dma.done [#allocation11], 32
    $region85: #{generator_forward.1} parent=1 // pred_fallthru
      _
    // Predicated region
    $region86: #{generator_forward.1} parent=1 // pred_check
      _
    $region87: #{generator_forward.1} parent=1 // pred_check_branch
      %186 = sbr.rel (0) target = $region89
    $region88: #{generator_forward.1} parent=1 // pred_region
      %187 = dma.done [#allocation11], 32
    $region89: #{generator_forward.1} parent=1 // pred_fallthru
      _
    // Predicated region
    $region90: #{generator_forward.1} parent=1 // pred_check
      _
    $region91: #{generator_forward.1} parent=1 // pred_check_branch
      %189 = sbr.rel (0) target = $region93
    $region92: #{generator_forward.1} parent=1 // pred_region
      %190 = dma.done [#allocation14], 32
    $region93: #{generator_forward.1} parent=1 // pred_fallthru
      _
    // Predicated region
    $region94: #{generator_forward.1} parent=1 // pred_check
      _
    $region95: #{generator_forward.1} parent=1 // pred_check_branch
      %192 = sbr.rel (0) target = $region97
    $region96: #{generator_forward.1} parent=1 // pred_region
      %193 = dma.done [#allocation14], 8192
    $region97: #{generator_forward.1} parent=1 // pred_fallthru
      _
    // Predicated region
    $region98: #{generator_forward.1} parent=1 // pred_check
      _
    $region99: #{generator_forward.1} parent=1 // pred_check_branch
      %195 = sbr.rel (0) target = $region101
    $region100: #{generator_forward.1} parent=1 // pred_region
      %196 = dma.done [#allocation17], 64
    $region101: #{generator_forward.1} parent=1 // pred_fallthru
      _
    // Predicated region
    $region102: #{generator_forward.1} parent=1 // pred_check
      _
    $region103: #{generator_forward.1} parent=1 // pred_check_branch
      %198 = sbr.rel (0) target = $region105
    $region104: #{generator_forward.1} parent=1 // pred_region
      %199 = dma.done [#allocation17], 64
    $region105: #{generator_forward.1} parent=1 // pred_fallthru
      _
    // Predicated region
    $region106: #{generator_forward.1} parent=1 // pred_check
      _
    $region107: #{generator_forward.1} parent=1 // pred_check_branch
      %201 = sbr.rel (0) target = $region109
    $region108: #{generator_forward.1} parent=1 // pred_region
      %202 = dma.done [#allocation20], 128
    $region109: #{generator_forward.1} parent=1 // pred_fallthru
      _
    // Predicated region
    $region110: #{generator_forward.1} parent=1 // pred_check
      _
    $region111: #{generator_forward.1} parent=1 // pred_check_branch
      %204 = sbr.rel (0) target = $region113
    $region112: #{generator_forward.1} parent=1 // pred_region
      %205 = dma.done [#allocation20], 128
    $region113: #{generator_forward.1} parent=1 // pred_fallthru
      _
    // Predicated region
    $region114: #{generator_forward.1} parent=1 // pred_check
      _
    $region115: #{generator_forward.1} parent=1 // pred_check_branch
      %207 = sbr.rel (0) target = $region117
    $region116: #{generator_forward.1} parent=1 // pred_region
      %208 = dma.done [#allocation23], 128
    $region117: #{generator_forward.1} parent=1 // pred_fallthru
      _
    // Predicated region
    $region118: #{generator_forward.1} parent=1 // pred_check
      _
    $region119: #{generator_forward.1} parent=1 // pred_check_branch
      %210 = sbr.rel (0) target = $region121
    $region120: #{generator_forward.1} parent=1 // pred_region
      %211 = dma.done [#allocation23], 32
    $region121: #{generator_forward.1} parent=1 // pred_fallthru
      _
    // Predicated region
    $region122: #{generator_forward.1} parent=1 // pred_check
      _
    $region123: #{generator_forward.1} parent=1 // pred_check_branch
      %214 = sbr.rel target = $region125
    $region124: #{generator_forward.1} parent=1 // pred_region
      %215 = sst [smem:[#allocation27]] [#allocation26]
      %216 = sst [smem:[#allocation28]] [#allocation25]
    $region125: #{generator_forward.1} parent=1 // pred_fallthru
      _
    %218 = shalt.err (0)
    %s220 = sshll.u32 [#allocation2], 4
    %s221 = int_to_ptr.vmem [resolvable:$true] %s220
    %223 = dma.hbm_to_vmem [thread:$0]  %s13, 32768, %s221, [#allocation4]
    %s224 = scalar_lea.sflag [#allocation4], 1
    // Predicated region
    $region126: #{generator_forward.1} parent=1 // pred_check
      _
    $region127: #{generator_forward.1} parent=1 // pred_check_branch
      %226 = sbr.rel target = $region129
    $region128: #{generator_forward.1} parent=1 // pred_region
      %227 = sst [smem:[#allocation27]] [#allocation30]
      %228 = sst [smem:[#allocation28]] [#allocation29]
    $region129: #{generator_forward.1} parent=1 // pred_fallthru
      _
    %230 = shalt.err (0)
    %s232 = sshll.u32 [#allocation3], 4
    %s233 = int_to_ptr.vmem [resolvable:$true] %s232
    %235 = dma.hbm_to_vmem [thread:$0]  %s17, 16384, %s233, %s224
    %v236 = vld [vmem:[%s0] sm:$0xff]
    %v237 = vlaneseq
    %v238 = vand.u32 %v237, 127
    %239 = vset.pattern.permute.xlu0 0
    %240 = vperm.xlu0 %239, %v236
    %v241 = vpop.permute.xlu0 %240
    %vm242 = vcmp.eq.s32.totalorder %v241, %v238
    %v243 = vsel %vm242, 1, 0
    %v244 = vcvt.s32.f32 %v243
    %v245 = vld [vmem:[#allocation5] sm:$0xff]
    %vm246 = vcmask 64512
    %v248 = vsel %vm246, %v244, 0
    %250 = vmatprep.subr.mxu0 0.0
    %251 = vmatpush1.msra.mxu0 0.0
    %252 = vmatprep.subr.mxu0 0.0
    %253 = vmatpush1.msra.mxu0 0.0
    %254 = vmatprep.subr.mxu0 0.0
    %255 = vmatpush1.msra.mxu0 0.0
    %256 = vmatprep.subr.mxu0 0.0
    %257 = vmatpush1.msra.mxu0 0.0
    %258 = vmatprep.subr.mxu0 0.0
    %259 = vmatpush1.msra.mxu0 0.0
    %260 = vmatprep.subr.mxu0 0.0
    %261 = vmatpush1.msra.mxu0 0.0
    %262 = vmatprep.subr.mxu0 0.0
    %263 = vmatpush1.msra.mxu0 0.0
    %264 = vmatprep.subr.mxu0 0.0
    %265 = vmatpush1.msra.mxu0 0.0
    %266 = vmatprep.subr.mxu0 0.0
    %267 = vmatpush1.msra.mxu0 0.0
    %268 = vmatprep.subr.mxu0 0.0
    %269 = vmatpush1.msra.mxu0 0.0
    %270 = vmatprep.subr.mxu0 0.0
    %271 = vmatpush1.msra.mxu0 0.0
    %272 = vmatprep.subr.mxu0 0.0
    %273 = vmatpush1.msra.mxu0 0.0
    %274 = vmatprep.subr.mxu0 0.0
    %275 = vmatpush1.msra.mxu0 0.0
    %276 = vmatprep.subr.mxu0 0.0
    %277 = vmatpush1.msra.mxu0 0.0
    %278 = vmatprep.subr.mxu0 0.0
    %279 = vmatpush1.msra.mxu0 0.0
    %280 = vmatprep.subr.mxu0 0.0
    %281 = vmatpush1.msra.mxu0 %v245
    %282 = vmatprep.subr.mxu0 0.0
    %283 = vmatpush2.msra.mxu0 0.0
    %284 = vmatprep.subr.mxu0 0.0
    %285 = vmatpush2.msra.mxu0 0.0
    %286 = vmatprep.subr.mxu0 0.0
    %287 = vmatpush2.msra.mxu0 0.0
    %288 = vmatprep.subr.mxu0 0.0
    %289 = vmatpush2.msra.mxu0 0.0
    %290 = vmatprep.subr.mxu0 0.0
    %291 = vmatpush2.msra.mxu0 0.0
    %292 = vmatprep.subr.mxu0 0.0
    %293 = vmatpush2.msra.mxu0 0.0
    %294 = vmatprep.subr.mxu0 0.0
    %295 = vmatpush2.msra.mxu0 0.0
    %296 = vmatprep.subr.mxu0 0.0
    %297 = vmatpush2.msra.mxu0 0.0
    %298 = vmatprep.subr.mxu0 0.0
    %299 = vmatpush2.msra.mxu0 0.0
    %300 = vmatprep.subr.mxu0 0.0
    %301 = vmatpush2.msra.mxu0 0.0
    %302 = vmatprep.subr.mxu0 0.0
    %303 = vmatpush2.msra.mxu0 0.0
    %304 = vmatprep.subr.mxu0 0.0
    %305 = vmatpush2.msra.mxu0 0.0
    %306 = vmatprep.subr.mxu0 0.0
    %307 = vmatpush2.msra.mxu0 0.0
    %308 = vmatprep.subr.mxu0 0.0
    %309 = vmatpush2.msra.mxu0 0.0
    %310 = vmatprep.subr.mxu0 0.0
    %311 = vmatpush2.msra.mxu0 0.0
    %312 = vmatprep.subr.mxu0 0.0
    %313 = vmatpush2.msra.mxu0 0.0
    %314 = vmatprep.mubr.f32.mxu0 0.0
    %315 = vmatmul.mubr.f32.gmra.mxu0 %v248
    %v316 = vpop.f32.mrf.mxu0
    %v317 = vadd.f32 0.0, %v316
    %v318 = vpop.f32.mrf.mxu0
    %319 = vdwg.mxu0
    %v320 = vld [vmem:[%s3] sm:$0xff]
    %v321 = vld [vmem:[%s1] sm:$0xff]
    %v322 = vld [vmem:[%s3 + $0x8] sm:$0xff]
    %v323 = vld [vmem:[%s3 + $0x10] sm:$0xff]
    %vm324 = vcmask 130048
    %v326 = vsel %vm324, %v321, 0
    %328 = vmatprep.subr.mxu0 0.0
    %329 = vmatpush1.msra.mxu0 0.0
    %330 = vmatprep.subr.mxu0 0.0
    %331 = vmatpush1.msra.mxu0 0.0
    %332 = vmatprep.subr.mxu0 0.0
    %333 = vmatpush1.msra.mxu0 0.0
    %334 = vmatprep.subr.mxu0 0.0
    %335 = vmatpush1.msra.mxu0 0.0
    %336 = vmatprep.subr.mxu0 0.0
    %337 = vmatpush1.msra.mxu0 0.0
    %338 = vmatprep.subr.mxu0 0.0
    %339 = vmatpush1.msra.mxu0 0.0
    %340 = vmatprep.subr.mxu0 0.0
    %341 = vmatpush1.msra.mxu0 0.0
    %342 = vmatprep.subr.mxu0 0.0
    %343 = vmatpush1.msra.mxu0 0.0
    %344 = vmatprep.subr.mxu0 0.0
    %345 = vmatpush1.msra.mxu0 0.0
    %346 = vmatprep.subr.mxu0 0.0
    %347 = vmatpush1.msra.mxu0 0.0
    %348 = vmatprep.subr.mxu0 0.0
    %349 = vmatpush1.msra.mxu0 0.0
    %350 = vmatprep.subr.mxu0 0.0
    %351 = vmatpush1.msra.mxu0 0.0
    %352 = vmatprep.subr.mxu0 0.0
    %353 = vmatpush1.msra.mxu0 0.0
    %354 = vmatprep.subr.mxu0 0.0
    %355 = vmatpush1.msra.mxu0 0.0
    %356 = vmatprep.subr.mxu0 0.0
    %357 = vmatpush1.msra.mxu0 %v323
    %358 = vmatprep.subr.mxu0 0.0
    %359 = vmatpush1.msra.mxu0 %v322
    %360 = vmatprep.subr.mxu0 0.0
    %361 = vmatpush2.msra.mxu0 0.0
    %362 = vmatprep.subr.mxu0 0.0
    %363 = vmatpush2.msra.mxu0 0.0
    %364 = vmatprep.subr.mxu0 0.0
    %365 = vmatpush2.msra.mxu0 0.0
    %366 = vmatprep.subr.mxu0 0.0
    %367 = vmatpush2.msra.mxu0 0.0
    %368 = vmatprep.subr.mxu0 0.0
    %369 = vmatpush2.msra.mxu0 0.0
    %370 = vmatprep.subr.mxu0 0.0
    %371 = vmatpush2.msra.mxu0 0.0
    %372 = vmatprep.subr.mxu0 0.0
    %373 = vmatpush2.msra.mxu0 0.0
    %374 = vmatprep.subr.mxu0 0.0
    %375 = vmatpush2.msra.mxu0 0.0
    %376 = vmatprep.subr.mxu0 0.0
    %377 = vmatpush2.msra.mxu0 0.0
    %378 = vmatprep.subr.mxu0 0.0
    %379 = vmatpush2.msra.mxu0 0.0
    %380 = vmatprep.subr.mxu0 0.0
    %381 = vmatpush2.msra.mxu0 0.0
    %382 = vmatprep.subr.mxu0 0.0
    %383 = vmatpush2.msra.mxu0 0.0
    %384 = vmatprep.subr.mxu0 0.0
    %385 = vmatpush2.msra.mxu0 0.0
    %386 = vmatprep.subr.mxu0 0.0
    %387 = vmatpush2.msra.mxu0 0.0
    %388 = vmatprep.subr.mxu0 0.0
    %389 = vmatpush2.msra.mxu0 0.0
    %390 = vmatprep.subr.mxu0 0.0
    %391 = vmatpush2.msra.mxu0 0.0
    %392 = vmatprep.mubr.f32.mxu0 0.0
    %393 = vmatmul.mubr.f32.gmra.mxu0 %v326
    %v394 = vpop.f32.mrf.mxu0
    %v395 = vadd.f32 0.0, %v394
    %v396 = vpop.f32.mrf.mxu0
    %397 = vdwg.mxu0
    %v399 = vsel %vm246, %v317, 0
    %401 = vmatprep.subr.mxu0 0.0
    %402 = vmatpush1.msra.mxu0 0.0
    %403 = vmatprep.subr.mxu0 0.0
    %404 = vmatpush1.msra.mxu0 0.0
    %405 = vmatprep.subr.mxu0 0.0
    %406 = vmatpush1.msra.mxu0 0.0
    %407 = vmatprep.subr.mxu0 0.0
    %408 = vmatpush1.msra.mxu0 0.0
    %409 = vmatprep.subr.mxu0 0.0
    %410 = vmatpush1.msra.mxu0 0.0
    %411 = vmatprep.subr.mxu0 0.0
    %412 = vmatpush1.msra.mxu0 0.0
    %413 = vmatprep.subr.mxu0 0.0
    %414 = vmatpush1.msra.mxu0 0.0
    %415 = vmatprep.subr.mxu0 0.0
    %416 = vmatpush1.msra.mxu0 0.0
    %417 = vmatprep.subr.mxu0 0.0
    %418 = vmatpush1.msra.mxu0 0.0
    %419 = vmatprep.subr.mxu0 0.0
    %420 = vmatpush1.msra.mxu0 0.0
    %421 = vmatprep.subr.mxu0 0.0
    %422 = vmatpush1.msra.mxu0 0.0
    %423 = vmatprep.subr.mxu0 0.0
    %424 = vmatpush1.msra.mxu0 0.0
    %425 = vmatprep.subr.mxu0 0.0
    %426 = vmatpush1.msra.mxu0 0.0
    %427 = vmatprep.subr.mxu0 0.0
    %428 = vmatpush1.msra.mxu0 0.0
    %429 = vmatprep.subr.mxu0 0.0
    %430 = vmatpush1.msra.mxu0 0.0
    %431 = vmatprep.subr.mxu0 0.0
    %432 = vmatpush1.msra.mxu0 %v320
    %433 = vmatprep.subr.mxu0 0.0
    %434 = vmatpush2.msra.mxu0 0.0
    %435 = vmatprep.subr.mxu0 0.0
    %436 = vmatpush2.msra.mxu0 0.0
    %437 = vmatprep.subr.mxu0 0.0
    %438 = vmatpush2.msra.mxu0 0.0
    %439 = vmatprep.subr.mxu0 0.0
    %440 = vmatpush2.msra.mxu0 0.0
    %441 = vmatprep.subr.mxu0 0.0
    %442 = vmatpush2.msra.mxu0 0.0
    %443 = vmatprep.subr.mxu0 0.0
    %444 = vmatpush2.msra.mxu0 0.0
    %445 = vmatprep.subr.mxu0 0.0
    %446 = vmatpush2.msra.mxu0 0.0
    %447 = vmatprep.subr.mxu0 0.0
    %448 = vmatpush2.msra.mxu0 0.0
    %449 = vmatprep.subr.mxu0 0.0
    %450 = vmatpush2.msra.mxu0 0.0
    %451 = vmatprep.subr.mxu0 0.0
    %452 = vmatpush2.msra.mxu0 0.0
    %453 = vmatprep.subr.mxu0 0.0
    %454 = vmatpush2.msra.mxu0 0.0
    %455 = vmatprep.subr.mxu0 0.0
    %456 = vmatpush2.msra.mxu0 0.0
    %457 = vmatprep.subr.mxu0 0.0
    %458 = vmatpush2.msra.mxu0 0.0
    %459 = vmatprep.subr.mxu0 0.0
    %460 = vmatpush2.msra.mxu0 0.0
    %461 = vmatprep.subr.mxu0 0.0
    %462 = vmatpush2.msra.mxu0 0.0
    %463 = vmatprep.subr.mxu0 0.0
    %464 = vmatpush2.msra.mxu0 0.0
    %465 = vmatprep.mubr.f32.mxu0 0.0
    %466 = vmatmul.mubr.f32.gmra.mxu0 %v399
    %v467 = vpop.f32.mrf.mxu0
    %v468 = vadd.f32 %v395, %v467
    %v469 = vpop.f32.mrf.mxu0
    %470 = vdwg.mxu0
    %v471 = vld [vmem:[#allocation7] sm:$0x1]
    %v473 = vlaneseq
    %v474 = vshrl.u32 %v473, 7
    %v475 = vsub.s32 0, %v474
    %v476 = vrot.slane %v471, %v475
    %v478 = vadd.f32 %v468, %v476
    %vm479 = vcmp.gt.f32.partialorder %v478, 0.0
    %v480 = vmul.f32 %v478, 0.2
    %v481 = vsel %vm479, %v478, %v480
    %v482 = vld [vmem:[#allocation9] sm:$0xff]
    %v483 = vld [vmem:[#allocation9 + $0x8] sm:$0xff]
    %v484 = vld [vmem:[#allocation9 + $0x10] sm:$0xff]
    %v485 = vld [vmem:[#allocation9 + $0x18] sm:$0xff]
    %v486 = vld [vmem:[#allocation9 + $0x20] sm:$0xff]
    %v487 = vld [vmem:[#allocation9 + $0x28] sm:$0xff]
    %v488 = vld [vmem:[#allocation9 + $0x30] sm:$0xff]
    %v489 = vld [vmem:[#allocation9 + $0x38] sm:$0xff]
    %v490 = vld [vmem:[#allocation9 + $0x40] sm:$0xff]
    %v491 = vld [vmem:[#allocation9 + $0x48] sm:$0xff]
    %v492 = vld [vmem:[#allocation9 + $0x50] sm:$0xff]
    %v493 = vld [vmem:[#allocation9 + $0x58] sm:$0xff]
    %v494 = vld [vmem:[#allocation9 + $0x60] sm:$0xff]
    %v495 = vld [vmem:[#allocation9 + $0x68] sm:$0xff]
    %v496 = vld [vmem:[#allocation9 + $0x70] sm:$0xff]
    %v497 = vld [vmem:[#allocation9 + $0x78] sm:$0xff]
    %v498 = vpack.c.bf16 %v481, %v481
    %v499 = vld [vmem:[#allocation10] sm:$0x3]
    %v501 = vlaneseq
    %v502 = vshrl.u32 %v501, 7
    %v503 = vsub.s32 0, %v502
    %v504 = vrot.slane %v499, %v503
    %v505 = vlaneseq
    %v506 = vshrl.u32 %v505, 7
    %v507 = vsub.s32 1, %v506
    %v508 = vrot.slane %v499, %v507
    %v527 = vunpack.c.l.b16 %v482
    %v528 = vunpack.c.h.b16 %v482
    %v529 = vunpack.c.l.b16 %v483
    %v530 = vunpack.c.h.b16 %v483
    %v531 = vunpack.c.l.b16 %v484
    %v532 = vunpack.c.h.b16 %v484
    %v533 = vunpack.c.l.b16 %v485
    %v534 = vunpack.c.h.b16 %v485
    %v535 = vunpack.c.l.b16 %v486
    %v536 = vunpack.c.h.b16 %v486
    %v537 = vunpack.c.l.b16 %v487
    %v538 = vunpack.c.h.b16 %v487
    %v539 = vunpack.c.l.b16 %v488
    %v540 = vunpack.c.h.b16 %v488
    %v541 = vunpack.c.l.b16 %v489
    %v542 = vunpack.c.h.b16 %v489
    %v543 = vunpack.c.l.b16 %v490
    %v544 = vunpack.c.h.b16 %v490
    %v545 = vunpack.c.l.b16 %v491
    %v546 = vunpack.c.h.b16 %v491
    %v547 = vunpack.c.l.b16 %v492
    %v548 = vunpack.c.h.b16 %v492
    %v549 = vunpack.c.l.b16 %v493
    %v550 = vunpack.c.h.b16 %v493
    %v551 = vunpack.c.l.b16 %v494
    %v552 = vunpack.c.h.b16 %v494
    %v553 = vunpack.c.l.b16 %v495
    %v554 = vunpack.c.h.b16 %v495
    %v555 = vunpack.c.l.b16 %v496
    %v556 = vunpack.c.h.b16 %v496
    %v557 = vunpack.c.l.b16 %v497
    %v558 = vunpack.c.h.b16 %v497
    %v559 = vpack.c.b16 %v529, %v527
    %v560 = vpack.c.b16 %v530, %v528
    %v561 = vpack.c.b16 %v533, %v531
    %v562 = vpack.c.b16 %v534, %v532
    %v563 = vpack.c.b16 %v537, %v535
    %v564 = vpack.c.b16 %v538, %v536
    %v565 = vpack.c.b16 %v541, %v539
    %v566 = vpack.c.b16 %v542, %v540
    %v567 = vpack.c.b16 %v545, %v543
    %v568 = vpack.c.b16 %v546, %v544
    %v569 = vpack.c.b16 %v549, %v547
    %v570 = vpack.c.b16 %v550, %v548
    %v571 = vpack.c.b16 %v553, %v551
    %v572 = vpack.c.b16 %v554, %v552
    %v573 = vpack.c.b16 %v557, %v555
    %v574 = vpack.c.b16 %v558, %v556
    %591 = vmatprep.subr.bf16.mxu0 %v574
    %592 = vmatpush1.bf16.msra.mxu0 %v573
    %593 = vmatprep.subr.bf16.mxu0 %v572
    %594 = vmatpush1.bf16.msra.mxu0 %v571
    %595 = vmatprep.subr.bf16.mxu0 %v570
    %596 = vmatpush1.bf16.msra.mxu0 %v569
    %597 = vmatprep.subr.bf16.mxu0 %v568
    %598 = vmatpush1.bf16.msra.mxu0 %v567
    %599 = vmatprep.subr.bf16.mxu0 %v566
    %600 = vmatpush1.bf16.msra.mxu0 %v565
    %601 = vmatprep.subr.bf16.mxu0 %v564
    %602 = vmatpush1.bf16.msra.mxu0 %v563
    %603 = vmatprep.subr.bf16.mxu0 %v562
    %604 = vmatpush1.bf16.msra.mxu0 %v561
    %605 = vmatprep.subr.bf16.mxu0 %v560
    %606 = vmatpush1.bf16.msra.mxu0 %v559
    %607 = vmatprep.subr.bf16.mxu0 0
    %608 = vmatpush2.bf16.msra.mxu0 0
    %609 = vmatprep.subr.bf16.mxu0 0
    %610 = vmatpush2.bf16.msra.mxu0 0
    %611 = vmatprep.subr.bf16.mxu0 0
    %612 = vmatpush2.bf16.msra.mxu0 0
    %613 = vmatprep.subr.bf16.mxu0 0
    %614 = vmatpush2.bf16.msra.mxu0 0
    %615 = vmatprep.subr.bf16.mxu0 0
    %616 = vmatpush2.bf16.msra.mxu0 0
    %617 = vmatprep.subr.bf16.mxu0 0
    %618 = vmatpush2.bf16.msra.mxu0 0
    %619 = vmatprep.subr.bf16.mxu0 0
    %620 = vmatpush2.bf16.msra.mxu0 0
    %621 = vmatprep.subr.bf16.mxu0 0
    %622 = vmatpush2.bf16.msra.mxu0 0
    %623 = vmatprep.mubr.bf16.mxu0 0
    %624 = vmatmul.mubr.bf16.gmra.mxu0 %v498
    %v625 = vpop.f32.mrf.mxu0
    %v626 = vadd.f32 %v504, %v625
    %v627 = vpop.f32.mrf.mxu0
    %v628 = vadd.f32 %v508, %v627
    %v629 = vpop.f32.mrf.mxu0
    %v630 = vpop.f32.mrf.mxu0
    %631 = vdwg.mxu0
    %v632 = vrot.slane %v626, 4
    %v633 = vadd.f32 %v626, %v632
    %v634 = vrot.slane %v633, 2
    %v635 = vadd.f32 %v633, %v634
    %v636 = vrot.slane %v635, 1
    %v637 = vadd.f32 %v635, %v636
    %v638 = vrot.slane %v628, 4
    %v639 = vadd.f32 %v628, %v638
    %v640 = vrot.slane %v639, 2
    %v641 = vadd.f32 %v639, %v640
    %v642 = vrot.slane %v641, 1
    %v643 = vadd.f32 %v641, %v642
    %v644 = vrcp.pop 8.0
    %v645 = vmul.f32 %v637, %v644
    %v646 = vmul.f32 %v643, %v644
    %v647 = vmul.f32 %v626, %v626
    %v648 = vmul.f32 %v628, %v628
    %v649 = vrot.slane %v647, 4
    %v650 = vadd.f32 %v647, %v649
    %v651 = vrot.slane %v650, 2
    %v652 = vadd.f32 %v650, %v651
    %v653 = vrot.slane %v652, 1
    %v654 = vadd.f32 %v652, %v653
    %v655 = vrot.slane %v648, 4
    %v656 = vadd.f32 %v648, %v655
    %v657 = vrot.slane %v656, 2
    %v658 = vadd.f32 %v656, %v657
    %v659 = vrot.slane %v658, 1
    %v660 = vadd.f32 %v658, %v659
    %v661 = vmul.f32 %v654, %v644
    %v662 = vmul.f32 %v660, %v644
    %v663 = vmul.f32 %v645, %v645
    %v664 = vmul.f32 %v646, %v646
    %v665 = vsub.f32 %v661, %v663
    %v666 = vsub.f32 %v662, %v664
    %v667 = vld [vmem:[#allocation12] sm:$0x3]
    %v668 = vadd.f32 %v665, 0.8
    %v669 = vadd.f32 %v666, 0.8
    %v670 = vrsqrt.pop %v668
    %v671 = vrsqrt.pop %v669
    %v674 = vcombine.low %v670, %v671
    %v676 = vunpack.c.l.s4 1966171168
    %v677 = vunpack.c.0.s8 %v676
    %v678 = vlaneseq
    %v679 = vshrl.u32 %v678, 7
    %v680 = vsub.s32 %v677, %v679
    %v681 = vrot.slane %v674, %v680
    %v683 = vunpack.c.l.s4 1966171168
    %v684 = vunpack.c.0.s8 %v683
    %v685 = vlaneseq
    %v686 = vshrl.u32 %v685, 7
    %v687 = vsub.s32 %v684, %v686
    %v688 = vrot.slane %v681, %v687
    %v690 = vmul.f32 %v667, %v688
    %v691 = vld [vmem:[#allocation13] sm:$0x3]
    %v693 = vlaneseq
    %v694 = vshrl.u32 %v693, 7
    %v695 = vsub.s32 0, %v694
    %v696 = vrot.slane %v690, %v695
    %v697 = vlaneseq
    %v698 = vshrl.u32 %v697, 7
    %v699 = vsub.s32 1, %v698
    %v700 = vrot.slane %v690, %v699
    %v703 = vmul.f32 %v645, %v696
    %v704 = vmul.f32 %v646, %v700
    %v707 = vcombine.low %v703, %v704
    %v709 = vunpack.c.l.s4 1966171168
    %v710 = vunpack.c.0.s8 %v709
    %v711 = vlaneseq
    %v712 = vshrl.u32 %v711, 7
    %v713 = vsub.s32 %v710, %v712
    %v714 = vrot.slane %v707, %v713
    %v716 = vunpack.c.l.s4 1966171168
    %v717 = vunpack.c.0.s8 %v716
    %v718 = vlaneseq
    %v719 = vshrl.u32 %v718, 7
    %v720 = vsub.s32 %v717, %v719
    %v721 = vrot.slane %v714, %v720
    %v723 = vsub.f32 %v691, %v721
    %v724 = vmul.f32 %v626, %v696
    %v725 = vmul.f32 %v628, %v700
    %v727 = vlaneseq
    %v728 = vshrl.u32 %v727, 7
    %v729 = vsub.s32 0, %v728
    %v730 = vrot.slane %v723, %v729
    %v731 = vlaneseq
    %v732 = vshrl.u32 %v731, 7
    %v733 = vsub.s32 1, %v732
    %v734 = vrot.slane %v723, %v733
    %v737 = vadd.f32 %v724, %v730
    %v738 = vadd.f32 %v725, %v734
    %vm739 = vcmp.gt.f32.partialorder %v737, 0.0
    %vm740 = vcmp.gt.f32.partialorder %v738, 0.0
    %v741 = vmul.f32 %v737, 0.2
    %v742 = vmul.f32 %v738, 0.2
    %v743 = vsel %vm739, %v737, %v741
    %v744 = vsel %vm740, %v738, %v742
    %v745 = vld [vmem:[#allocation15] sm:$0xff]
    %v746 = vld [vmem:[#allocation15 + $0x8] sm:$0xff]
    %v747 = vld [vmem:[#allocation15 + $0x10] sm:$0xff]
    %v748 = vld [vmem:[#allocation15 + $0x18] sm:$0xff]
    %v749 = vld [vmem:[#allocation15 + $0x20] sm:$0xff]
    %v750 = vld [vmem:[#allocation15 + $0x28] sm:$0xff]
    %v751 = vld [vmem:[#allocation15 + $0x30] sm:$0xff]
    %v752 = vld [vmem:[#allocation15 + $0x38] sm:$0xff]
    %v753 = vld [vmem:[#allocation15 + $0x40] sm:$0xff]
    %v754 = vld [vmem:[#allocation15 + $0x48] sm:$0xff]
    %v755 = vld [vmem:[#allocation15 + $0x50] sm:$0xff]
    %v756 = vld [vmem:[#allocation15 + $0x58] sm:$0xff]
    %v757 = vld [vmem:[#allocation15 + $0x60] sm:$0xff]
    %v758 = vld [vmem:[#allocation15 + $0x68] sm:$0xff]
    %v759 = vld [vmem:[#allocation15 + $0x70] sm:$0xff]
    %v760 = vld [vmem:[#allocation15 + $0x78] sm:$0xff]
    %v761 = vld [vmem:[#allocation15 + $0x80] sm:$0xff]
    %v762 = vld [vmem:[#allocation15 + $0x88] sm:$0xff]
    %v763 = vld [vmem:[#allocation15 + $0x90] sm:$0xff]
    %v764 = vld [vmem:[#allocation15 + $0x98] sm:$0xff]
    %v765 = vld [vmem:[#allocation15 + $0xa0] sm:$0xff]
    %v766 = vld [vmem:[#allocation15 + $0xa8] sm:$0xff]
    %v767 = vld [vmem:[#allocation15 + $0xb0] sm:$0xff]
    %v768 = vld [vmem:[#allocation15 + $0xb8] sm:$0xff]
    %v769 = vld [vmem:[#allocation15 + $0xc0] sm:$0xff]
    %v770 = vld [vmem:[#allocation15 + $0xc8] sm:$0xff]
    %v771 = vld [vmem:[#allocation15 + $0xd0] sm:$0xff]
    %v772 = vld [vmem:[#allocation15 + $0xd8] sm:$0xff]
    %v773 = vld [vmem:[#allocation15 + $0xe0] sm:$0xff]
    %v774 = vld [vmem:[#allocation15 + $0xe8] sm:$0xff]
    %v775 = vld [vmem:[#allocation15 + $0xf0] sm:$0xff]
    %v776 = vld [vmem:[#allocation15 + $0xf8] sm:$0xff]
    %v777 = vld [vmem:[#allocation15 + $0x100] sm:$0xff]
    %v778 = vld [vmem:[#allocation15 + $0x108] sm:$0xff]
    %v779 = vld [vmem:[#allocation15 + $0x110] sm:$0xff]
    %v780 = vld [vmem:[#allocation15 + $0x118] sm:$0xff]
    %v781 = vld [vmem:[#allocation15 + $0x120] sm:$0xff]
    %v782 = vld [vmem:[#allocation15 + $0x128] sm:$0xff]
    %v783 = vld [vmem:[#allocation15 + $0x130] sm:$0xff]
    %v784 = vld [vmem:[#allocation15 + $0x138] sm:$0xff]
    %v785 = vld [vmem:[#allocation15 + $0x140] sm:$0xff]
    %v786 = vld [vmem:[#allocation15 + $0x148] sm:$0xff]
    %v787 = vld [vmem:[#allocation15 + $0x150] sm:$0xff]
    %v788 = vld [vmem:[#allocation15 + $0x158] sm:$0xff]
    %v789 = vld [vmem:[#allocation15 + $0x160] sm:$0xff]
    %v790 = vld [vmem:[#allocation15 + $0x168] sm:$0xff]
    %v791 = vld [vmem:[#allocation15 + $0x170] sm:$0xff]
    %v792 = vld [vmem:[#allocation15 + $0x178] sm:$0xff]
    %v793 = vld [vmem:[#allocation15 + $0x180] sm:$0xff]
    %v794 = vld [vmem:[#allocation15 + $0x188] sm:$0xff]
    %v795 = vld [vmem:[#allocation15 + $0x190] sm:$0xff]
    %v796 = vld [vmem:[#allocation15 + $0x198] sm:$0xff]
    %v797 = vld [vmem:[#allocation15 + $0x1a0] sm:$0xff]
    %v798 = vld [vmem:[#allocation15 + $0x1a8] sm:$0xff]
    %v799 = vld [vmem:[#allocation15 + $0x1b0] sm:$0xff]
    %v800 = vld [vmem:[#allocation15 + $0x1b8] sm:$0xff]
    %v801 = vld [vmem:[#allocation15 + $0x1c0] sm:$0xff]
    %v802 = vld [vmem:[#allocation15 + $0x1c8] sm:$0xff]
    %v803 = vld [vmem:[#allocation15 + $0x1d0] sm:$0xff]
    %v804 = vld [vmem:[#allocation15 + $0x1d8] sm:$0xff]
    %v805 = vld [vmem:[#allocation15 + $0x1e0] sm:$0xff]
    %v806 = vld [vmem:[#allocation15 + $0x1e8] sm:$0xff]
    %v807 = vld [vmem:[#allocation15 + $0x1f0] sm:$0xff]
    %v808 = vld [vmem:[#allocation15 + $0x1f8] sm:$0xff]
    %v809 = vpack.c.bf16 %v743, %v743
    %v810 = vpack.c.bf16 %v744, %v744
    %v811 = vld [vmem:[%s10] sm:$0xf]
    %v813 = vlaneseq
    %v814 = vshrl.u32 %v813, 7
    %v815 = vsub.s32 0, %v814
    %v816 = vrot.slane %v811, %v815
    %v817 = vlaneseq
    %v818 = vshrl.u32 %v817, 7
    %v819 = vsub.s32 1, %v818
    %v820 = vrot.slane %v811, %v819
    %v821 = vlaneseq
    %v822 = vshrl.u32 %v821, 7
    %v823 = vsub.s32 2, %v822
    %v824 = vrot.slane %v811, %v823
    %v825 = vlaneseq
    %v826 = vshrl.u32 %v825, 7
    %v827 = vsub.s32 3, %v826
    %v828 = vrot.slane %v811, %v827
    %v897 = vunpack.c.l.b16 %v745
    %v898 = vunpack.c.h.b16 %v745
    %v899 = vunpack.c.l.b16 %v746
    %v900 = vunpack.c.h.b16 %v746
    %v901 = vunpack.c.l.b16 %v747
    %v902 = vunpack.c.h.b16 %v747
    %v903 = vunpack.c.l.b16 %v748
    %v904 = vunpack.c.h.b16 %v748
    %v905 = vunpack.c.l.b16 %v749
    %v906 = vunpack.c.h.b16 %v749
    %v907 = vunpack.c.l.b16 %v750
    %v908 = vunpack.c.h.b16 %v750
    %v909 = vunpack.c.l.b16 %v751
    %v910 = vunpack.c.h.b16 %v751
    %v911 = vunpack.c.l.b16 %v752
    %v912 = vunpack.c.h.b16 %v752
    %v913 = vunpack.c.l.b16 %v753
    %v914 = vunpack.c.h.b16 %v753
    %v915 = vunpack.c.l.b16 %v754
    %v916 = vunpack.c.h.b16 %v754
    %v917 = vunpack.c.l.b16 %v755
    %v918 = vunpack.c.h.b16 %v755
    %v919 = vunpack.c.l.b16 %v756
    %v920 = vunpack.c.h.b16 %v756
    %v921 = vunpack.c.l.b16 %v757
    %v922 = vunpack.c.h.b16 %v757
    %v923 = vunpack.c.l.b16 %v758
    %v924 = vunpack.c.h.b16 %v758
    %v925 = vunpack.c.l.b16 %v759
    %v926 = vunpack.c.h.b16 %v759
    %v927 = vunpack.c.l.b16 %v760
    %v928 = vunpack.c.h.b16 %v760
    %v929 = vunpack.c.l.b16 %v761
    %v930 = vunpack.c.h.b16 %v761
    %v931 = vunpack.c.l.b16 %v762
    %v932 = vunpack.c.h.b16 %v762
    %v933 = vunpack.c.l.b16 %v763
    %v934 = vunpack.c.h.b16 %v763
    %v935 = vunpack.c.l.b16 %v764
    %v936 = vunpack.c.h.b16 %v764
    %v937 = vunpack.c.l.b16 %v765
    %v938 = vunpack.c.h.b16 %v765
    %v939 = vunpack.c.l.b16 %v766
    %v940 = vunpack.c.h.b16 %v766
    %v941 = vunpack.c.l.b16 %v767
    %v942 = vunpack.c.h.b16 %v767
    %v943 = vunpack.c.l.b16 %v768
    %v944 = vunpack.c.h.b16 %v768
    %v945 = vunpack.c.l.b16 %v769
    %v946 = vunpack.c.h.b16 %v769
    %v947 = vunpack.c.l.b16 %v770
    %v948 = vunpack.c.h.b16 %v770
    %v949 = vunpack.c.l.b16 %v771
    %v950 = vunpack.c.h.b16 %v771
    %v951 = vunpack.c.l.b16 %v772
    %v952 = vunpack.c.h.b16 %v772
    %v953 = vunpack.c.l.b16 %v773
    %v954 = vunpack.c.h.b16 %v773
    %v955 = vunpack.c.l.b16 %v774
    %v956 = vunpack.c.h.b16 %v774
    %v957 = vunpack.c.l.b16 %v775
    %v958 = vunpack.c.h.b16 %v775
    %v959 = vunpack.c.l.b16 %v776
    %v960 = vunpack.c.h.b16 %v776
    %v961 = vunpack.c.l.b16 %v777
    %v962 = vunpack.c.h.b16 %v777
    %v963 = vunpack.c.l.b16 %v778
    %v964 = vunpack.c.h.b16 %v778
    %v965 = vunpack.c.l.b16 %v779
    %v966 = vunpack.c.h.b16 %v779
    %v967 = vunpack.c.l.b16 %v780
    %v968 = vunpack.c.h.b16 %v780
    %v969 = vunpack.c.l.b16 %v781
    %v970 = vunpack.c.h.b16 %v781
    %v971 = vunpack.c.l.b16 %v782
    %v972 = vunpack.c.h.b16 %v782
    %v973 = vunpack.c.l.b16 %v783
    %v974 = vunpack.c.h.b16 %v783
    %v975 = vunpack.c.l.b16 %v784
    %v976 = vunpack.c.h.b16 %v784
    %v977 = vunpack.c.l.b16 %v785
    %v978 = vunpack.c.h.b16 %v785
    %v979 = vunpack.c.l.b16 %v786
    %v980 = vunpack.c.h.b16 %v786
    %v981 = vunpack.c.l.b16 %v787
    %v982 = vunpack.c.h.b16 %v787
    %v983 = vunpack.c.l.b16 %v788
    %v984 = vunpack.c.h.b16 %v788
    %v985 = vunpack.c.l.b16 %v789
    %v986 = vunpack.c.h.b16 %v789
    %v987 = vunpack.c.l.b16 %v790
    %v988 = vunpack.c.h.b16 %v790
    %v989 = vunpack.c.l.b16 %v791
    %v990 = vunpack.c.h.b16 %v791
    %v991 = vunpack.c.l.b16 %v792
    %v992 = vunpack.c.h.b16 %v792
    %v993 = vunpack.c.l.b16 %v793
    %v994 = vunpack.c.h.b16 %v793
    %v995 = vunpack.c.l.b16 %v794
    %v996 = vunpack.c.h.b16 %v794
    %v997 = vunpack.c.l.b16 %v795
    %v998 = vunpack.c.h.b16 %v795
    %v999 = vunpack.c.l.b16 %v796
    %v1000 = vunpack.c.h.b16 %v796
    %v1001 = vunpack.c.l.b16 %v797
    %v1002 = vunpack.c.h.b16 %v797
    %v1003 = vunpack.c.l.b16 %v798
    %v1004 = vunpack.c.h.b16 %v798
    %v1005 = vunpack.c.l.b16 %v799
    %v1006 = vunpack.c.h.b16 %v799
    %v1007 = vunpack.c.l.b16 %v800
    %v1008 = vunpack.c.h.b16 %v800
    %v1009 = vunpack.c.l.b16 %v801
    %v1010 = vunpack.c.h.b16 %v801
    %v1011 = vunpack.c.l.b16 %v802
    %v1012 = vunpack.c.h.b16 %v802
    %v1013 = vunpack.c.l.b16 %v803
    %v1014 = vunpack.c.h.b16 %v803
    %v1015 = vunpack.c.l.b16 %v804
    %v1016 = vunpack.c.h.b16 %v804
    %v1017 = vunpack.c.l.b16 %v805
    %v1018 = vunpack.c.h.b16 %v805
    %v1019 = vunpack.c.l.b16 %v806
    %v1020 = vunpack.c.h.b16 %v806
    %v1021 = vunpack.c.l.b16 %v807
    %v1022 = vunpack.c.h.b16 %v807
    %v1023 = vunpack.c.l.b16 %v808
    %v1024 = vunpack.c.h.b16 %v808
    %v1025 = vpack.c.b16 %v901, %v897
    %v1026 = vpack.c.b16 %v902, %v898
    %v1027 = vpack.c.b16 %v903, %v899
    %v1028 = vpack.c.b16 %v904, %v900
    %v1029 = vpack.c.b16 %v909, %v905
    %v1030 = vpack.c.b16 %v910, %v906
    %v1031 = vpack.c.b16 %v911, %v907
    %v1032 = vpack.c.b16 %v912, %v908
    %v1033 = vpack.c.b16 %v917, %v913
    %v1034 = vpack.c.b16 %v918, %v914
    %v1035 = vpack.c.b16 %v919, %v915
    %v1036 = vpack.c.b16 %v920, %v916
    %v1037 = vpack.c.b16 %v925, %v921
    %v1038 = vpack.c.b16 %v926, %v922
    %v1039 = vpack.c.b16 %v927, %v923
    %v1040 = vpack.c.b16 %v928, %v924
    %v1041 = vpack.c.b16 %v933, %v929
    %v1042 = vpack.c.b16 %v934, %v930
    %v1043 = vpack.c.b16 %v935, %v931
    %v1044 = vpack.c.b16 %v936, %v932
    %v1045 = vpack.c.b16 %v941, %v937
    %v1046 = vpack.c.b16 %v942, %v938
    %v1047 = vpack.c.b16 %v943, %v939
    %v1048 = vpack.c.b16 %v944, %v940
    %v1049 = vpack.c.b16 %v949, %v945
    %v1050 = vpack.c.b16 %v950, %v946
    %v1051 = vpack.c.b16 %v951, %v947
    %v1052 = vpack.c.b16 %v952, %v948
    %v1053 = vpack.c.b16 %v957, %v953
    %v1054 = vpack.c.b16 %v958, %v954
    %v1055 = vpack.c.b16 %v959, %v955
    %v1056 = vpack.c.b16 %v960, %v956
    %v1057 = vpack.c.b16 %v965, %v961
    %v1058 = vpack.c.b16 %v966, %v962
    %v1059 = vpack.c.b16 %v967, %v963
    %v1060 = vpack.c.b16 %v968, %v964
    %v1061 = vpack.c.b16 %v973, %v969
    %v1062 = vpack.c.b16 %v974, %v970
    %v1063 = vpack.c.b16 %v975, %v971
    %v1064 = vpack.c.b16 %v976, %v972
    %v1065 = vpack.c.b16 %v981, %v977
    %v1066 = vpack.c.b16 %v982, %v978
    %v1067 = vpack.c.b16 %v983, %v979
    %v1068 = vpack.c.b16 %v984, %v980
    %v1069 = vpack.c.b16 %v989, %v985
    %v1070 = vpack.c.b16 %v990, %v986
    %v1071 = vpack.c.b16 %v991, %v987
    %v1072 = vpack.c.b16 %v992, %v988
    %v1073 = vpack.c.b16 %v997, %v993
    %v1074 = vpack.c.b16 %v998, %v994
    %v1075 = vpack.c.b16 %v999, %v995
    %v1076 = vpack.c.b16 %v1000, %v996
    %v1077 = vpack.c.b16 %v1005, %v1001
    %v1078 = vpack.c.b16 %v1006, %v1002
    %v1079 = vpack.c.b16 %v1007, %v1003
    %v1080 = vpack.c.b16 %v1008, %v1004
    %v1081 = vpack.c.b16 %v1013, %v1009
    %v1082 = vpack.c.b16 %v1014, %v1010
    %v1083 = vpack.c.b16 %v1015, %v1011
    %v1084 = vpack.c.b16 %v1016, %v1012
    %v1085 = vpack.c.b16 %v1021, %v1017
    %v1086 = vpack.c.b16 %v1022, %v1018
    %v1087 = vpack.c.b16 %v1023, %v1019
    %v1088 = vpack.c.b16 %v1024, %v1020
    %1153 = vmatprep.subr.bf16.mxu0 %v1054
    %1154 = vmatpush1.bf16.msra.mxu0 %v1053
    %1155 = vmatprep.subr.bf16.mxu0 %v1050
    %1156 = vmatpush1.bf16.msra.mxu0 %v1049
    %1157 = vmatprep.subr.bf16.mxu0 %v1046
    %1158 = vmatpush1.bf16.msra.mxu0 %v1045
    %1159 = vmatprep.subr.bf16.mxu0 %v1042
    %1160 = vmatpush1.bf16.msra.mxu0 %v1041
    %1161 = vmatprep.subr.bf16.mxu0 %v1038
    %1162 = vmatpush1.bf16.msra.mxu0 %v1037
    %1163 = vmatprep.subr.bf16.mxu0 %v1034
    %1164 = vmatpush1.bf16.msra.mxu0 %v1033
    %1165 = vmatprep.subr.bf16.mxu0 %v1030
    %1166 = vmatpush1.bf16.msra.mxu0 %v1029
    %1167 = vmatprep.subr.bf16.mxu0 %v1026
    %1168 = vmatpush1.bf16.msra.mxu0 %v1025
    %1169 = vmatprep.subr.bf16.mxu0 %v1086
    %1170 = vmatpush2.bf16.msra.mxu0 %v1085
    %1171 = vmatprep.subr.bf16.mxu0 %v1082
    %1172 = vmatpush2.bf16.msra.mxu0 %v1081
    %1173 = vmatprep.subr.bf16.mxu0 %v1078
    %1174 = vmatpush2.bf16.msra.mxu0 %v1077
    %1175 = vmatprep.subr.bf16.mxu0 %v1074
    %1176 = vmatpush2.bf16.msra.mxu0 %v1073
    %1177 = vmatprep.subr.bf16.mxu0 %v1070
    %1178 = vmatpush2.bf16.msra.mxu0 %v1069
    %1179 = vmatprep.subr.bf16.mxu0 %v1066
    %1180 = vmatpush2.bf16.msra.mxu0 %v1065
    %1181 = vmatprep.subr.bf16.mxu0 %v1062
    %1182 = vmatpush2.bf16.msra.mxu0 %v1061
    %1183 = vmatprep.subr.bf16.mxu0 %v1058
    %1184 = vmatpush2.bf16.msra.mxu0 %v1057
    %1185 = vmatprep.mubr.bf16.mxu0 %v810
    %1186 = vmatmul.mubr.bf16.gmra.mxu0 %v809
    %v1187 = vpop.f32.mrf.mxu0
    %v1188 = vadd.f32 %v816, %v1187
    %v1189 = vpop.f32.mrf.mxu0
    %v1190 = vadd.f32 %v820, %v1189
    %v1191 = vpop.f32.mrf.mxu0
    %v1192 = vpop.f32.mrf.mxu0
    %1193 = vdwg.mxu0
    %1194 = vmatprep.subr.bf16.mxu0 %v1056
    %1195 = vmatpush1.bf16.msra.mxu0 %v1055
    %1196 = vmatprep.subr.bf16.mxu0 %v1052
    %1197 = vmatpush1.bf16.msra.mxu0 %v1051
    %1198 = vmatprep.subr.bf16.mxu0 %v1048
    %1199 = vmatpush1.bf16.msra.mxu0 %v1047
    %1200 = vmatprep.subr.bf16.mxu0 %v1044
    %1201 = vmatpush1.bf16.msra.mxu0 %v1043
    %1202 = vmatprep.subr.bf16.mxu0 %v1040
    %1203 = vmatpush1.bf16.msra.mxu0 %v1039
    %1204 = vmatprep.subr.bf16.mxu0 %v1036
    %1205 = vmatpush1.bf16.msra.mxu0 %v1035
    %1206 = vmatprep.subr.bf16.mxu0 %v1032
    %1207 = vmatpush1.bf16.msra.mxu0 %v1031
    %1208 = vmatprep.subr.bf16.mxu0 %v1028
    %1209 = vmatpush1.bf16.msra.mxu0 %v1027
    %1210 = vmatprep.subr.bf16.mxu0 %v1088
    %1211 = vmatpush2.bf16.msra.mxu0 %v1087
    %1212 = vmatprep.subr.bf16.mxu0 %v1084
    %1213 = vmatpush2.bf16.msra.mxu0 %v1083
    %1214 = vmatprep.subr.bf16.mxu0 %v1080
    %1215 = vmatpush2.bf16.msra.mxu0 %v1079
    %1216 = vmatprep.subr.bf16.mxu0 %v1076
    %1217 = vmatpush2.bf16.msra.mxu0 %v1075
    %1218 = vmatprep.subr.bf16.mxu0 %v1072
    %1219 = vmatpush2.bf16.msra.mxu0 %v1071
    %1220 = vmatprep.subr.bf16.mxu0 %v1068
    %1221 = vmatpush2.bf16.msra.mxu0 %v1067
    %1222 = vmatprep.subr.bf16.mxu0 %v1064
    %1223 = vmatpush2.bf16.msra.mxu0 %v1063
    %1224 = vmatprep.subr.bf16.mxu0 %v1060
    %1225 = vmatpush2.bf16.msra.mxu0 %v1059
    %1226 = vmatprep.mubr.bf16.mxu0 %v810
    %1227 = vmatmul.mubr.bf16.gmra.mxu0 %v809
    %v1228 = vpop.f32.mrf.mxu0
    %v1229 = vadd.f32 %v824, %v1228
    %v1230 = vpop.f32.mrf.mxu0
    %v1231 = vadd.f32 %v828, %v1230
    %v1232 = vpop.f32.mrf.mxu0
    %v1233 = vpop.f32.mrf.mxu0
    %1234 = vdwg.mxu0
    %v1235 = vrot.slane %v1188, 4
    %v1236 = vadd.f32 %v1188, %v1235
    %v1237 = vrot.slane %v1236, 2
    %v1238 = vadd.f32 %v1236, %v1237
    %v1239 = vrot.slane %v1238, 1
    %v1240 = vadd.f32 %v1238, %v1239
    %v1241 = vrot.slane %v1190, 4
    %v1242 = vadd.f32 %v1190, %v1241
    %v1243 = vrot.slane %v1242, 2
    %v1244 = vadd.f32 %v1242, %v1243
    %v1245 = vrot.slane %v1244, 1
    %v1246 = vadd.f32 %v1244, %v1245
    %v1247 = vrot.slane %v1229, 4
    %v1248 = vadd.f32 %v1229, %v1247
    %v1249 = vrot.slane %v1248, 2
    %v1250 = vadd.f32 %v1248, %v1249
    %v1251 = vrot.slane %v1250, 1
    %v1252 = vadd.f32 %v1250, %v1251
    %v1253 = vrot.slane %v1231, 4
    %v1254 = vadd.f32 %v1231, %v1253
    %v1255 = vrot.slane %v1254, 2
    %v1256 = vadd.f32 %v1254, %v1255
    %v1257 = vrot.slane %v1256, 1
    %v1258 = vadd.f32 %v1256, %v1257
    %v1259 = vmul.f32 %v1240, %v644
    %v1260 = vmul.f32 %v1246, %v644
    %v1261 = vmul.f32 %v1252, %v644
    %v1262 = vmul.f32 %v1258, %v644
    %v1263 = vmul.f32 %v1188, %v1188
    %v1264 = vmul.f32 %v1190, %v1190
    %v1265 = vmul.f32 %v1229, %v1229
    %v1266 = vmul.f32 %v1231, %v1231
    %v1267 = vrot.slane %v1263, 4
    %v1268 = vadd.f32 %v1263, %v1267
    %v1269 = vrot.slane %v1268, 2
    %v1270 = vadd.f32 %v1268, %v1269
    %v1271 = vrot.slane %v1270, 1
    %v1272 = vadd.f32 %v1270, %v1271
    %v1273 = vrot.slane %v1264, 4
    %v1274 = vadd.f32 %v1264, %v1273
    %v1275 = vrot.slane %v1274, 2
    %v1276 = vadd.f32 %v1274, %v1275
    %v1277 = vrot.slane %v1276, 1
    %v1278 = vadd.f32 %v1276, %v1277
    %v1279 = vrot.slane %v1265, 4
    %v1280 = vadd.f32 %v1265, %v1279
    %v1281 = vrot.slane %v1280, 2
    %v1282 = vadd.f32 %v1280, %v1281
    %v1283 = vrot.slane %v1282, 1
    %v1284 = vadd.f32 %v1282, %v1283
    %v1285 = vrot.slane %v1266, 4
    %v1286 = vadd.f32 %v1266, %v1285
    %v1287 = vrot.slane %v1286, 2
    %v1288 = vadd.f32 %v1286, %v1287
    %v1289 = vrot.slane %v1288, 1
    %v1290 = vadd.f32 %v1288, %v1289
    %v1291 = vmul.f32 %v1272, %v644
    %v1292 = vmul.f32 %v1278, %v644
    %v1293 = vmul.f32 %v1284, %v644
    %v1294 = vmul.f32 %v1290, %v644
    %v1295 = vmul.f32 %v1259, %v1259
    %v1296 = vmul.f32 %v1260, %v1260
    %v1297 = vmul.f32 %v1261, %v1261
    %v1298 = vmul.f32 %v1262, %v1262
    %v1299 = vsub.f32 %v1291, %v1295
    %v1300 = vsub.f32 %v1292, %v1296
    %v1301 = vsub.f32 %v1293, %v1297
    %v1302 = vsub.f32 %v1294, %v1298
    %v1303 = vld [vmem:[#allocation16] sm:$0xf]
    %v1304 = vadd.f32 %v1299, 0.8
    %v1305 = vadd.f32 %v1300, 0.8
    %v1306 = vadd.f32 %v1301, 0.8
    %v1307 = vadd.f32 %v1302, 0.8
    %v1308 = vrsqrt.pop %v1304
    %v1309 = vrsqrt.pop %v1305
    %v1310 = vrsqrt.pop %v1306
    %v1311 = vrsqrt.pop %v1307
    %v1316 = vcombine.low %v1308, %v1309
    %v1317 = vcombine.low %v1310, %v1311
    %v1319 = vunpack.c.l.s4 1966171168
    %v1320 = vunpack.c.0.s8 %v1319
    %v1321 = vlaneseq
    %v1322 = vshrl.u32 %v1321, 7
    %v1323 = vsub.s32 %v1320, %v1322
    %v1324 = vrot.slane %v1316, %v1323
    %v1326 = vunpack.c.l.s4 1966171168
    %v1327 = vunpack.c.0.s8 %v1326
    %v1328 = vlaneseq
    %v1329 = vshrl.u32 %v1328, 7
    %v1330 = vsub.s32 %v1327, %v1329
    %v1331 = vrot.slane %v1317, %v1330
    %v1332 = vcombine.low %v1324, %v1331
    %v1334 = vunpack.c.l.s4 1966171168
    %v1335 = vunpack.c.0.s8 %v1334
    %v1336 = vlaneseq
    %v1337 = vshrl.u32 %v1336, 7
    %v1338 = vsub.s32 %v1335, %v1337
    %v1339 = vrot.slane %v1332, %v1338
    %v1341 = vmul.f32 %v1303, %v1339
    %v1342 = vld [vmem:[#allocation18] sm:$0xf]
    %v1344 = vlaneseq
    %v1345 = vshrl.u32 %v1344, 7
    %v1346 = vsub.s32 0, %v1345
    %v1347 = vrot.slane %v1341, %v1346
    %v1348 = vlaneseq
    %v1349 = vshrl.u32 %v1348, 7
    %v1350 = vsub.s32 1, %v1349
    %v1351 = vrot.slane %v1341, %v1350
    %v1352 = vlaneseq
    %v1353 = vshrl.u32 %v1352, 7
    %v1354 = vsub.s32 2, %v1353
    %v1355 = vrot.slane %v1341, %v1354
    %v1356 = vlaneseq
    %v1357 = vshrl.u32 %v1356, 7
    %v1358 = vsub.s32 3, %v1357
    %v1359 = vrot.slane %v1341, %v1358
    %v1364 = vmul.f32 %v1259, %v1347
    %v1365 = vmul.f32 %v1260, %v1351
    %v1366 = vmul.f32 %v1261, %v1355
    %v1367 = vmul.f32 %v1262, %v1359
    %v1372 = vcombine.low %v1364, %v1365
    %v1373 = vcombine.low %v1366, %v1367
    %v1375 = vunpack.c.l.s4 1966171168
    %v1376 = vunpack.c.0.s8 %v1375
    %v1377 = vlaneseq
    %v1378 = vshrl.u32 %v1377, 7
    %v1379 = vsub.s32 %v1376, %v1378
    %v1380 = vrot.slane %v1372, %v1379
    %v1382 = vunpack.c.l.s4 1966171168
    %v1383 = vunpack.c.0.s8 %v1382
    %v1384 = vlaneseq
    %v1385 = vshrl.u32 %v1384, 7
    %v1386 = vsub.s32 %v1383, %v1385
    %v1387 = vrot.slane %v1373, %v1386
    %v1388 = vcombine.low %v1380, %v1387
    %v1390 = vunpack.c.l.s4 1966171168
    %v1391 = vunpack.c.0.s8 %v1390
    %v1392 = vlaneseq
    %v1393 = vshrl.u32 %v1392, 7
    %v1394 = vsub.s32 %v1391, %v1393
    %v1395 = vrot.slane %v1388, %v1394
    %v1397 = vsub.f32 %v1342, %v1395
    %v1398 = vmul.f32 %v1188, %v1347
    %v1399 = vmul.f32 %v1190, %v1351
    %v1400 = vmul.f32 %v1229, %v1355
    %v1401 = vmul.f32 %v1231, %v1359
    %v1403 = vlaneseq
    %v1404 = vshrl.u32 %v1403, 7
    %v1405 = vsub.s32 0, %v1404
    %v1406 = vrot.slane %v1397, %v1405
    %v1407 = vlaneseq
    %v1408 = vshrl.u32 %v1407, 7
    %v1409 = vsub.s32 1, %v1408
    %v1410 = vrot.slane %v1397, %v1409
    %v1411 = vlaneseq
    %v1412 = vshrl.u32 %v1411, 7
    %v1413 = vsub.s32 2, %v1412
    %v1414 = vrot.slane %v1397, %v1413
    %v1415 = vlaneseq
    %v1416 = vshrl.u32 %v1415, 7
    %v1417 = vsub.s32 3, %v1416
    %v1418 = vrot.slane %v1397, %v1417
    %v1423 = vadd.f32 %v1398, %v1406
    %v1424 = vadd.f32 %v1399, %v1410
    %v1425 = vadd.f32 %v1400, %v1414
    %v1426 = vadd.f32 %v1401, %v1418
    %vm1427 = vcmp.gt.f32.partialorder %v1423, 0.0
    %vm1428 = vcmp.gt.f32.partialorder %v1424, 0.0
    %vm1429 = vcmp.gt.f32.partialorder %v1425, 0.0
    %vm1430 = vcmp.gt.f32.partialorder %v1426, 0.0
    %v1431 = vmul.f32 %v1423, 0.2
    %v1432 = vmul.f32 %v1424, 0.2
    %v1433 = vmul.f32 %v1425, 0.2
    %v1434 = vmul.f32 %v1426, 0.2
    %v1435 = vsel %vm1427, %v1423, %v1431
    %v1436 = vsel %vm1428, %v1424, %v1432
    %v1437 = vsel %vm1429, %v1425, %v1433
    %v1438 = vsel %vm1430, %v1426, %v1434
    %s1439 = smul.u32 4, 64
    %s1440 = smul.u32 %s1439, 8
    %s1441 = sshll.u32 %s1440, 4
    %1442 = dma.done [#allocation4], %s1441
    %v1443 = vld [vmem:[#allocation2] sm:$0xff]
    %v1444 = vld [vmem:[#allocation2 + $0x8] sm:$0xff]
    %v1445 = vld [vmem:[#allocation2 + $0x10] sm:$0xff]
    %v1446 = vld [vmem:[#allocation2 + $0x18] sm:$0xff]
    %v1447 = vld [vmem:[#allocation2 + $0x20] sm:$0xff]
    %v1448 = vld [vmem:[#allocation2 + $0x28] sm:$0xff]
    %v1449 = vld [vmem:[#allocation2 + $0x30] sm:$0xff]
    %v1450 = vld [vmem:[#allocation2 + $0x38] sm:$0xff]
    %v1451 = vld [vmem:[#allocation2 + $0x40] sm:$0xff]
    %v1452 = vld [vmem:[#allocation2 + $0x48] sm:$0xff]
    %v1453 = vld [vmem:[#allocation2 + $0x50] sm:$0xff]
    %v1454 = vld [vmem:[#allocation2 + $0x58] sm:$0xff]
    %v1455 = vld [vmem:[#allocation2 + $0x60] sm:$0xff]
    %v1456 = vld [vmem:[#allocation2 + $0x68] sm:$0xff]
    %v1457 = vld [vmem:[#allocation2 + $0x70] sm:$0xff]
    %v1458 = vld [vmem:[#allocation2 + $0x78] sm:$0xff]
    %v1459 = vld [vmem:[#allocation2 + $0x80] sm:$0xff]
    %v1460 = vld [vmem:[#allocation2 + $0x88] sm:$0xff]
    %v1461 = vld [vmem:[#allocation2 + $0x90] sm:$0xff]
    %v1462 = vld [vmem:[#allocation2 + $0x98] sm:$0xff]
    %v1463 = vld [vmem:[#allocation2 + $0xa0] sm:$0xff]
    %v1464 = vld [vmem:[#allocation2 + $0xa8] sm:$0xff]
    %v1465 = vld [vmem:[#allocation2 + $0xb0] sm:$0xff]
    %v1466 = vld [vmem:[#allocation2 + $0xb8] sm:$0xff]
    %v1467 = vld [vmem:[#allocation2 + $0xc0] sm:$0xff]
    %v1468 = vld [vmem:[#allocation2 + $0xc8] sm:$0xff]
    %v1469 = vld [vmem:[#allocation2 + $0xd0] sm:$0xff]
    %v1470 = vld [vmem:[#allocation2 + $0xd8] sm:$0xff]
    %v1471 = vld [vmem:[#allocation2 + $0xe0] sm:$0xff]
    %v1472 = vld [vmem:[#allocation2 + $0xe8] sm:$0xff]
    %v1473 = vld [vmem:[#allocation2 + $0xf0] sm:$0xff]
    %v1474 = vld [vmem:[#allocation2 + $0xf8] sm:$0xff]
    %v1475 = vld [vmem:[#allocation2 + $0x100] sm:$0xff]
    %v1476 = vld [vmem:[#allocation2 + $0x108] sm:$0xff]
    %v1477 = vld [vmem:[#allocation2 + $0x110] sm:$0xff]
    %v1478 = vld [vmem:[#allocation2 + $0x118] sm:$0xff]
    %v1479 = vld [vmem:[#allocation2 + $0x120] sm:$0xff]
    %v1480 = vld [vmem:[#allocation2 + $0x128] sm:$0xff]
    %v1481 = vld [vmem:[#allocation2 + $0x130] sm:$0xff]
    %v1482 = vld [vmem:[#allocation2 + $0x138] sm:$0xff]
    %v1483 = vld [vmem:[#allocation2 + $0x140] sm:$0xff]
    %v1484 = vld [vmem:[#allocation2 + $0x148] sm:$0xff]
    %v1485 = vld [vmem:[#allocation2 + $0x150] sm:$0xff]
    %v1486 = vld [vmem:[#allocation2 + $0x158] sm:$0xff]
    %v1487 = vld [vmem:[#allocation2 + $0x160] sm:$0xff]
    %v1488 = vld [vmem:[#allocation2 + $0x168] sm:$0xff]
    %v1489 = vld [vmem:[#allocation2 + $0x170] sm:$0xff]
    %v1490 = vld [vmem:[#allocation2 + $0x178] sm:$0xff]
    %v1491 = vld [vmem:[#allocation2 + $0x180] sm:$0xff]
    %v1492 = vld [vmem:[#allocation2 + $0x188] sm:$0xff]
    %v1493 = vld [vmem:[#allocation2 + $0x190] sm:$0xff]
    %v1494 = vld [vmem:[#allocation2 + $0x198] sm:$0xff]
    %v1495 = vld [vmem:[#allocation2 + $0x1a0] sm:$0xff]
    %v1496 = vld [vmem:[#allocation2 + $0x1a8] sm:$0xff]
    %v1497 = vld [vmem:[#allocation2 + $0x1b0] sm:$0xff]
    %v1498 = vld [vmem:[#allocation2 + $0x1b8] sm:$0xff]
    %v1499 = vld [vmem:[#allocation2 + $0x1c0] sm:$0xff]
    %v1500 = vld [vmem:[#allocation2 + $0x1c8] sm:$0xff]
    %v1501 = vld [vmem:[#allocation2 + $0x1d0] sm:$0xff]
    %v1502 = vld [vmem:[#allocation2 + $0x1d8] sm:$0xff]
    %v1503 = vld [vmem:[#allocation2 + $0x1e0] sm:$0xff]
    %v1504 = vld [vmem:[#allocation2 + $0x1e8] sm:$0xff]
    %v1505 = vld [vmem:[#allocation2 + $0x1f0] sm:$0xff]
    %v1506 = vld [vmem:[#allocation2 + $0x1f8] sm:$0xff]
    %v1507 = vld [vmem:[#allocation2 + $0x200] sm:$0xff]
    %v1508 = vld [vmem:[#allocation2 + $0x208] sm:$0xff]
    %v1509 = vld [vmem:[#allocation2 + $0x210] sm:$0xff]
    %v1510 = vld [vmem:[#allocation2 + $0x218] sm:$0xff]
    %v1511 = vld [vmem:[#allocation2 + $0x220] sm:$0xff]
    %v1512 = vld [vmem:[#allocation2 + $0x228] sm:$0xff]
    %v1513 = vld [vmem:[#allocation2 + $0x230] sm:$0xff]
    %v1514 = vld [vmem:[#allocation2 + $0x238] sm:$0xff]
    %v1515 = vld [vmem:[#allocation2 + $0x240] sm:$0xff]
    %v1516 = vld [vmem:[#allocation2 + $0x248] sm:$0xff]
    %v1517 = vld [vmem:[#allocation2 + $0x250] sm:$0xff]
    %v1518 = vld [vmem:[#allocation2 + $0x258] sm:$0xff]
    %v1519 = vld [vmem:[#allocation2 + $0x260] sm:$0xff]
    %v1520 = vld [vmem:[#allocation2 + $0x268] sm:$0xff]
    %v1521 = vld [vmem:[#allocation2 + $0x270] sm:$0xff]
    %v1522 = vld [vmem:[#allocation2 + $0x278] sm:$0xff]
    %v1523 = vld [vmem:[#allocation2 + $0x280] sm:$0xff]
    %v1524 = vld [vmem:[#allocation2 + $0x288] sm:$0xff]
    %v1525 = vld [vmem:[#allocation2 + $0x290] sm:$0xff]
    %v1526 = vld [vmem:[#allocation2 + $0x298] sm:$0xff]
    %v1527 = vld [vmem:[#allocation2 + $0x2a0] sm:$0xff]
    %v1528 = vld [vmem:[#allocation2 + $0x2a8] sm:$0xff]
    %v1529 = vld [vmem:[#allocation2 + $0x2b0] sm:$0xff]
    %v1530 = vld [vmem:[#allocation2 + $0x2b8] sm:$0xff]
    %v1531 = vld [vmem:[#allocation2 + $0x2c0] sm:$0xff]
    %v1532 = vld [vmem:[#allocation2 + $0x2c8] sm:$0xff]
    %v1533 = vld [vmem:[#allocation2 + $0x2d0] sm:$0xff]
    %v1534 = vld [vmem:[#allocation2 + $0x2d8] sm:$0xff]
    %v1535 = vld [vmem:[#allocation2 + $0x2e0] sm:$0xff]
    %v1536 = vld [vmem:[#allocation2 + $0x2e8] sm:$0xff]
    %v1537 = vld [vmem:[#allocation2 + $0x2f0] sm:$0xff]
    %v1538 = vld [vmem:[#allocation2 + $0x2f8] sm:$0xff]
    %v1539 = vld [vmem:[#allocation2 + $0x300] sm:$0xff]
    %v1540 = vld [vmem:[#allocation2 + $0x308] sm:$0xff]
    %v1541 = vld [vmem:[#allocation2 + $0x310] sm:$0xff]
    %v1542 = vld [vmem:[#allocation2 + $0x318] sm:$0xff]
    %v1543 = vld [vmem:[#allocation2 + $0x320] sm:$0xff]
    %v1544 = vld [vmem:[#allocation2 + $0x328] sm:$0xff]
    %v1545 = vld [vmem:[#allocation2 + $0x330] sm:$0xff]
    %v1546 = vld [vmem:[#allocation2 + $0x338] sm:$0xff]
    %v1547 = vld [vmem:[#allocation2 + $0x340] sm:$0xff]
    %v1548 = vld [vmem:[#allocation2 + $0x348] sm:$0xff]
    %v1549 = vld [vmem:[#allocation2 + $0x350] sm:$0xff]
    %v1550 = vld [vmem:[#allocation2 + $0x358] sm:$0xff]
    %v1551 = vld [vmem:[#allocation2 + $0x360] sm:$0xff]
    %v1552 = vld [vmem:[#allocation2 + $0x368] sm:$0xff]
    %v1553 = vld [vmem:[#allocation2 + $0x370] sm:$0xff]
    %v1554 = vld [vmem:[#allocation2 + $0x378] sm:$0xff]
    %v1555 = vld [vmem:[#allocation2 + $0x380] sm:$0xff]
    %v1556 = vld [vmem:[#allocation2 + $0x388] sm:$0xff]
    %v1557 = vld [vmem:[#allocation2 + $0x390] sm:$0xff]
    %v1558 = vld [vmem:[#allocation2 + $0x398] sm:$0xff]
    %v1559 = vld [vmem:[#allocation2 + $0x3a0] sm:$0xff]
    %v1560 = vld [vmem:[#allocation2 + $0x3a8] sm:$0xff]
    %v1561 = vld [vmem:[#allocation2 + $0x3b0] sm:$0xff]
    %v1562 = vld [vmem:[#allocation2 + $0x3b8] sm:$0xff]
    %v1563 = vld [vmem:[#allocation2 + $0x3c0] sm:$0xff]
    %v1564 = vld [vmem:[#allocation2 + $0x3c8] sm:$0xff]
    %v1565 = vld [vmem:[#allocation2 + $0x3d0] sm:$0xff]
    %v1566 = vld [vmem:[#allocation2 + $0x3d8] sm:$0xff]
    %v1567 = vld [vmem:[#allocation2 + $0x3e0] sm:$0xff]
    %v1568 = vld [vmem:[#allocation2 + $0x3e8] sm:$0xff]
    %v1569 = vld [vmem:[#allocation2 + $0x3f0] sm:$0xff]
    %v1570 = vld [vmem:[#allocation2 + $0x3f8] sm:$0xff]
    %v1571 = vld [vmem:[#allocation2 + $0x400] sm:$0xff]
    %v1572 = vld [vmem:[#allocation2 + $0x408] sm:$0xff]
    %v1573 = vld [vmem:[#allocation2 + $0x410] sm:$0xff]
    %v1574 = vld [vmem:[#allocation2 + $0x418] sm:$0xff]
    %v1575 = vld [vmem:[#allocation2 + $0x420] sm:$0xff]
    %v1576 = vld [vmem:[#allocation2 + $0x428] sm:$0xff]
    %v1577 = vld [vmem:[#allocation2 + $0x430] sm:$0xff]
    %v1578 = vld [vmem:[#allocation2 + $0x438] sm:$0xff]
    %v1579 = vld [vmem:[#allocation2 + $0x440] sm:$0xff]
    %v1580 = vld [vmem:[#allocation2 + $0x448] sm:$0xff]
    %v1581 = vld [vmem:[#allocation2 + $0x450] sm:$0xff]
    %v1582 = vld [vmem:[#allocation2 + $0x458] sm:$0xff]
    %v1583 = vld [vmem:[#allocation2 + $0x460] sm:$0xff]
    %v1584 = vld [vmem:[#allocation2 + $0x468] sm:$0xff]
    %v1585 = vld [vmem:[#allocation2 + $0x470] sm:$0xff]
    %v1586 = vld [vmem:[#allocation2 + $0x478] sm:$0xff]
    %v1587 = vld [vmem:[#allocation2 + $0x480] sm:$0xff]
    %v1588 = vld [vmem:[#allocation2 + $0x488] sm:$0xff]
    %v1589 = vld [vmem:[#allocation2 + $0x490] sm:$0xff]
    %v1590 = vld [vmem:[#allocation2 + $0x498] sm:$0xff]
    %v1591 = vld [vmem:[#allocation2 + $0x4a0] sm:$0xff]
    %v1592 = vld [vmem:[#allocation2 + $0x4a8] sm:$0xff]
    %v1593 = vld [vmem:[#allocation2 + $0x4b0] sm:$0xff]
    %v1594 = vld [vmem:[#allocation2 + $0x4b8] sm:$0xff]
    %v1595 = vld [vmem:[#allocation2 + $0x4c0] sm:$0xff]
    %v1596 = vld [vmem:[#allocation2 + $0x4c8] sm:$0xff]
    %v1597 = vld [vmem:[#allocation2 + $0x4d0] sm:$0xff]
    %v1598 = vld [vmem:[#allocation2 + $0x4d8] sm:$0xff]
    %v1599 = vld [vmem:[#allocation2 + $0x4e0] sm:$0xff]
    %v1600 = vld [vmem:[#allocation2 + $0x4e8] sm:$0xff]
    %v1601 = vld [vmem:[#allocation2 + $0x4f0] sm:$0xff]
    %v1602 = vld [vmem:[#allocation2 + $0x4f8] sm:$0xff]
    %v1603 = vld [vmem:[#allocation2 + $0x500] sm:$0xff]
    %v1604 = vld [vmem:[#allocation2 + $0x508] sm:$0xff]
    %v1605 = vld [vmem:[#allocation2 + $0x510] sm:$0xff]
    %v1606 = vld [vmem:[#allocation2 + $0x518] sm:$0xff]
    %v1607 = vld [vmem:[#allocation2 + $0x520] sm:$0xff]
    %v1608 = vld [vmem:[#allocation2 + $0x528] sm:$0xff]
    %v1609 = vld [vmem:[#allocation2 + $0x530] sm:$0xff]
    %v1610 = vld [vmem:[#allocation2 + $0x538] sm:$0xff]
    %v1611 = vld [vmem:[#allocation2 + $0x540] sm:$0xff]
    %v1612 = vld [vmem:[#allocation2 + $0x548] sm:$0xff]
    %v1613 = vld [vmem:[#allocation2 + $0x550] sm:$0xff]
    %v1614 = vld [vmem:[#allocation2 + $0x558] sm:$0xff]
    %v1615 = vld [vmem:[#allocation2 + $0x560] sm:$0xff]
    %v1616 = vld [vmem:[#allocation2 + $0x568] sm:$0xff]
    %v1617 = vld [vmem:[#allocation2 + $0x570] sm:$0xff]
    %v1618 = vld [vmem:[#allocation2 + $0x578] sm:$0xff]
    %v1619 = vld [vmem:[#allocation2 + $0x580] sm:$0xff]
    %v1620 = vld [vmem:[#allocation2 + $0x588] sm:$0xff]
    %v1621 = vld [vmem:[#allocation2 + $0x590] sm:$0xff]
    %v1622 = vld [vmem:[#allocation2 + $0x598] sm:$0xff]
    %v1623 = vld [vmem:[#allocation2 + $0x5a0] sm:$0xff]
    %v1624 = vld [vmem:[#allocation2 + $0x5a8] sm:$0xff]
    %v1625 = vld [vmem:[#allocation2 + $0x5b0] sm:$0xff]
    %v1626 = vld [vmem:[#allocation2 + $0x5b8] sm:$0xff]
    %v1627 = vld [vmem:[#allocation2 + $0x5c0] sm:$0xff]
    %v1628 = vld [vmem:[#allocation2 + $0x5c8] sm:$0xff]
    %v1629 = vld [vmem:[#allocation2 + $0x5d0] sm:$0xff]
    %v1630 = vld [vmem:[#allocation2 + $0x5d8] sm:$0xff]
    %v1631 = vld [vmem:[#allocation2 + $0x5e0] sm:$0xff]
    %v1632 = vld [vmem:[#allocation2 + $0x5e8] sm:$0xff]
    %v1633 = vld [vmem:[#allocation2 + $0x5f0] sm:$0xff]
    %v1634 = vld [vmem:[#allocation2 + $0x5f8] sm:$0xff]
    %v1635 = vld [vmem:[#allocation2 + $0x600] sm:$0xff]
    %v1636 = vld [vmem:[#allocation2 + $0x608] sm:$0xff]
    %v1637 = vld [vmem:[#allocation2 + $0x610] sm:$0xff]
    %v1638 = vld [vmem:[#allocation2 + $0x618] sm:$0xff]
    %v1639 = vld [vmem:[#allocation2 + $0x620] sm:$0xff]
    %v1640 = vld [vmem:[#allocation2 + $0x628] sm:$0xff]
    %v1641 = vld [vmem:[#allocation2 + $0x630] sm:$0xff]
    %v1642 = vld [vmem:[#allocation2 + $0x638] sm:$0xff]
    %v1643 = vld [vmem:[#allocation2 + $0x640] sm:$0xff]
    %v1644 = vld [vmem:[#allocation2 + $0x648] sm:$0xff]
    %v1645 = vld [vmem:[#allocation2 + $0x650] sm:$0xff]
    %v1646 = vld [vmem:[#allocation2 + $0x658] sm:$0xff]
    %v1647 = vld [vmem:[#allocation2 + $0x660] sm:$0xff]
    %v1648 = vld [vmem:[#allocation2 + $0x668] sm:$0xff]
    %v1649 = vld [vmem:[#allocation2 + $0x670] sm:$0xff]
    %v1650 = vld [vmem:[#allocation2 + $0x678] sm:$0xff]
    %v1651 = vld [vmem:[#allocation2 + $0x680] sm:$0xff]
    %v1652 = vld [vmem:[#allocation2 + $0x688] sm:$0xff]
    %v1653 = vld [vmem:[#allocation2 + $0x690] sm:$0xff]
    %v1654 = vld [vmem:[#allocation2 + $0x698] sm:$0xff]
    %v1655 = vld [vmem:[#allocation2 + $0x6a0] sm:$0xff]
    %v1656 = vld [vmem:[#allocation2 + $0x6a8] sm:$0xff]
    %v1657 = vld [vmem:[#allocation2 + $0x6b0] sm:$0xff]
    %v1658 = vld [vmem:[#allocation2 + $0x6b8] sm:$0xff]
    %v1659 = vld [vmem:[#allocation2 + $0x6c0] sm:$0xff]
    %v1660 = vld [vmem:[#allocation2 + $0x6c8] sm:$0xff]
    %v1661 = vld [vmem:[#allocation2 + $0x6d0] sm:$0xff]
    %v1662 = vld [vmem:[#allocation2 + $0x6d8] sm:$0xff]
    %v1663 = vld [vmem:[#allocation2 + $0x6e0] sm:$0xff]
    %v1664 = vld [vmem:[#allocation2 + $0x6e8] sm:$0xff]
    %v1665 = vld [vmem:[#allocation2 + $0x6f0] sm:$0xff]
    %v1666 = vld [vmem:[#allocation2 + $0x6f8] sm:$0xff]
    %v1667 = vld [vmem:[#allocation2 + $0x700] sm:$0xff]
    %v1668 = vld [vmem:[#allocation2 + $0x708] sm:$0xff]
    %v1669 = vld [vmem:[#allocation2 + $0x710] sm:$0xff]
    %v1670 = vld [vmem:[#allocation2 + $0x718] sm:$0xff]
    %v1671 = vld [vmem:[#allocation2 + $0x720] sm:$0xff]
    %v1672 = vld [vmem:[#allocation2 + $0x728] sm:$0xff]
    %v1673 = vld [vmem:[#allocation2 + $0x730] sm:$0xff]
    %v1674 = vld [vmem:[#allocation2 + $0x738] sm:$0xff]
    %v1675 = vld [vmem:[#allocation2 + $0x740] sm:$0xff]
    %v1676 = vld [vmem:[#allocation2 + $0x748] sm:$0xff]
    %v1677 = vld [vmem:[#allocation2 + $0x750] sm:$0xff]
    %v1678 = vld [vmem:[#allocation2 + $0x758] sm:$0xff]
    %v1679 = vld [vmem:[#allocation2 + $0x760] sm:$0xff]
    %v1680 = vld [vmem:[#allocation2 + $0x768] sm:$0xff]
    %v1681 = vld [vmem:[#allocation2 + $0x770] sm:$0xff]
    %v1682 = vld [vmem:[#allocation2 + $0x778] sm:$0xff]
    %v1683 = vld [vmem:[#allocation2 + $0x780] sm:$0xff]
    %v1684 = vld [vmem:[#allocation2 + $0x788] sm:$0xff]
    %v1685 = vld [vmem:[#allocation2 + $0x790] sm:$0xff]
    %v1686 = vld [vmem:[#allocation2 + $0x798] sm:$0xff]
    %v1687 = vld [vmem:[#allocation2 + $0x7a0] sm:$0xff]
    %v1688 = vld [vmem:[#allocation2 + $0x7a8] sm:$0xff]
    %v1689 = vld [vmem:[#allocation2 + $0x7b0] sm:$0xff]
    %v1690 = vld [vmem:[#allocation2 + $0x7b8] sm:$0xff]
    %v1691 = vld [vmem:[#allocation2 + $0x7c0] sm:$0xff]
    %v1692 = vld [vmem:[#allocation2 + $0x7c8] sm:$0xff]
    %v1693 = vld [vmem:[#allocation2 + $0x7d0] sm:$0xff]
    %v1694 = vld [vmem:[#allocation2 + $0x7d8] sm:$0xff]
    %v1695 = vld [vmem:[#allocation2 + $0x7e0] sm:$0xff]
    %v1696 = vld [vmem:[#allocation2 + $0x7e8] sm:$0xff]
    %v1697 = vld [vmem:[#allocation2 + $0x7f0] sm:$0xff]
    %v1698 = vld [vmem:[#allocation2 + $0x7f8] sm:$0xff]
    %v1699 = vpack.c.bf16 %v1435, %v1435
    %v1700 = vpack.c.bf16 %v1436, %v1436
    %v1701 = vpack.c.bf16 %v1437, %v1437
    %v1702 = vpack.c.bf16 %v1438, %v1438
    %v1703 = vld [vmem:[#allocation19] sm:$0xff]
    %v1705 = vlaneseq
    %v1706 = vshrl.u32 %v1705, 7
    %v1707 = vsub.s32 0, %v1706
    %v1708 = vrot.slane %v1703, %v1707
    %v1709 = vlaneseq
    %v1710 = vshrl.u32 %v1709, 7
    %v1711 = vsub.s32 1, %v1710
    %v1712 = vrot.slane %v1703, %v1711
    %v1713 = vlaneseq
    %v1714 = vshrl.u32 %v1713, 7
    %v1715 = vsub.s32 2, %v1714
    %v1716 = vrot.slane %v1703, %v1715
    %v1717 = vlaneseq
    %v1718 = vshrl.u32 %v1717, 7
    %v1719 = vsub.s32 3, %v1718
    %v1720 = vrot.slane %v1703, %v1719
    %v1721 = vlaneseq
    %v1722 = vshrl.u32 %v1721, 7
    %v1723 = vsub.s32 4, %v1722
    %v1724 = vrot.slane %v1703, %v1723
    %v1725 = vlaneseq
    %v1726 = vshrl.u32 %v1725, 7
    %v1727 = vsub.s32 5, %v1726
    %v1728 = vrot.slane %v1703, %v1727
    %v1729 = vlaneseq
    %v1730 = vshrl.u32 %v1729, 7
    %v1731 = vsub.s32 6, %v1730
    %v1732 = vrot.slane %v1703, %v1731
    %v1733 = vlaneseq
    %v1734 = vshrl.u32 %v1733, 7
    %v1735 = vsub.s32 7, %v1734
    %v1736 = vrot.slane %v1703, %v1735
    %v2001 = vunpack.c.l.b16 %v1443
    %v2002 = vunpack.c.h.b16 %v1443
    %v2003 = vunpack.c.l.b16 %v1444
    %v2004 = vunpack.c.h.b16 %v1444
    %v2005 = vunpack.c.l.b16 %v1445
    %v2006 = vunpack.c.h.b16 %v1445
    %v2007 = vunpack.c.l.b16 %v1446
    %v2008 = vunpack.c.h.b16 %v1446
    %v2009 = vunpack.c.l.b16 %v1447
    %v2010 = vunpack.c.h.b16 %v1447
    %v2011 = vunpack.c.l.b16 %v1448
    %v2012 = vunpack.c.h.b16 %v1448
    %v2013 = vunpack.c.l.b16 %v1449
    %v2014 = vunpack.c.h.b16 %v1449
    %v2015 = vunpack.c.l.b16 %v1450
    %v2016 = vunpack.c.h.b16 %v1450
    %v2017 = vunpack.c.l.b16 %v1451
    %v2018 = vunpack.c.h.b16 %v1451
    %v2019 = vunpack.c.l.b16 %v1452
    %v2020 = vunpack.c.h.b16 %v1452
    %v2021 = vunpack.c.l.b16 %v1453
    %v2022 = vunpack.c.h.b16 %v1453
    %v2023 = vunpack.c.l.b16 %v1454
    %v2024 = vunpack.c.h.b16 %v1454
    %v2025 = vunpack.c.l.b16 %v1455
    %v2026 = vunpack.c.h.b16 %v1455
    %v2027 = vunpack.c.l.b16 %v1456
    %v2028 = vunpack.c.h.b16 %v1456
    %v2029 = vunpack.c.l.b16 %v1457
    %v2030 = vunpack.c.h.b16 %v1457
    %v2031 = vunpack.c.l.b16 %v1458
    %v2032 = vunpack.c.h.b16 %v1458
    %v2033 = vunpack.c.l.b16 %v1459
    %v2034 = vunpack.c.h.b16 %v1459
    %v2035 = vunpack.c.l.b16 %v1460
    %v2036 = vunpack.c.h.b16 %v1460
    %v2037 = vunpack.c.l.b16 %v1461
    %v2038 = vunpack.c.h.b16 %v1461
    %v2039 = vunpack.c.l.b16 %v1462
    %v2040 = vunpack.c.h.b16 %v1462
    %v2041 = vunpack.c.l.b16 %v1463
    %v2042 = vunpack.c.h.b16 %v1463
    %v2043 = vunpack.c.l.b16 %v1464
    %v2044 = vunpack.c.h.b16 %v1464
    %v2045 = vunpack.c.l.b16 %v1465
    %v2046 = vunpack.c.h.b16 %v1465
    %v2047 = vunpack.c.l.b16 %v1466
    %v2048 = vunpack.c.h.b16 %v1466
    %v2049 = vunpack.c.l.b16 %v1467
    %v2050 = vunpack.c.h.b16 %v1467
    %v2051 = vunpack.c.l.b16 %v1468
    %v2052 = vunpack.c.h.b16 %v1468
    %v2053 = vunpack.c.l.b16 %v1469
    %v2054 = vunpack.c.h.b16 %v1469
    %v2055 = vunpack.c.l.b16 %v1470
    %v2056 = vunpack.c.h.b16 %v1470
    %v2057 = vunpack.c.l.b16 %v1471
    %v2058 = vunpack.c.h.b16 %v1471
    %v2059 = vunpack.c.l.b16 %v1472
    %v2060 = vunpack.c.h.b16 %v1472
    %v2061 = vunpack.c.l.b16 %v1473
    %v2062 = vunpack.c.h.b16 %v1473
    %v2063 = vunpack.c.l.b16 %v1474
    %v2064 = vunpack.c.h.b16 %v1474
    %v2065 = vunpack.c.l.b16 %v1475
    %v2066 = vunpack.c.h.b16 %v1475
    %v2067 = vunpack.c.l.b16 %v1476
    %v2068 = vunpack.c.h.b16 %v1476
    %v2069 = vunpack.c.l.b16 %v1477
    %v2070 = vunpack.c.h.b16 %v1477
    %v2071 = vunpack.c.l.b16 %v1478
    %v2072 = vunpack.c.h.b16 %v1478
    %v2073 = vunpack.c.l.b16 %v1479
    %v2074 = vunpack.c.h.b16 %v1479
    %v2075 = vunpack.c.l.b16 %v1480
    %v2076 = vunpack.c.h.b16 %v1480
    %v2077 = vunpack.c.l.b16 %v1481
    %v2078 = vunpack.c.h.b16 %v1481
    %v2079 = vunpack.c.l.b16 %v1482
    %v2080 = vunpack.c.h.b16 %v1482
    %v2081 = vunpack.c.l.b16 %v1483
    %v2082 = vunpack.c.h.b16 %v1483
    %v2083 = vunpack.c.l.b16 %v1484
    %v2084 = vunpack.c.h.b16 %v1484
    %v2085 = vunpack.c.l.b16 %v1485
    %v2086 = vunpack.c.h.b16 %v1485
    %v2087 = vunpack.c.l.b16 %v1486
    %v2088 = vunpack.c.h.b16 %v1486
    %v2089 = vunpack.c.l.b16 %v1487
    %v2090 = vunpack.c.h.b16 %v1487
    %v2091 = vunpack.c.l.b16 %v1488
    %v2092 = vunpack.c.h.b16 %v1488
    %v2093 = vunpack.c.l.b16 %v1489
    %v2094 = vunpack.c.h.b16 %v1489
    %v2095 = vunpack.c.l.b16 %v1490
    %v2096 = vunpack.c.h.b16 %v1490
    %v2097 = vunpack.c.l.b16 %v1491
    %v2098 = vunpack.c.h.b16 %v1491
    %v2099 = vunpack.c.l.b16 %v1492
    %v2100 = vunpack.c.h.b16 %v1492
    %v2101 = vunpack.c.l.b16 %v1493
    %v2102 = vunpack.c.h.b16 %v1493
    %v2103 = vunpack.c.l.b16 %v1494
    %v2104 = vunpack.c.h.b16 %v1494
    %v2105 = vunpack.c.l.b16 %v1495
    %v2106 = vunpack.c.h.b16 %v1495
    %v2107 = vunpack.c.l.b16 %v1496
    %v2108 = vunpack.c.h.b16 %v1496
    %v2109 = vunpack.c.l.b16 %v1497
    %v2110 = vunpack.c.h.b16 %v1497
    %v2111 = vunpack.c.l.b16 %v1498
    %v2112 = vunpack.c.h.b16 %v1498
    %v2113 = vunpack.c.l.b16 %v1499
    %v2114 = vunpack.c.h.b16 %v1499
    %v2115 = vunpack.c.l.b16 %v1500
    %v2116 = vunpack.c.h.b16 %v1500
    %v2117 = vunpack.c.l.b16 %v1501
    %v2118 = vunpack.c.h.b16 %v1501
    %v2119 = vunpack.c.l.b16 %v1502
    %v2120 = vunpack.c.h.b16 %v1502
    %v2121 = vunpack.c.l.b16 %v1503
    %v2122 = vunpack.c.h.b16 %v1503
    %v2123 = vunpack.c.l.b16 %v1504
    %v2124 = vunpack.c.h.b16 %v1504
    %v2125 = vunpack.c.l.b16 %v1505
    %v2126 = vunpack.c.h.b16 %v1505
    %v2127 = vunpack.c.l.b16 %v1506
    %v2128 = vunpack.c.h.b16 %v1506
    %v2129 = vunpack.c.l.b16 %v1507
    %v2130 = vunpack.c.h.b16 %v1507
    %v2131 = vunpack.c.l.b16 %v1508
    %v2132 = vunpack.c.h.b16 %v1508
    %v2133 = vunpack.c.l.b16 %v1509
    %v2134 = vunpack.c.h.b16 %v1509
    %v2135 = vunpack.c.l.b16 %v1510
    %v2136 = vunpack.c.h.b16 %v1510
    %v2137 = vunpack.c.l.b16 %v1511
    %v2138 = vunpack.c.h.b16 %v1511
    %v2139 = vunpack.c.l.b16 %v1512
    %v2140 = vunpack.c.h.b16 %v1512
    %v2141 = vunpack.c.l.b16 %v1513
    %v2142 = vunpack.c.h.b16 %v1513
    %v2143 = vunpack.c.l.b16 %v1514
    %v2144 = vunpack.c.h.b16 %v1514
    %v2145 = vunpack.c.l.b16 %v1515
    %v2146 = vunpack.c.h.b16 %v1515
    %v2147 = vunpack.c.l.b16 %v1516
    %v2148 = vunpack.c.h.b16 %v1516
    %v2149 = vunpack.c.l.b16 %v1517
    %v2150 = vunpack.c.h.b16 %v1517
    %v2151 = vunpack.c.l.b16 %v1518
    %v2152 = vunpack.c.h.b16 %v1518
    %v2153 = vunpack.c.l.b16 %v1519
    %v2154 = vunpack.c.h.b16 %v1519
    %v2155 = vunpack.c.l.b16 %v1520
    %v2156 = vunpack.c.h.b16 %v1520
    %v2157 = vunpack.c.l.b16 %v1521
    %v2158 = vunpack.c.h.b16 %v1521
    %v2159 = vunpack.c.l.b16 %v1522
    %v2160 = vunpack.c.h.b16 %v1522
    %v2161 = vunpack.c.l.b16 %v1523
    %v2162 = vunpack.c.h.b16 %v1523
    %v2163 = vunpack.c.l.b16 %v1524
    %v2164 = vunpack.c.h.b16 %v1524
    %v2165 = vunpack.c.l.b16 %v1525
    %v2166 = vunpack.c.h.b16 %v1525
    %v2167 = vunpack.c.l.b16 %v1526
    %v2168 = vunpack.c.h.b16 %v1526
    %v2169 = vunpack.c.l.b16 %v1527
    %v2170 = vunpack.c.h.b16 %v1527
    %v2171 = vunpack.c.l.b16 %v1528
    %v2172 = vunpack.c.h.b16 %v1528
    %v2173 = vunpack.c.l.b16 %v1529
    %v2174 = vunpack.c.h.b16 %v1529
    %v2175 = vunpack.c.l.b16 %v1530
    %v2176 = vunpack.c.h.b16 %v1530
    %v2177 = vunpack.c.l.b16 %v1531
    %v2178 = vunpack.c.h.b16 %v1531
    %v2179 = vunpack.c.l.b16 %v1532
    %v2180 = vunpack.c.h.b16 %v1532
    %v2181 = vunpack.c.l.b16 %v1533
    %v2182 = vunpack.c.h.b16 %v1533
    %v2183 = vunpack.c.l.b16 %v1534
    %v2184 = vunpack.c.h.b16 %v1534
    %v2185 = vunpack.c.l.b16 %v1535
    %v2186 = vunpack.c.h.b16 %v1535
    %v2187 = vunpack.c.l.b16 %v1536
    %v2188 = vunpack.c.h.b16 %v1536
    %v2189 = vunpack.c.l.b16 %v1537
    %v2190 = vunpack.c.h.b16 %v1537
    %v2191 = vunpack.c.l.b16 %v1538
    %v2192 = vunpack.c.h.b16 %v1538
    %v2193 = vunpack.c.l.b16 %v1539
    %v2194 = vunpack.c.h.b16 %v1539
    %v2195 = vunpack.c.l.b16 %v1540
    %v2196 = vunpack.c.h.b16 %v1540
    %v2197 = vunpack.c.l.b16 %v1541
    %v2198 = vunpack.c.h.b16 %v1541
    %v2199 = vunpack.c.l.b16 %v1542
    %v2200 = vunpack.c.h.b16 %v1542
    %v2201 = vunpack.c.l.b16 %v1543
    %v2202 = vunpack.c.h.b16 %v1543
    %v2203 = vunpack.c.l.b16 %v1544
    %v2204 = vunpack.c.h.b16 %v1544
    %v2205 = vunpack.c.l.b16 %v1545
    %v2206 = vunpack.c.h.b16 %v1545
    %v2207 = vunpack.c.l.b16 %v1546
    %v2208 = vunpack.c.h.b16 %v1546
    %v2209 = vunpack.c.l.b16 %v1547
    %v2210 = vunpack.c.h.b16 %v1547
    %v2211 = vunpack.c.l.b16 %v1548
    %v2212 = vunpack.c.h.b16 %v1548
    %v2213 = vunpack.c.l.b16 %v1549
    %v2214 = vunpack.c.h.b16 %v1549
    %v2215 = vunpack.c.l.b16 %v1550
    %v2216 = vunpack.c.h.b16 %v1550
    %v2217 = vunpack.c.l.b16 %v1551
    %v2218 = vunpack.c.h.b16 %v1551
    %v2219 = vunpack.c.l.b16 %v1552
    %v2220 = vunpack.c.h.b16 %v1552
    %v2221 = vunpack.c.l.b16 %v1553
    %v2222 = vunpack.c.h.b16 %v1553
    %v2223 = vunpack.c.l.b16 %v1554
    %v2224 = vunpack.c.h.b16 %v1554
    %v2225 = vunpack.c.l.b16 %v1555
    %v2226 = vunpack.c.h.b16 %v1555
    %v2227 = vunpack.c.l.b16 %v1556
    %v2228 = vunpack.c.h.b16 %v1556
    %v2229 = vunpack.c.l.b16 %v1557
    %v2230 = vunpack.c.h.b16 %v1557
    %v2231 = vunpack.c.l.b16 %v1558
    %v2232 = vunpack.c.h.b16 %v1558
    %v2233 = vunpack.c.l.b16 %v1559
    %v2234 = vunpack.c.h.b16 %v1559
    %v2235 = vunpack.c.l.b16 %v1560
    %v2236 = vunpack.c.h.b16 %v1560
    %v2237 = vunpack.c.l.b16 %v1561
    %v2238 = vunpack.c.h.b16 %v1561
    %v2239 = vunpack.c.l.b16 %v1562
    %v2240 = vunpack.c.h.b16 %v1562
    %v2241 = vunpack.c.l.b16 %v1563
    %v2242 = vunpack.c.h.b16 %v1563
    %v2243 = vunpack.c.l.b16 %v1564
    %v2244 = vunpack.c.h.b16 %v1564
    %v2245 = vunpack.c.l.b16 %v1565
    %v2246 = vunpack.c.h.b16 %v1565
    %v2247 = vunpack.c.l.b16 %v1566
    %v2248 = vunpack.c.h.b16 %v1566
    %v2249 = vunpack.c.l.b16 %v1567
    %v2250 = vunpack.c.h.b16 %v1567
    %v2251 = vunpack.c.l.b16 %v1568
    %v2252 = vunpack.c.h.b16 %v1568
    %v2253 = vunpack.c.l.b16 %v1569
    %v2254 = vunpack.c.h.b16 %v1569
    %v2255 = vunpack.c.l.b16 %v1570
    %v2256 = vunpack.c.h.b16 %v1570
    %v2257 = vunpack.c.l.b16 %v1571
    %v2258 = vunpack.c.h.b16 %v1571
    %v2259 = vunpack.c.l.b16 %v1572
    %v2260 = vunpack.c.h.b16 %v1572
    %v2261 = vunpack.c.l.b16 %v1573
    %v2262 = vunpack.c.h.b16 %v1573
    %v2263 = vunpack.c.l.b16 %v1574
    %v2264 = vunpack.c.h.b16 %v1574
    %v2265 = vunpack.c.l.b16 %v1575
    %v2266 = vunpack.c.h.b16 %v1575
    %v2267 = vunpack.c.l.b16 %v1576
    %v2268 = vunpack.c.h.b16 %v1576
    %v2269 = vunpack.c.l.b16 %v1577
    %v2270 = vunpack.c.h.b16 %v1577
    %v2271 = vunpack.c.l.b16 %v1578
    %v2272 = vunpack.c.h.b16 %v1578
    %v2273 = vunpack.c.l.b16 %v1579
    %v2274 = vunpack.c.h.b16 %v1579
    %v2275 = vunpack.c.l.b16 %v1580
    %v2276 = vunpack.c.h.b16 %v1580
    %v2277 = vunpack.c.l.b16 %v1581
    %v2278 = vunpack.c.h.b16 %v1581
    %v2279 = vunpack.c.l.b16 %v1582
    %v2280 = vunpack.c.h.b16 %v1582
    %v2281 = vunpack.c.l.b16 %v1583
    %v2282 = vunpack.c.h.b16 %v1583
    %v2283 = vunpack.c.l.b16 %v1584
    %v2284 = vunpack.c.h.b16 %v1584
    %v2285 = vunpack.c.l.b16 %v1585
    %v2286 = vunpack.c.h.b16 %v1585
    %v2287 = vunpack.c.l.b16 %v1586
    %v2288 = vunpack.c.h.b16 %v1586
    %v2289 = vunpack.c.l.b16 %v1587
    %v2290 = vunpack.c.h.b16 %v1587
    %v2291 = vunpack.c.l.b16 %v1588
    %v2292 = vunpack.c.h.b16 %v1588
    %v2293 = vunpack.c.l.b16 %v1589
    %v2294 = vunpack.c.h.b16 %v1589
    %v2295 = vunpack.c.l.b16 %v1590
    %v2296 = vunpack.c.h.b16 %v1590
    %v2297 = vunpack.c.l.b16 %v1591
    %v2298 = vunpack.c.h.b16 %v1591
    %v2299 = vunpack.c.l.b16 %v1592
    %v2300 = vunpack.c.h.b16 %v1592
    %v2301 = vunpack.c.l.b16 %v1593
    %v2302 = vunpack.c.h.b16 %v1593
    %v2303 = vunpack.c.l.b16 %v1594
    %v2304 = vunpack.c.h.b16 %v1594
    %v2305 = vunpack.c.l.b16 %v1595
    %v2306 = vunpack.c.h.b16 %v1595
    %v2307 = vunpack.c.l.b16 %v1596
    %v2308 = vunpack.c.h.b16 %v1596
    %v2309 = vunpack.c.l.b16 %v1597
    %v2310 = vunpack.c.h.b16 %v1597
    %v2311 = vunpack.c.l.b16 %v1598
    %v2312 = vunpack.c.h.b16 %v1598
    %v2313 = vunpack.c.l.b16 %v1599
    %v2314 = vunpack.c.h.b16 %v1599
    %v2315 = vunpack.c.l.b16 %v1600
    %v2316 = vunpack.c.h.b16 %v1600
    %v2317 = vunpack.c.l.b16 %v1601
    %v2318 = vunpack.c.h.b16 %v1601
    %v2319 = vunpack.c.l.b16 %v1602
    %v2320 = vunpack.c.h.b16 %v1602
    %v2321 = vunpack.c.l.b16 %v1603
    %v2322 = vunpack.c.h.b16 %v1603
    %v2323 = vunpack.c.l.b16 %v1604
    %v2324 = vunpack.c.h.b16 %v1604
    %v2325 = vunpack.c.l.b16 %v1605
    %v2326 = vunpack.c.h.b16 %v1605
    %v2327 = vunpack.c.l.b16 %v1606
    %v2328 = vunpack.c.h.b16 %v1606
    %v2329 = vunpack.c.l.b16 %v1607
    %v2330 = vunpack.c.h.b16 %v1607
    %v2331 = vunpack.c.l.b16 %v1608
    %v2332 = vunpack.c.h.b16 %v1608
    %v2333 = vunpack.c.l.b16 %v1609
    %v2334 = vunpack.c.h.b16 %v1609
    %v2335 = vunpack.c.l.b16 %v1610
    %v2336 = vunpack.c.h.b16 %v1610
    %v2337 = vunpack.c.l.b16 %v1611
    %v2338 = vunpack.c.h.b16 %v1611
    %v2339 = vunpack.c.l.b16 %v1612
    %v2340 = vunpack.c.h.b16 %v1612
    %v2341 = vunpack.c.l.b16 %v1613
    %v2342 = vunpack.c.h.b16 %v1613
    %v2343 = vunpack.c.l.b16 %v1614
    %v2344 = vunpack.c.h.b16 %v1614
    %v2345 = vunpack.c.l.b16 %v1615
    %v2346 = vunpack.c.h.b16 %v1615
    %v2347 = vunpack.c.l.b16 %v1616
    %v2348 = vunpack.c.h.b16 %v1616
    %v2349 = vunpack.c.l.b16 %v1617
    %v2350 = vunpack.c.h.b16 %v1617
    %v2351 = vunpack.c.l.b16 %v1618
    %v2352 = vunpack.c.h.b16 %v1618
    %v2353 = vunpack.c.l.b16 %v1619
    %v2354 = vunpack.c.h.b16 %v1619
    %v2355 = vunpack.c.l.b16 %v1620
    %v2356 = vunpack.c.h.b16 %v1620
    %v2357 = vunpack.c.l.b16 %v1621
    %v2358 = vunpack.c.h.b16 %v1621
    %v2359 = vunpack.c.l.b16 %v1622
    %v2360 = vunpack.c.h.b16 %v1622
    %v2361 = vunpack.c.l.b16 %v1623
    %v2362 = vunpack.c.h.b16 %v1623
    %v2363 = vunpack.c.l.b16 %v1624
    %v2364 = vunpack.c.h.b16 %v1624
    %v2365 = vunpack.c.l.b16 %v1625
    %v2366 = vunpack.c.h.b16 %v1625
    %v2367 = vunpack.c.l.b16 %v1626
    %v2368 = vunpack.c.h.b16 %v1626
    %v2369 = vunpack.c.l.b16 %v1627
    %v2370 = vunpack.c.h.b16 %v1627
    %v2371 = vunpack.c.l.b16 %v1628
    %v2372 = vunpack.c.h.b16 %v1628
    %v2373 = vunpack.c.l.b16 %v1629
    %v2374 = vunpack.c.h.b16 %v1629
    %v2375 = vunpack.c.l.b16 %v1630
    %v2376 = vunpack.c.h.b16 %v1630
    %v2377 = vunpack.c.l.b16 %v1631
    %v2378 = vunpack.c.h.b16 %v1631
    %v2379 = vunpack.c.l.b16 %v1632
    %v2380 = vunpack.c.h.b16 %v1632
    %v2381 = vunpack.c.l.b16 %v1633
    %v2382 = vunpack.c.h.b16 %v1633
    %v2383 = vunpack.c.l.b16 %v1634
    %v2384 = vunpack.c.h.b16 %v1634
    %v2385 = vunpack.c.l.b16 %v1635
    %v2386 = vunpack.c.h.b16 %v1635
    %v2387 = vunpack.c.l.b16 %v1636
    %v2388 = vunpack.c.h.b16 %v1636
    %v2389 = vunpack.c.l.b16 %v1637
    %v2390 = vunpack.c.h.b16 %v1637
    %v2391 = vunpack.c.l.b16 %v1638
    %v2392 = vunpack.c.h.b16 %v1638
    %v2393 = vunpack.c.l.b16 %v1639
    %v2394 = vunpack.c.h.b16 %v1639
    %v2395 = vunpack.c.l.b16 %v1640
    %v2396 = vunpack.c.h.b16 %v1640
    %v2397 = vunpack.c.l.b16 %v1641
    %v2398 = vunpack.c.h.b16 %v1641
    %v2399 = vunpack.c.l.b16 %v1642
    %v2400 = vunpack.c.h.b16 %v1642
    %v2401 = vunpack.c.l.b16 %v1643
    %v2402 = vunpack.c.h.b16 %v1643
    %v2403 = vunpack.c.l.b16 %v1644
    %v2404 = vunpack.c.h.b16 %v1644
    %v2405 = vunpack.c.l.b16 %v1645
    %v2406 = vunpack.c.h.b16 %v1645
    %v2407 = vunpack.c.l.b16 %v1646
    %v2408 = vunpack.c.h.b16 %v1646
    %v2409 = vunpack.c.l.b16 %v1647
    %v2410 = vunpack.c.h.b16 %v1647
    %v2411 = vunpack.c.l.b16 %v1648
    %v2412 = vunpack.c.h.b16 %v1648
    %v2413 = vunpack.c.l.b16 %v1649
    %v2414 = vunpack.c.h.b16 %v1649
    %v2415 = vunpack.c.l.b16 %v1650
    %v2416 = vunpack.c.h.b16 %v1650
    %v2417 = vunpack.c.l.b16 %v1651
    %v2418 = vunpack.c.h.b16 %v1651
    %v2419 = vunpack.c.l.b16 %v1652
    %v2420 = vunpack.c.h.b16 %v1652
    %v2421 = vunpack.c.l.b16 %v1653
    %v2422 = vunpack.c.h.b16 %v1653
    %v2423 = vunpack.c.l.b16 %v1654
    %v2424 = vunpack.c.h.b16 %v1654
    %v2425 = vunpack.c.l.b16 %v1655
    %v2426 = vunpack.c.h.b16 %v1655
    %v2427 = vunpack.c.l.b16 %v1656
    %v2428 = vunpack.c.h.b16 %v1656
    %v2429 = vunpack.c.l.b16 %v1657
    %v2430 = vunpack.c.h.b16 %v1657
    %v2431 = vunpack.c.l.b16 %v1658
    %v2432 = vunpack.c.h.b16 %v1658
    %v2433 = vunpack.c.l.b16 %v1659
    %v2434 = vunpack.c.h.b16 %v1659
    %v2435 = vunpack.c.l.b16 %v1660
    %v2436 = vunpack.c.h.b16 %v1660
    %v2437 = vunpack.c.l.b16 %v1661
    %v2438 = vunpack.c.h.b16 %v1661
    %v2439 = vunpack.c.l.b16 %v1662
    %v2440 = vunpack.c.h.b16 %v1662
    %v2441 = vunpack.c.l.b16 %v1663
    %v2442 = vunpack.c.h.b16 %v1663
    %v2443 = vunpack.c.l.b16 %v1664
    %v2444 = vunpack.c.h.b16 %v1664
    %v2445 = vunpack.c.l.b16 %v1665
    %v2446 = vunpack.c.h.b16 %v1665
    %v2447 = vunpack.c.l.b16 %v1666
    %v2448 = vunpack.c.h.b16 %v1666
    %v2449 = vunpack.c.l.b16 %v1667
    %v2450 = vunpack.c.h.b16 %v1667
    %v2451 = vunpack.c.l.b16 %v1668
    %v2452 = vunpack.c.h.b16 %v1668
    %v2453 = vunpack.c.l.b16 %v1669
    %v2454 = vunpack.c.h.b16 %v1669
    %v2455 = vunpack.c.l.b16 %v1670
    %v2456 = vunpack.c.h.b16 %v1670
    %v2457 = vunpack.c.l.b16 %v1671
    %v2458 = vunpack.c.h.b16 %v1671
    %v2459 = vunpack.c.l.b16 %v1672
    %v2460 = vunpack.c.h.b16 %v1672
    %v2461 = vunpack.c.l.b16 %v1673
    %v2462 = vunpack.c.h.b16 %v1673
    %v2463 = vunpack.c.l.b16 %v1674
    %v2464 = vunpack.c.h.b16 %v1674
    %v2465 = vunpack.c.l.b16 %v1675
    %v2466 = vunpack.c.h.b16 %v1675
    %v2467 = vunpack.c.l.b16 %v1676
    %v2468 = vunpack.c.h.b16 %v1676
    %v2469 = vunpack.c.l.b16 %v1677
    %v2470 = vunpack.c.h.b16 %v1677
    %v2471 = vunpack.c.l.b16 %v1678
    %v2472 = vunpack.c.h.b16 %v1678
    %v2473 = vunpack.c.l.b16 %v1679
    %v2474 = vunpack.c.h.b16 %v1679
    %v2475 = vunpack.c.l.b16 %v1680
    %v2476 = vunpack.c.h.b16 %v1680
    %v2477 = vunpack.c.l.b16 %v1681
    %v2478 = vunpack.c.h.b16 %v1681
    %v2479 = vunpack.c.l.b16 %v1682
    %v2480 = vunpack.c.h.b16 %v1682
    %v2481 = vunpack.c.l.b16 %v1683
    %v2482 = vunpack.c.h.b16 %v1683
    %v2483 = vunpack.c.l.b16 %v1684
    %v2484 = vunpack.c.h.b16 %v1684
    %v2485 = vunpack.c.l.b16 %v1685
    %v2486 = vunpack.c.h.b16 %v1685
    %v2487 = vunpack.c.l.b16 %v1686
    %v2488 = vunpack.c.h.b16 %v1686
    %v2489 = vunpack.c.l.b16 %v1687
    %v2490 = vunpack.c.h.b16 %v1687
    %v2491 = vunpack.c.l.b16 %v1688
    %v2492 = vunpack.c.h.b16 %v1688
    %v2493 = vunpack.c.l.b16 %v1689
    %v2494 = vunpack.c.h.b16 %v1689
    %v2495 = vunpack.c.l.b16 %v1690
    %v2496 = vunpack.c.h.b16 %v1690
    %v2497 = vunpack.c.l.b16 %v1691
    %v2498 = vunpack.c.h.b16 %v1691
    %v2499 = vunpack.c.l.b16 %v1692
    %v2500 = vunpack.c.h.b16 %v1692
    %v2501 = vunpack.c.l.b16 %v1693
    %v2502 = vunpack.c.h.b16 %v1693
    %v2503 = vunpack.c.l.b16 %v1694
    %v2504 = vunpack.c.h.b16 %v1694
    %v2505 = vunpack.c.l.b16 %v1695
    %v2506 = vunpack.c.h.b16 %v1695
    %v2507 = vunpack.c.l.b16 %v1696
    %v2508 = vunpack.c.h.b16 %v1696
    %v2509 = vunpack.c.l.b16 %v1697
    %v2510 = vunpack.c.h.b16 %v1697
    %v2511 = vunpack.c.l.b16 %v1698
    %v2512 = vunpack.c.h.b16 %v1698
    %v2513 = vpack.c.b16 %v2009, %v2001
    %v2514 = vpack.c.b16 %v2010, %v2002
    %v2515 = vpack.c.b16 %v2011, %v2003
    %v2516 = vpack.c.b16 %v2012, %v2004
    %v2517 = vpack.c.b16 %v2013, %v2005
    %v2518 = vpack.c.b16 %v2014, %v2006
    %v2519 = vpack.c.b16 %v2015, %v2007
    %v2520 = vpack.c.b16 %v2016, %v2008
    %v2521 = vpack.c.b16 %v2025, %v2017
    %v2522 = vpack.c.b16 %v2026, %v2018
    %v2523 = vpack.c.b16 %v2027, %v2019
    %v2524 = vpack.c.b16 %v2028, %v2020
    %v2525 = vpack.c.b16 %v2029, %v2021
    %v2526 = vpack.c.b16 %v2030, %v2022
    %v2527 = vpack.c.b16 %v2031, %v2023
    %v2528 = vpack.c.b16 %v2032, %v2024
    %v2529 = vpack.c.b16 %v2041, %v2033
    %v2530 = vpack.c.b16 %v2042, %v2034
    %v2531 = vpack.c.b16 %v2043, %v2035
    %v2532 = vpack.c.b16 %v2044, %v2036
    %v2533 = vpack.c.b16 %v2045, %v2037
    %v2534 = vpack.c.b16 %v2046, %v2038
    %v2535 = vpack.c.b16 %v2047, %v2039
    %v2536 = vpack.c.b16 %v2048, %v2040
    %v2537 = vpack.c.b16 %v2057, %v2049
    %v2538 = vpack.c.b16 %v2058, %v2050
    %v2539 = vpack.c.b16 %v2059, %v2051
    %v2540 = vpack.c.b16 %v2060, %v2052
    %v2541 = vpack.c.b16 %v2061, %v2053
    %v2542 = vpack.c.b16 %v2062, %v2054
    %v2543 = vpack.c.b16 %v2063, %v2055
    %v2544 = vpack.c.b16 %v2064, %v2056
    %v2545 = vpack.c.b16 %v2073, %v2065
    %v2546 = vpack.c.b16 %v2074, %v2066
    %v2547 = vpack.c.b16 %v2075, %v2067
    %v2548 = vpack.c.b16 %v2076, %v2068
    %v2549 = vpack.c.b16 %v2077, %v2069
    %v2550 = vpack.c.b16 %v2078, %v2070
    %v2551 = vpack.c.b16 %v2079, %v2071
    %v2552 = vpack.c.b16 %v2080, %v2072
    %v2553 = vpack.c.b16 %v2089, %v2081
    %v2554 = vpack.c.b16 %v2090, %v2082
    %v2555 = vpack.c.b16 %v2091, %v2083
    %v2556 = vpack.c.b16 %v2092, %v2084
    %v2557 = vpack.c.b16 %v2093, %v2085
    %v2558 = vpack.c.b16 %v2094, %v2086
    %v2559 = vpack.c.b16 %v2095, %v2087
    %v2560 = vpack.c.b16 %v2096, %v2088
    %v2561 = vpack.c.b16 %v2105, %v2097
    %v2562 = vpack.c.b16 %v2106, %v2098
    %v2563 = vpack.c.b16 %v2107, %v2099
    %v2564 = vpack.c.b16 %v2108, %v2100
    %v2565 = vpack.c.b16 %v2109, %v2101
    %v2566 = vpack.c.b16 %v2110, %v2102
    %v2567 = vpack.c.b16 %v2111, %v2103
    %v2568 = vpack.c.b16 %v2112, %v2104
    %v2569 = vpack.c.b16 %v2121, %v2113
    %v2570 = vpack.c.b16 %v2122, %v2114
    %v2571 = vpack.c.b16 %v2123, %v2115
    %v2572 = vpack.c.b16 %v2124, %v2116
    %v2573 = vpack.c.b16 %v2125, %v2117
    %v2574 = vpack.c.b16 %v2126, %v2118
    %v2575 = vpack.c.b16 %v2127, %v2119
    %v2576 = vpack.c.b16 %v2128, %v2120
    %v2577 = vpack.c.b16 %v2137, %v2129
    %v2578 = vpack.c.b16 %v2138, %v2130
    %v2579 = vpack.c.b16 %v2139, %v2131
    %v2580 = vpack.c.b16 %v2140, %v2132
    %v2581 = vpack.c.b16 %v2141, %v2133
    %v2582 = vpack.c.b16 %v2142, %v2134
    %v2583 = vpack.c.b16 %v2143, %v2135
    %v2584 = vpack.c.b16 %v2144, %v2136
    %v2585 = vpack.c.b16 %v2153, %v2145
    %v2586 = vpack.c.b16 %v2154, %v2146
    %v2587 = vpack.c.b16 %v2155, %v2147
    %v2588 = vpack.c.b16 %v2156, %v2148
    %v2589 = vpack.c.b16 %v2157, %v2149
    %v2590 = vpack.c.b16 %v2158, %v2150
    %v2591 = vpack.c.b16 %v2159, %v2151
    %v2592 = vpack.c.b16 %v2160, %v2152
    %v2593 = vpack.c.b16 %v2169, %v2161
    %v2594 = vpack.c.b16 %v2170, %v2162
    %v2595 = vpack.c.b16 %v2171, %v2163
    %v2596 = vpack.c.b16 %v2172, %v2164
    %v2597 = vpack.c.b16 %v2173, %v2165
    %v2598 = vpack.c.b16 %v2174, %v2166
    %v2599 = vpack.c.b16 %v2175, %v2167
    %v2600 = vpack.c.b16 %v2176, %v2168
    %v2601 = vpack.c.b16 %v2185, %v2177
    %v2602 = vpack.c.b16 %v2186, %v2178
    %v2603 = vpack.c.b16 %v2187, %v2179
    %v2604 = vpack.c.b16 %v2188, %v2180
    %v2605 = vpack.c.b16 %v2189, %v2181
    %v2606 = vpack.c.b16 %v2190, %v2182
    %v2607 = vpack.c.b16 %v2191, %v2183
    %v2608 = vpack.c.b16 %v2192, %v2184
    %v2609 = vpack.c.b16 %v2201, %v2193
    %v2610 = vpack.c.b16 %v2202, %v2194
    %v2611 = vpack.c.b16 %v2203, %v2195
    %v2612 = vpack.c.b16 %v2204, %v2196
    %v2613 = vpack.c.b16 %v2205, %v2197
    %v2614 = vpack.c.b16 %v2206, %v2198
    %v2615 = vpack.c.b16 %v2207, %v2199
    %v2616 = vpack.c.b16 %v2208, %v2200
    %v2617 = vpack.c.b16 %v2217, %v2209
    %v2618 = vpack.c.b16 %v2218, %v2210
    %v2619 = vpack.c.b16 %v2219, %v2211
    %v2620 = vpack.c.b16 %v2220, %v2212
    %v2621 = vpack.c.b16 %v2221, %v2213
    %v2622 = vpack.c.b16 %v2222, %v2214
    %v2623 = vpack.c.b16 %v2223, %v2215
    %v2624 = vpack.c.b16 %v2224, %v2216
    %v2625 = vpack.c.b16 %v2233, %v2225
    %v2626 = vpack.c.b16 %v2234, %v2226
    %v2627 = vpack.c.b16 %v2235, %v2227
    %v2628 = vpack.c.b16 %v2236, %v2228
    %v2629 = vpack.c.b16 %v2237, %v2229
    %v2630 = vpack.c.b16 %v2238, %v2230
    %v2631 = vpack.c.b16 %v2239, %v2231
    %v2632 = vpack.c.b16 %v2240, %v2232
    %v2633 = vpack.c.b16 %v2249, %v2241
    %v2634 = vpack.c.b16 %v2250, %v2242
    %v2635 = vpack.c.b16 %v2251, %v2243
    %v2636 = vpack.c.b16 %v2252, %v2244
    %v2637 = vpack.c.b16 %v2253, %v2245
    %v2638 = vpack.c.b16 %v2254, %v2246
    %v2639 = vpack.c.b16 %v2255, %v2247
    %v2640 = vpack.c.b16 %v2256, %v2248
    %v2641 = vpack.c.b16 %v2265, %v2257
    %v2642 = vpack.c.b16 %v2266, %v2258
    %v2643 = vpack.c.b16 %v2267, %v2259
    %v2644 = vpack.c.b16 %v2268, %v2260
    %v2645 = vpack.c.b16 %v2269, %v2261
    %v2646 = vpack.c.b16 %v2270, %v2262
    %v2647 = vpack.c.b16 %v2271, %v2263
    %v2648 = vpack.c.b16 %v2272, %v2264
    %v2649 = vpack.c.b16 %v2281, %v2273
    %v2650 = vpack.c.b16 %v2282, %v2274
    %v2651 = vpack.c.b16 %v2283, %v2275
    %v2652 = vpack.c.b16 %v2284, %v2276
    %v2653 = vpack.c.b16 %v2285, %v2277
    %v2654 = vpack.c.b16 %v2286, %v2278
    %v2655 = vpack.c.b16 %v2287, %v2279
    %v2656 = vpack.c.b16 %v2288, %v2280
    %v2657 = vpack.c.b16 %v2297, %v2289
    %v2658 = vpack.c.b16 %v2298, %v2290
    %v2659 = vpack.c.b16 %v2299, %v2291
    %v2660 = vpack.c.b16 %v2300, %v2292
    %v2661 = vpack.c.b16 %v2301, %v2293
    %v2662 = vpack.c.b16 %v2302, %v2294
    %v2663 = vpack.c.b16 %v2303, %v2295
    %v2664 = vpack.c.b16 %v2304, %v2296
    %v2665 = vpack.c.b16 %v2313, %v2305
    %v2666 = vpack.c.b16 %v2314, %v2306
    %v2667 = vpack.c.b16 %v2315, %v2307
    %v2668 = vpack.c.b16 %v2316, %v2308
    %v2669 = vpack.c.b16 %v2317, %v2309
    %v2670 = vpack.c.b16 %v2318, %v2310
    %v2671 = vpack.c.b16 %v2319, %v2311
    %v2672 = vpack.c.b16 %v2320, %v2312
    %v2673 = vpack.c.b16 %v2329, %v2321
    %v2674 = vpack.c.b16 %v2330, %v2322
    %v2675 = vpack.c.b16 %v2331, %v2323
    %v2676 = vpack.c.b16 %v2332, %v2324
    %v2677 = vpack.c.b16 %v2333, %v2325
    %v2678 = vpack.c.b16 %v2334, %v2326
    %v2679 = vpack.c.b16 %v2335, %v2327
    %v2680 = vpack.c.b16 %v2336, %v2328
    %v2681 = vpack.c.b16 %v2345, %v2337
    %v2682 = vpack.c.b16 %v2346, %v2338
    %v2683 = vpack.c.b16 %v2347, %v2339
    %v2684 = vpack.c.b16 %v2348, %v2340
    %v2685 = vpack.c.b16 %v2349, %v2341
    %v2686 = vpack.c.b16 %v2350, %v2342
    %v2687 = vpack.c.b16 %v2351, %v2343
    %v2688 = vpack.c.b16 %v2352, %v2344
    %v2689 = vpack.c.b16 %v2361, %v2353
    %v2690 = vpack.c.b16 %v2362, %v2354
    %v2691 = vpack.c.b16 %v2363, %v2355
    %v2692 = vpack.c.b16 %v2364, %v2356
    %v2693 = vpack.c.b16 %v2365, %v2357
    %v2694 = vpack.c.b16 %v2366, %v2358
    %v2695 = vpack.c.b16 %v2367, %v2359
    %v2696 = vpack.c.b16 %v2368, %v2360
    %v2697 = vpack.c.b16 %v2377, %v2369
    %v2698 = vpack.c.b16 %v2378, %v2370
    %v2699 = vpack.c.b16 %v2379, %v2371
    %v2700 = vpack.c.b16 %v2380, %v2372
    %v2701 = vpack.c.b16 %v2381, %v2373
    %v2702 = vpack.c.b16 %v2382, %v2374
    %v2703 = vpack.c.b16 %v2383, %v2375
    %v2704 = vpack.c.b16 %v2384, %v2376
    %v2705 = vpack.c.b16 %v2393, %v2385
    %v2706 = vpack.c.b16 %v2394, %v2386
    %v2707 = vpack.c.b16 %v2395, %v2387
    %v2708 = vpack.c.b16 %v2396, %v2388
    %v2709 = vpack.c.b16 %v2397, %v2389
    %v2710 = vpack.c.b16 %v2398, %v2390
    %v2711 = vpack.c.b16 %v2399, %v2391
    %v2712 = vpack.c.b16 %v2400, %v2392
    %v2713 = vpack.c.b16 %v2409, %v2401
    %v2714 = vpack.c.b16 %v2410, %v2402
    %v2715 = vpack.c.b16 %v2411, %v2403
    %v2716 = vpack.c.b16 %v2412, %v2404
    %v2717 = vpack.c.b16 %v2413, %v2405
    %v2718 = vpack.c.b16 %v2414, %v2406
    %v2719 = vpack.c.b16 %v2415, %v2407
    %v2720 = vpack.c.b16 %v2416, %v2408
    %v2721 = vpack.c.b16 %v2425, %v2417
    %v2722 = vpack.c.b16 %v2426, %v2418
    %v2723 = vpack.c.b16 %v2427, %v2419
    %v2724 = vpack.c.b16 %v2428, %v2420
    %v2725 = vpack.c.b16 %v2429, %v2421
    %v2726 = vpack.c.b16 %v2430, %v2422
    %v2727 = vpack.c.b16 %v2431, %v2423
    %v2728 = vpack.c.b16 %v2432, %v2424
    %v2729 = vpack.c.b16 %v2441, %v2433
    %v2730 = vpack.c.b16 %v2442, %v2434
    %v2731 = vpack.c.b16 %v2443, %v2435
    %v2732 = vpack.c.b16 %v2444, %v2436
    %v2733 = vpack.c.b16 %v2445, %v2437
    %v2734 = vpack.c.b16 %v2446, %v2438
    %v2735 = vpack.c.b16 %v2447, %v2439
    %v2736 = vpack.c.b16 %v2448, %v2440
    %v2737 = vpack.c.b16 %v2457, %v2449
    %v2738 = vpack.c.b16 %v2458, %v2450
    %v2739 = vpack.c.b16 %v2459, %v2451
    %v2740 = vpack.c.b16 %v2460, %v2452
    %v2741 = vpack.c.b16 %v2461, %v2453
    %v2742 = vpack.c.b16 %v2462, %v2454
    %v2743 = vpack.c.b16 %v2463, %v2455
    %v2744 = vpack.c.b16 %v2464, %v2456
    %v2745 = vpack.c.b16 %v2473, %v2465
    %v2746 = vpack.c.b16 %v2474, %v2466
    %v2747 = vpack.c.b16 %v2475, %v2467
    %v2748 = vpack.c.b16 %v2476, %v2468
    %v2749 = vpack.c.b16 %v2477, %v2469
    %v2750 = vpack.c.b16 %v2478, %v2470
    %v2751 = vpack.c.b16 %v2479, %v2471
    %v2752 = vpack.c.b16 %v2480, %v2472
    %v2753 = vpack.c.b16 %v2489, %v2481
    %v2754 = vpack.c.b16 %v2490, %v2482
    %v2755 = vpack.c.b16 %v2491, %v2483
    %v2756 = vpack.c.b16 %v2492, %v2484
    %v2757 = vpack.c.b16 %v2493, %v2485
    %v2758 = vpack.c.b16 %v2494, %v2486
    %v2759 = vpack.c.b16 %v2495, %v2487
    %v2760 = vpack.c.b16 %v2496, %v2488
    %v2761 = vpack.c.b16 %v2505, %v2497
    %v2762 = vpack.c.b16 %v2506, %v2498
    %v2763 = vpack.c.b16 %v2507, %v2499
    %v2764 = vpack.c.b16 %v2508, %v2500
    %v2765 = vpack.c.b16 %v2509, %v2501
    %v2766 = vpack.c.b16 %v2510, %v2502
    %v2767 = vpack.c.b16 %v2511, %v2503
    %v2768 = vpack.c.b16 %v2512, %v2504
    %3025 = vmatprep.subr.bf16.mxu0 %v2570
    %3026 = vmatpush1.bf16.msra.mxu0 %v2569
    %3027 = vmatprep.subr.bf16.mxu0 %v2562
    %3028 = vmatpush1.bf16.msra.mxu0 %v2561
    %3029 = vmatprep.subr.bf16.mxu0 %v2554
    %3030 = vmatpush1.bf16.msra.mxu0 %v2553
    %3031 = vmatprep.subr.bf16.mxu0 %v2546
    %3032 = vmatpush1.bf16.msra.mxu0 %v2545
    %3033 = vmatprep.subr.bf16.mxu0 %v2538
    %3034 = vmatpush1.bf16.msra.mxu0 %v2537
    %3035 = vmatprep.subr.bf16.mxu0 %v2530
    %3036 = vmatpush1.bf16.msra.mxu0 %v2529
    %3037 = vmatprep.subr.bf16.mxu0 %v2522
    %3038 = vmatpush1.bf16.msra.mxu0 %v2521
    %3039 = vmatprep.subr.bf16.mxu0 %v2514
    %3040 = vmatpush1.bf16.msra.mxu0 %v2513
    %3041 = vmatprep.subr.bf16.mxu0 %v2634
    %3042 = vmatpush2.bf16.msra.mxu0 %v2633
    %3043 = vmatprep.subr.bf16.mxu0 %v2626
    %3044 = vmatpush2.bf16.msra.mxu0 %v2625
    %3045 = vmatprep.subr.bf16.mxu0 %v2618
    %3046 = vmatpush2.bf16.msra.mxu0 %v2617
    %3047 = vmatprep.subr.bf16.mxu0 %v2610
    %3048 = vmatpush2.bf16.msra.mxu0 %v2609
    %3049 = vmatprep.subr.bf16.mxu0 %v2602
    %3050 = vmatpush2.bf16.msra.mxu0 %v2601
    %3051 = vmatprep.subr.bf16.mxu0 %v2594
    %3052 = vmatpush2.bf16.msra.mxu0 %v2593
    %3053 = vmatprep.subr.bf16.mxu0 %v2586
    %3054 = vmatpush2.bf16.msra.mxu0 %v2585
    %3055 = vmatprep.subr.bf16.mxu0 %v2578
    %3056 = vmatpush2.bf16.msra.mxu0 %v2577
    %3057 = vmatprep.mubr.bf16.mxu0 %v1700
    %3058 = vmatmul.mubr.bf16.gmra.mxu0 %v1699
    %v3059 = vpop.f32.mrf.mxu0
    %v3060 = vadd.f32 %v1708, %v3059
    %v3061 = vpop.f32.mrf.mxu0
    %v3062 = vadd.f32 %v1712, %v3061
    %v3063 = vpop.f32.mrf.mxu0
    %v3064 = vpop.f32.mrf.mxu0
    %3065 = vdwg.mxu0
    %3066 = vmatprep.subr.bf16.mxu0 %v2698
    %3067 = vmatpush1.bf16.msra.mxu0 %v2697
    %3068 = vmatprep.subr.bf16.mxu0 %v2690
    %3069 = vmatpush1.bf16.msra.mxu0 %v2689
    %3070 = vmatprep.subr.bf16.mxu0 %v2682
    %3071 = vmatpush1.bf16.msra.mxu0 %v2681
    %3072 = vmatprep.subr.bf16.mxu0 %v2674
    %3073 = vmatpush1.bf16.msra.mxu0 %v2673
    %3074 = vmatprep.subr.bf16.mxu0 %v2666
    %3075 = vmatpush1.bf16.msra.mxu0 %v2665
    %3076 = vmatprep.subr.bf16.mxu0 %v2658
    %3077 = vmatpush1.bf16.msra.mxu0 %v2657
    %3078 = vmatprep.subr.bf16.mxu0 %v2650
    %3079 = vmatpush1.bf16.msra.mxu0 %v2649
    %3080 = vmatprep.subr.bf16.mxu0 %v2642
    %3081 = vmatpush1.bf16.msra.mxu0 %v2641
    %3082 = vmatprep.subr.bf16.mxu0 %v2762
    %3083 = vmatpush2.bf16.msra.mxu0 %v2761
    %3084 = vmatprep.subr.bf16.mxu0 %v2754
    %3085 = vmatpush2.bf16.msra.mxu0 %v2753
    %3086 = vmatprep.subr.bf16.mxu0 %v2746
    %3087 = vmatpush2.bf16.msra.mxu0 %v2745
    %3088 = vmatprep.subr.bf16.mxu0 %v2738
    %3089 = vmatpush2.bf16.msra.mxu0 %v2737
    %3090 = vmatprep.subr.bf16.mxu0 %v2730
    %3091 = vmatpush2.bf16.msra.mxu0 %v2729
    %3092 = vmatprep.subr.bf16.mxu0 %v2722
    %3093 = vmatpush2.bf16.msra.mxu0 %v2721
    %3094 = vmatprep.subr.bf16.mxu0 %v2714
    %3095 = vmatpush2.bf16.msra.mxu0 %v2713
    %3096 = vmatprep.subr.bf16.mxu0 %v2706
    %3097 = vmatpush2.bf16.msra.mxu0 %v2705
    %3098 = vmatprep.mubr.bf16.mxu0 %v1702
    %3099 = vmatmul.mubr.bf16.gmra.mxu0 %v1701
    %v3100 = vpop.f32.mrf.mxu0
    %v3101 = vadd.f32 %v3060, %v3100
    %v3102 = vpop.f32.mrf.mxu0
    %v3103 = vadd.f32 %v3062, %v3102
    %v3104 = vpop.f32.mrf.mxu0
    %v3105 = vpop.f32.mrf.mxu0
    %3106 = vdwg.mxu0
    %3107 = vmatprep.subr.bf16.mxu0 %v2572
    %3108 = vmatpush1.bf16.msra.mxu0 %v2571
    %3109 = vmatprep.subr.bf16.mxu0 %v2564
    %3110 = vmatpush1.bf16.msra.mxu0 %v2563
    %3111 = vmatprep.subr.bf16.mxu0 %v2556
    %3112 = vmatpush1.bf16.msra.mxu0 %v2555
    %3113 = vmatprep.subr.bf16.mxu0 %v2548
    %3114 = vmatpush1.bf16.msra.mxu0 %v2547
    %3115 = vmatprep.subr.bf16.mxu0 %v2540
    %3116 = vmatpush1.bf16.msra.mxu0 %v2539
    %3117 = vmatprep.subr.bf16.mxu0 %v2532
    %3118 = vmatpush1.bf16.msra.mxu0 %v2531
    %3119 = vmatprep.subr.bf16.mxu0 %v2524
    %3120 = vmatpush1.bf16.msra.mxu0 %v2523
    %3121 = vmatprep.subr.bf16.mxu0 %v2516
    %3122 = vmatpush1.bf16.msra.mxu0 %v2515
    %3123 = vmatprep.subr.bf16.mxu0 %v2636
    %3124 = vmatpush2.bf16.msra.mxu0 %v2635
    %3125 = vmatprep.subr.bf16.mxu0 %v2628
    %3126 = vmatpush2.bf16.msra.mxu0 %v2627
    %3127 = vmatprep.subr.bf16.mxu0 %v2620
    %3128 = vmatpush2.bf16.msra.mxu0 %v2619
    %3129 = vmatprep.subr.bf16.mxu0 %v2612
    %3130 = vmatpush2.bf16.msra.mxu0 %v2611
    %3131 = vmatprep.subr.bf16.mxu0 %v2604
    %3132 = vmatpush2.bf16.msra.mxu0 %v2603
    %3133 = vmatprep.subr.bf16.mxu0 %v2596
    %3134 = vmatpush2.bf16.msra.mxu0 %v2595
    %3135 = vmatprep.subr.bf16.mxu0 %v2588
    %3136 = vmatpush2.bf16.msra.mxu0 %v2587
    %3137 = vmatprep.subr.bf16.mxu0 %v2580
    %3138 = vmatpush2.bf16.msra.mxu0 %v2579
    %3139 = vmatprep.mubr.bf16.mxu0 %v1700
    %3140 = vmatmul.mubr.bf16.gmra.mxu0 %v1699
    %v3141 = vpop.f32.mrf.mxu0
    %v3142 = vadd.f32 %v1716, %v3141
    %v3143 = vpop.f32.mrf.mxu0
    %v3144 = vadd.f32 %v1720, %v3143
    %v3145 = vpop.f32.mrf.mxu0
    %v3146 = vpop.f32.mrf.mxu0
    %3147 = vdwg.mxu0
    %3148 = vmatprep.subr.bf16.mxu0 %v2700
    %3149 = vmatpush1.bf16.msra.mxu0 %v2699
    %3150 = vmatprep.subr.bf16.mxu0 %v2692
    %3151 = vmatpush1.bf16.msra.mxu0 %v2691
    %3152 = vmatprep.subr.bf16.mxu0 %v2684
    %3153 = vmatpush1.bf16.msra.mxu0 %v2683
    %3154 = vmatprep.subr.bf16.mxu0 %v2676
    %3155 = vmatpush1.bf16.msra.mxu0 %v2675
    %3156 = vmatprep.subr.bf16.mxu0 %v2668
    %3157 = vmatpush1.bf16.msra.mxu0 %v2667
    %3158 = vmatprep.subr.bf16.mxu0 %v2660
    %3159 = vmatpush1.bf16.msra.mxu0 %v2659
    %3160 = vmatprep.subr.bf16.mxu0 %v2652
    %3161 = vmatpush1.bf16.msra.mxu0 %v2651
    %3162 = vmatprep.subr.bf16.mxu0 %v2644
    %3163 = vmatpush1.bf16.msra.mxu0 %v2643
    %3164 = vmatprep.subr.bf16.mxu0 %v2764
    %3165 = vmatpush2.bf16.msra.mxu0 %v2763
    %3166 = vmatprep.subr.bf16.mxu0 %v2756
    %3167 = vmatpush2.bf16.msra.mxu0 %v2755
    %3168 = vmatprep.subr.bf16.mxu0 %v2748
    %3169 = vmatpush2.bf16.msra.mxu0 %v2747
    %3170 = vmatprep.subr.bf16.mxu0 %v2740
    %3171 = vmatpush2.bf16.msra.mxu0 %v2739
    %3172 = vmatprep.subr.bf16.mxu0 %v2732
    %3173 = vmatpush2.bf16.msra.mxu0 %v2731
    %3174 = vmatprep.subr.bf16.mxu0 %v2724
    %3175 = vmatpush2.bf16.msra.mxu0 %v2723
    %3176 = vmatprep.subr.bf16.mxu0 %v2716
    %3177 = vmatpush2.bf16.msra.mxu0 %v2715
    %3178 = vmatprep.subr.bf16.mxu0 %v2708
    %3179 = vmatpush2.bf16.msra.mxu0 %v2707
    %3180 = vmatprep.mubr.bf16.mxu0 %v1702
    %3181 = vmatmul.mubr.bf16.gmra.mxu0 %v1701
    %v3182 = vpop.f32.mrf.mxu0
    %v3183 = vadd.f32 %v3142, %v3182
    %v3184 = vpop.f32.mrf.mxu0
    %v3185 = vadd.f32 %v3144, %v3184
    %v3186 = vpop.f32.mrf.mxu0
    %v3187 = vpop.f32.mrf.mxu0
    %3188 = vdwg.mxu0
    %3189 = vmatprep.subr.bf16.mxu0 %v2574
    %3190 = vmatpush1.bf16.msra.mxu0 %v2573
    %3191 = vmatprep.subr.bf16.mxu0 %v2566
    %3192 = vmatpush1.bf16.msra.mxu0 %v2565
    %3193 = vmatprep.subr.bf16.mxu0 %v2558
    %3194 = vmatpush1.bf16.msra.mxu0 %v2557
    %3195 = vmatprep.subr.bf16.mxu0 %v2550
    %3196 = vmatpush1.bf16.msra.mxu0 %v2549
    %3197 = vmatprep.subr.bf16.mxu0 %v2542
    %3198 = vmatpush1.bf16.msra.mxu0 %v2541
    %3199 = vmatprep.subr.bf16.mxu0 %v2534
    %3200 = vmatpush1.bf16.msra.mxu0 %v2533
    %3201 = vmatprep.subr.bf16.mxu0 %v2526
    %3202 = vmatpush1.bf16.msra.mxu0 %v2525
    %3203 = vmatprep.subr.bf16.mxu0 %v2518
    %3204 = vmatpush1.bf16.msra.mxu0 %v2517
    %3205 = vmatprep.subr.bf16.mxu0 %v2638
    %3206 = vmatpush2.bf16.msra.mxu0 %v2637
    %3207 = vmatprep.subr.bf16.mxu0 %v2630
    %3208 = vmatpush2.bf16.msra.mxu0 %v2629
    %3209 = vmatprep.subr.bf16.mxu0 %v2622
    %3210 = vmatpush2.bf16.msra.mxu0 %v2621
    %3211 = vmatprep.subr.bf16.mxu0 %v2614
    %3212 = vmatpush2.bf16.msra.mxu0 %v2613
    %3213 = vmatprep.subr.bf16.mxu0 %v2606
    %3214 = vmatpush2.bf16.msra.mxu0 %v2605
    %3215 = vmatprep.subr.bf16.mxu0 %v2598
    %3216 = vmatpush2.bf16.msra.mxu0 %v2597
    %3217 = vmatprep.subr.bf16.mxu0 %v2590
    %3218 = vmatpush2.bf16.msra.mxu0 %v2589
    %3219 = vmatprep.subr.bf16.mxu0 %v2582
    %3220 = vmatpush2.bf16.msra.mxu0 %v2581
    %3221 = vmatprep.mubr.bf16.mxu0 %v1700
    %3222 = vmatmul.mubr.bf16.gmra.mxu0 %v1699
    %v3223 = vpop.f32.mrf.mxu0
    %v3224 = vadd.f32 %v1724, %v3223
    %v3225 = vpop.f32.mrf.mxu0
    %v3226 = vadd.f32 %v1728, %v3225
    %v3227 = vpop.f32.mrf.mxu0
    %v3228 = vpop.f32.mrf.mxu0
    %3229 = vdwg.mxu0
    %3230 = vmatprep.subr.bf16.mxu0 %v2702
    %3231 = vmatpush1.bf16.msra.mxu0 %v2701
    %3232 = vmatprep.subr.bf16.mxu0 %v2694
    %3233 = vmatpush1.bf16.msra.mxu0 %v2693
    %3234 = vmatprep.subr.bf16.mxu0 %v2686
    %3235 = vmatpush1.bf16.msra.mxu0 %v2685
    %3236 = vmatprep.subr.bf16.mxu0 %v2678
    %3237 = vmatpush1.bf16.msra.mxu0 %v2677
    %3238 = vmatprep.subr.bf16.mxu0 %v2670
    %3239 = vmatpush1.bf16.msra.mxu0 %v2669
    %3240 = vmatprep.subr.bf16.mxu0 %v2662
    %3241 = vmatpush1.bf16.msra.mxu0 %v2661
    %3242 = vmatprep.subr.bf16.mxu0 %v2654
    %3243 = vmatpush1.bf16.msra.mxu0 %v2653
    %3244 = vmatprep.subr.bf16.mxu0 %v2646
    %3245 = vmatpush1.bf16.msra.mxu0 %v2645
    %3246 = vmatprep.subr.bf16.mxu0 %v2766
    %3247 = vmatpush2.bf16.msra.mxu0 %v2765
    %3248 = vmatprep.subr.bf16.mxu0 %v2758
    %3249 = vmatpush2.bf16.msra.mxu0 %v2757
    %3250 = vmatprep.subr.bf16.mxu0 %v2750
    %3251 = vmatpush2.bf16.msra.mxu0 %v2749
    %3252 = vmatprep.subr.bf16.mxu0 %v2742
    %3253 = vmatpush2.bf16.msra.mxu0 %v2741
    %3254 = vmatprep.subr.bf16.mxu0 %v2734
    %3255 = vmatpush2.bf16.msra.mxu0 %v2733
    %3256 = vmatprep.subr.bf16.mxu0 %v2726
    %3257 = vmatpush2.bf16.msra.mxu0 %v2725
    %3258 = vmatprep.subr.bf16.mxu0 %v2718
    %3259 = vmatpush2.bf16.msra.mxu0 %v2717
    %3260 = vmatprep.subr.bf16.mxu0 %v2710
    %3261 = vmatpush2.bf16.msra.mxu0 %v2709
    %3262 = vmatprep.mubr.bf16.mxu0 %v1702
    %3263 = vmatmul.mubr.bf16.gmra.mxu0 %v1701
    %v3264 = vpop.f32.mrf.mxu0
    %v3265 = vadd.f32 %v3224, %v3264
    %v3266 = vpop.f32.mrf.mxu0
    %v3267 = vadd.f32 %v3226, %v3266
    %v3268 = vpop.f32.mrf.mxu0
    %v3269 = vpop.f32.mrf.mxu0
    %3270 = vdwg.mxu0
    %3271 = vmatprep.subr.bf16.mxu0 %v2576
    %3272 = vmatpush1.bf16.msra.mxu0 %v2575
    %3273 = vmatprep.subr.bf16.mxu0 %v2568
    %3274 = vmatpush1.bf16.msra.mxu0 %v2567
    %3275 = vmatprep.subr.bf16.mxu0 %v2560
    %3276 = vmatpush1.bf16.msra.mxu0 %v2559
    %3277 = vmatprep.subr.bf16.mxu0 %v2552
    %3278 = vmatpush1.bf16.msra.mxu0 %v2551
    %3279 = vmatprep.subr.bf16.mxu0 %v2544
    %3280 = vmatpush1.bf16.msra.mxu0 %v2543
    %3281 = vmatprep.subr.bf16.mxu0 %v2536
    %3282 = vmatpush1.bf16.msra.mxu0 %v2535
    %3283 = vmatprep.subr.bf16.mxu0 %v2528
    %3284 = vmatpush1.bf16.msra.mxu0 %v2527
    %3285 = vmatprep.subr.bf16.mxu0 %v2520
    %3286 = vmatpush1.bf16.msra.mxu0 %v2519
    %3287 = vmatprep.subr.bf16.mxu0 %v2640
    %3288 = vmatpush2.bf16.msra.mxu0 %v2639
    %3289 = vmatprep.subr.bf16.mxu0 %v2632
    %3290 = vmatpush2.bf16.msra.mxu0 %v2631
    %3291 = vmatprep.subr.bf16.mxu0 %v2624
    %3292 = vmatpush2.bf16.msra.mxu0 %v2623
    %3293 = vmatprep.subr.bf16.mxu0 %v2616
    %3294 = vmatpush2.bf16.msra.mxu0 %v2615
    %3295 = vmatprep.subr.bf16.mxu0 %v2608
    %3296 = vmatpush2.bf16.msra.mxu0 %v2607
    %3297 = vmatprep.subr.bf16.mxu0 %v2600
    %3298 = vmatpush2.bf16.msra.mxu0 %v2599
    %3299 = vmatprep.subr.bf16.mxu0 %v2592
    %3300 = vmatpush2.bf16.msra.mxu0 %v2591
    %3301 = vmatprep.subr.bf16.mxu0 %v2584
    %3302 = vmatpush2.bf16.msra.mxu0 %v2583
    %3303 = vmatprep.mubr.bf16.mxu0 %v1700
    %3304 = vmatmul.mubr.bf16.gmra.mxu0 %v1699
    %v3305 = vpop.f32.mrf.mxu0
    %v3306 = vadd.f32 %v1732, %v3305
    %v3307 = vpop.f32.mrf.mxu0
    %v3308 = vadd.f32 %v1736, %v3307
    %v3309 = vpop.f32.mrf.mxu0
    %v3310 = vpop.f32.mrf.mxu0
    %3311 = vdwg.mxu0
    %3312 = vmatprep.subr.bf16.mxu0 %v2704
    %3313 = vmatpush1.bf16.msra.mxu0 %v2703
    %3314 = vmatprep.subr.bf16.mxu0 %v2696
    %3315 = vmatpush1.bf16.msra.mxu0 %v2695
    %3316 = vmatprep.subr.bf16.mxu0 %v2688
    %3317 = vmatpush1.bf16.msra.mxu0 %v2687
    %3318 = vmatprep.subr.bf16.mxu0 %v2680
    %3319 = vmatpush1.bf16.msra.mxu0 %v2679
    %3320 = vmatprep.subr.bf16.mxu0 %v2672
    %3321 = vmatpush1.bf16.msra.mxu0 %v2671
    %3322 = vmatprep.subr.bf16.mxu0 %v2664
    %3323 = vmatpush1.bf16.msra.mxu0 %v2663
    %3324 = vmatprep.subr.bf16.mxu0 %v2656
    %3325 = vmatpush1.bf16.msra.mxu0 %v2655
    %3326 = vmatprep.subr.bf16.mxu0 %v2648
    %3327 = vmatpush1.bf16.msra.mxu0 %v2647
    %3328 = vmatprep.subr.bf16.mxu0 %v2768
    %3329 = vmatpush2.bf16.msra.mxu0 %v2767
    %3330 = vmatprep.subr.bf16.mxu0 %v2760
    %3331 = vmatpush2.bf16.msra.mxu0 %v2759
    %3332 = vmatprep.subr.bf16.mxu0 %v2752
    %3333 = vmatpush2.bf16.msra.mxu0 %v2751
    %3334 = vmatprep.subr.bf16.mxu0 %v2744
    %3335 = vmatpush2.bf16.msra.mxu0 %v2743
    %3336 = vmatprep.subr.bf16.mxu0 %v2736
    %3337 = vmatpush2.bf16.msra.mxu0 %v2735
    %3338 = vmatprep.subr.bf16.mxu0 %v2728
    %3339 = vmatpush2.bf16.msra.mxu0 %v2727
    %3340 = vmatprep.subr.bf16.mxu0 %v2720
    %3341 = vmatpush2.bf16.msra.mxu0 %v2719
    %3342 = vmatprep.subr.bf16.mxu0 %v2712
    %3343 = vmatpush2.bf16.msra.mxu0 %v2711
    %3344 = vmatprep.mubr.bf16.mxu0 %v1702
    %3345 = vmatmul.mubr.bf16.gmra.mxu0 %v1701
    %v3346 = vpop.f32.mrf.mxu0
    %v3347 = vadd.f32 %v3306, %v3346
    %v3348 = vpop.f32.mrf.mxu0
    %v3349 = vadd.f32 %v3308, %v3348
    %v3350 = vpop.f32.mrf.mxu0
    %v3351 = vpop.f32.mrf.mxu0
    %3352 = vdwg.mxu0
    %v3353 = vrot.slane %v3101, 4
    %v3354 = vadd.f32 %v3101, %v3353
    %v3355 = vrot.slane %v3354, 2
    %v3356 = vadd.f32 %v3354, %v3355
    %v3357 = vrot.slane %v3356, 1
    %v3358 = vadd.f32 %v3356, %v3357
    %v3359 = vrot.slane %v3103, 4
    %v3360 = vadd.f32 %v3103, %v3359
    %v3361 = vrot.slane %v3360, 2
    %v3362 = vadd.f32 %v3360, %v3361
    %v3363 = vrot.slane %v3362, 1
    %v3364 = vadd.f32 %v3362, %v3363
    %v3365 = vrot.slane %v3183, 4
    %v3366 = vadd.f32 %v3183, %v3365
    %v3367 = vrot.slane %v3366, 2
    %v3368 = vadd.f32 %v3366, %v3367
    %v3369 = vrot.slane %v3368, 1
    %v3370 = vadd.f32 %v3368, %v3369
    %v3371 = vrot.slane %v3185, 4
    %v3372 = vadd.f32 %v3185, %v3371
    %v3373 = vrot.slane %v3372, 2
    %v3374 = vadd.f32 %v3372, %v3373
    %v3375 = vrot.slane %v3374, 1
    %v3376 = vadd.f32 %v3374, %v3375
    %v3377 = vrot.slane %v3265, 4
    %v3378 = vadd.f32 %v3265, %v3377
    %v3379 = vrot.slane %v3378, 2
    %v3380 = vadd.f32 %v3378, %v3379
    %v3381 = vrot.slane %v3380, 1
    %v3382 = vadd.f32 %v3380, %v3381
    %v3383 = vrot.slane %v3267, 4
    %v3384 = vadd.f32 %v3267, %v3383
    %v3385 = vrot.slane %v3384, 2
    %v3386 = vadd.f32 %v3384, %v3385
    %v3387 = vrot.slane %v3386, 1
    %v3388 = vadd.f32 %v3386, %v3387
    %v3389 = vrot.slane %v3347, 4
    %v3390 = vadd.f32 %v3347, %v3389
    %v3391 = vrot.slane %v3390, 2
    %v3392 = vadd.f32 %v3390, %v3391
    %v3393 = vrot.slane %v3392, 1
    %v3394 = vadd.f32 %v3392, %v3393
    %v3395 = vrot.slane %v3349, 4
    %v3396 = vadd.f32 %v3349, %v3395
    %v3397 = vrot.slane %v3396, 2
    %v3398 = vadd.f32 %v3396, %v3397
    %v3399 = vrot.slane %v3398, 1
    %v3400 = vadd.f32 %v3398, %v3399
    %v3401 = vmul.f32 %v3358, %v644
    %v3402 = vmul.f32 %v3364, %v644
    %v3403 = vmul.f32 %v3370, %v644
    %v3404 = vmul.f32 %v3376, %v644
    %v3405 = vmul.f32 %v3382, %v644
    %v3406 = vmul.f32 %v3388, %v644
    %v3407 = vmul.f32 %v3394, %v644
    %v3408 = vmul.f32 %v3400, %v644
    %v3409 = vmul.f32 %v3101, %v3101
    %v3410 = vmul.f32 %v3103, %v3103
    %v3411 = vmul.f32 %v3183, %v3183
    %v3412 = vmul.f32 %v3185, %v3185
    %v3413 = vmul.f32 %v3265, %v3265
    %v3414 = vmul.f32 %v3267, %v3267
    %v3415 = vmul.f32 %v3347, %v3347
    %v3416 = vmul.f32 %v3349, %v3349
    %v3417 = vrot.slane %v3409, 4
    %v3418 = vadd.f32 %v3409, %v3417
    %v3419 = vrot.slane %v3418, 2
    %v3420 = vadd.f32 %v3418, %v3419
    %v3421 = vrot.slane %v3420, 1
    %v3422 = vadd.f32 %v3420, %v3421
    %v3423 = vrot.slane %v3410, 4
    %v3424 = vadd.f32 %v3410, %v3423
    %v3425 = vrot.slane %v3424, 2
    %v3426 = vadd.f32 %v3424, %v3425
    %v3427 = vrot.slane %v3426, 1
    %v3428 = vadd.f32 %v3426, %v3427
    %v3429 = vrot.slane %v3411, 4
    %v3430 = vadd.f32 %v3411, %v3429
    %v3431 = vrot.slane %v3430, 2
    %v3432 = vadd.f32 %v3430, %v3431
    %v3433 = vrot.slane %v3432, 1
    %v3434 = vadd.f32 %v3432, %v3433
    %v3435 = vrot.slane %v3412, 4
    %v3436 = vadd.f32 %v3412, %v3435
    %v3437 = vrot.slane %v3436, 2
    %v3438 = vadd.f32 %v3436, %v3437
    %v3439 = vrot.slane %v3438, 1
    %v3440 = vadd.f32 %v3438, %v3439
    %v3441 = vrot.slane %v3413, 4
    %v3442 = vadd.f32 %v3413, %v3441
    %v3443 = vrot.slane %v3442, 2
    %v3444 = vadd.f32 %v3442, %v3443
    %v3445 = vrot.slane %v3444, 1
    %v3446 = vadd.f32 %v3444, %v3445
    %v3447 = vrot.slane %v3414, 4
    %v3448 = vadd.f32 %v3414, %v3447
    %v3449 = vrot.slane %v3448, 2
    %v3450 = vadd.f32 %v3448, %v3449
    %v3451 = vrot.slane %v3450, 1
    %v3452 = vadd.f32 %v3450, %v3451
    %v3453 = vrot.slane %v3415, 4
    %v3454 = vadd.f32 %v3415, %v3453
    %v3455 = vrot.slane %v3454, 2
    %v3456 = vadd.f32 %v3454, %v3455
    %v3457 = vrot.slane %v3456, 1
    %v3458 = vadd.f32 %v3456, %v3457
    %v3459 = vrot.slane %v3416, 4
    %v3460 = vadd.f32 %v3416, %v3459
    %v3461 = vrot.slane %v3460, 2
    %v3462 = vadd.f32 %v3460, %v3461
    %v3463 = vrot.slane %v3462, 1
    %v3464 = vadd.f32 %v3462, %v3463
    %v3465 = vmul.f32 %v3422, %v644
    %v3466 = vmul.f32 %v3428, %v644
    %v3467 = vmul.f32 %v3434, %v644
    %v3468 = vmul.f32 %v3440, %v644
    %v3469 = vmul.f32 %v3446, %v644
    %v3470 = vmul.f32 %v3452, %v644
    %v3471 = vmul.f32 %v3458, %v644
    %v3472 = vmul.f32 %v3464, %v644
    %v3473 = vmul.f32 %v3401, %v3401
    %v3474 = vmul.f32 %v3402, %v3402
    %v3475 = vmul.f32 %v3403, %v3403
    %v3476 = vmul.f32 %v3404, %v3404
    %v3477 = vmul.f32 %v3405, %v3405
    %v3478 = vmul.f32 %v3406, %v3406
    %v3479 = vmul.f32 %v3407, %v3407
    %v3480 = vmul.f32 %v3408, %v3408
    %v3481 = vsub.f32 %v3465, %v3473
    %v3482 = vsub.f32 %v3466, %v3474
    %v3483 = vsub.f32 %v3467, %v3475
    %v3484 = vsub.f32 %v3468, %v3476
    %v3485 = vsub.f32 %v3469, %v3477
    %v3486 = vsub.f32 %v3470, %v3478
    %v3487 = vsub.f32 %v3471, %v3479
    %v3488 = vsub.f32 %v3472, %v3480
    %v3489 = vld [vmem:[#allocation21] sm:$0xff]
    %v3490 = vadd.f32 %v3481, 0.8
    %v3491 = vadd.f32 %v3482, 0.8
    %v3492 = vadd.f32 %v3483, 0.8
    %v3493 = vadd.f32 %v3484, 0.8
    %v3494 = vadd.f32 %v3485, 0.8
    %v3495 = vadd.f32 %v3486, 0.8
    %v3496 = vadd.f32 %v3487, 0.8
    %v3497 = vadd.f32 %v3488, 0.8
    %v3498 = vrsqrt.pop %v3490
    %v3499 = vrsqrt.pop %v3491
    %v3500 = vrsqrt.pop %v3492
    %v3501 = vrsqrt.pop %v3493
    %v3502 = vrsqrt.pop %v3494
    %v3503 = vrsqrt.pop %v3495
    %v3504 = vrsqrt.pop %v3496
    %v3505 = vrsqrt.pop %v3497
    %v3514 = vcombine.low %v3498, %v3499
    %v3515 = vcombine.low %v3500, %v3501
    %v3516 = vcombine.low %v3502, %v3503
    %v3517 = vcombine.low %v3504, %v3505
    %v3519 = vunpack.c.l.s4 1966171168
    %v3520 = vunpack.c.0.s8 %v3519
    %v3521 = vlaneseq
    %v3522 = vshrl.u32 %v3521, 7
    %v3523 = vsub.s32 %v3520, %v3522
    %v3524 = vrot.slane %v3514, %v3523
    %v3526 = vunpack.c.l.s4 1966171168
    %v3527 = vunpack.c.0.s8 %v3526
    %v3528 = vlaneseq
    %v3529 = vshrl.u32 %v3528, 7
    %v3530 = vsub.s32 %v3527, %v3529
    %v3531 = vrot.slane %v3515, %v3530
    %v3533 = vunpack.c.l.s4 1966171168
    %v3534 = vunpack.c.0.s8 %v3533
    %v3535 = vlaneseq
    %v3536 = vshrl.u32 %v3535, 7
    %v3537 = vsub.s32 %v3534, %v3536
    %v3538 = vrot.slane %v3516, %v3537
    %v3540 = vunpack.c.l.s4 1966171168
    %v3541 = vunpack.c.0.s8 %v3540
    %v3542 = vlaneseq
    %v3543 = vshrl.u32 %v3542, 7
    %v3544 = vsub.s32 %v3541, %v3543
    %v3545 = vrot.slane %v3517, %v3544
    %v3546 = vcombine.low %v3524, %v3531
    %v3547 = vcombine.low %v3538, %v3545
    %v3549 = vunpack.c.l.s4 1966171168
    %v3550 = vunpack.c.0.s8 %v3549
    %v3551 = vlaneseq
    %v3552 = vshrl.u32 %v3551, 7
    %v3553 = vsub.s32 %v3550, %v3552
    %v3554 = vrot.slane %v3546, %v3553
    %v3556 = vunpack.c.l.s4 1966171168
    %v3557 = vunpack.c.0.s8 %v3556
    %v3558 = vlaneseq
    %v3559 = vshrl.u32 %v3558, 7
    %v3560 = vsub.s32 %v3557, %v3559
    %v3561 = vrot.slane %v3547, %v3560
    %v3562 = vcombine.low %v3554, %v3561
    %v3564 = vmul.f32 %v3489, %v3562
    %v3565 = vld [vmem:[#allocation22] sm:$0xff]
    %v3567 = vlaneseq
    %v3568 = vshrl.u32 %v3567, 7
    %v3569 = vsub.s32 0, %v3568
    %v3570 = vrot.slane %v3564, %v3569
    %v3571 = vlaneseq
    %v3572 = vshrl.u32 %v3571, 7
    %v3573 = vsub.s32 1, %v3572
    %v3574 = vrot.slane %v3564, %v3573
    %v3575 = vlaneseq
    %v3576 = vshrl.u32 %v3575, 7
    %v3577 = vsub.s32 2, %v3576
    %v3578 = vrot.slane %v3564, %v3577
    %v3579 = vlaneseq
    %v3580 = vshrl.u32 %v3579, 7
    %v3581 = vsub.s32 3, %v3580
    %v3582 = vrot.slane %v3564, %v3581
    %v3583 = vlaneseq
    %v3584 = vshrl.u32 %v3583, 7
    %v3585 = vsub.s32 4, %v3584
    %v3586 = vrot.slane %v3564, %v3585
    %v3587 = vlaneseq
    %v3588 = vshrl.u32 %v3587, 7
    %v3589 = vsub.s32 5, %v3588
    %v3590 = vrot.slane %v3564, %v3589
    %v3591 = vlaneseq
    %v3592 = vshrl.u32 %v3591, 7
    %v3593 = vsub.s32 6, %v3592
    %v3594 = vrot.slane %v3564, %v3593
    %v3595 = vlaneseq
    %v3596 = vshrl.u32 %v3595, 7
    %v3597 = vsub.s32 7, %v3596
    %v3598 = vrot.slane %v3564, %v3597
    %v3607 = vmul.f32 %v3401, %v3570
    %v3608 = vmul.f32 %v3402, %v3574
    %v3609 = vmul.f32 %v3403, %v3578
    %v3610 = vmul.f32 %v3404, %v3582
    %v3611 = vmul.f32 %v3405, %v3586
    %v3612 = vmul.f32 %v3406, %v3590
    %v3613 = vmul.f32 %v3407, %v3594
    %v3614 = vmul.f32 %v3408, %v3598
    %v3623 = vcombine.low %v3607, %v3608
    %v3624 = vcombine.low %v3609, %v3610
    %v3625 = vcombine.low %v3611, %v3612
    %v3626 = vcombine.low %v3613, %v3614
    %v3628 = vunpack.c.l.s4 1966171168
    %v3629 = vunpack.c.0.s8 %v3628
    %v3630 = vlaneseq
    %v3631 = vshrl.u32 %v3630, 7
    %v3632 = vsub.s32 %v3629, %v3631
    %v3633 = vrot.slane %v3623, %v3632
    %v3635 = vunpack.c.l.s4 1966171168
    %v3636 = vunpack.c.0.s8 %v3635
    %v3637 = vlaneseq
    %v3638 = vshrl.u32 %v3637, 7
    %v3639 = vsub.s32 %v3636, %v3638
    %v3640 = vrot.slane %v3624, %v3639
    %v3642 = vunpack.c.l.s4 1966171168
    %v3643 = vunpack.c.0.s8 %v3642
    %v3644 = vlaneseq
    %v3645 = vshrl.u32 %v3644, 7
    %v3646 = vsub.s32 %v3643, %v3645
    %v3647 = vrot.slane %v3625, %v3646
    %v3649 = vunpack.c.l.s4 1966171168
    %v3650 = vunpack.c.0.s8 %v3649
    %v3651 = vlaneseq
    %v3652 = vshrl.u32 %v3651, 7
    %v3653 = vsub.s32 %v3650, %v3652
    %v3654 = vrot.slane %v3626, %v3653
    %v3655 = vcombine.low %v3633, %v3640
    %v3656 = vcombine.low %v3647, %v3654
    %v3658 = vunpack.c.l.s4 1966171168
    %v3659 = vunpack.c.0.s8 %v3658
    %v3660 = vlaneseq
    %v3661 = vshrl.u32 %v3660, 7
    %v3662 = vsub.s32 %v3659, %v3661
    %v3663 = vrot.slane %v3655, %v3662
    %v3665 = vunpack.c.l.s4 1966171168
    %v3666 = vunpack.c.0.s8 %v3665
    %v3667 = vlaneseq
    %v3668 = vshrl.u32 %v3667, 7
    %v3669 = vsub.s32 %v3666, %v3668
    %v3670 = vrot.slane %v3656, %v3669
    %v3671 = vcombine.low %v3663, %v3670
    %v3673 = vsub.f32 %v3565, %v3671
    %v3674 = vmul.f32 %v3101, %v3570
    %v3675 = vmul.f32 %v3103, %v3574
    %v3676 = vmul.f32 %v3183, %v3578
    %v3677 = vmul.f32 %v3185, %v3582
    %v3678 = vmul.f32 %v3265, %v3586
    %v3679 = vmul.f32 %v3267, %v3590
    %v3680 = vmul.f32 %v3347, %v3594
    %v3681 = vmul.f32 %v3349, %v3598
    %v3683 = vlaneseq
    %v3684 = vshrl.u32 %v3683, 7
    %v3685 = vsub.s32 0, %v3684
    %v3686 = vrot.slane %v3673, %v3685
    %v3687 = vlaneseq
    %v3688 = vshrl.u32 %v3687, 7
    %v3689 = vsub.s32 1, %v3688
    %v3690 = vrot.slane %v3673, %v3689
    %v3691 = vlaneseq
    %v3692 = vshrl.u32 %v3691, 7
    %v3693 = vsub.s32 2, %v3692
    %v3694 = vrot.slane %v3673, %v3693
    %v3695 = vlaneseq
    %v3696 = vshrl.u32 %v3695, 7
    %v3697 = vsub.s32 3, %v3696
    %v3698 = vrot.slane %v3673, %v3697
    %v3699 = vlaneseq
    %v3700 = vshrl.u32 %v3699, 7
    %v3701 = vsub.s32 4, %v3700
    %v3702 = vrot.slane %v3673, %v3701
    %v3703 = vlaneseq
    %v3704 = vshrl.u32 %v3703, 7
    %v3705 = vsub.s32 5, %v3704
    %v3706 = vrot.slane %v3673, %v3705
    %v3707 = vlaneseq
    %v3708 = vshrl.u32 %v3707, 7
    %v3709 = vsub.s32 6, %v3708
    %v3710 = vrot.slane %v3673, %v3709
    %v3711 = vlaneseq
    %v3712 = vshrl.u32 %v3711, 7
    %v3713 = vsub.s32 7, %v3712
    %v3714 = vrot.slane %v3673, %v3713
    %v3723 = vadd.f32 %v3674, %v3686
    %v3724 = vadd.f32 %v3675, %v3690
    %v3725 = vadd.f32 %v3676, %v3694
    %v3726 = vadd.f32 %v3677, %v3698
    %v3727 = vadd.f32 %v3678, %v3702
    %v3728 = vadd.f32 %v3679, %v3706
    %v3729 = vadd.f32 %v3680, %v3710
    %v3730 = vadd.f32 %v3681, %v3714
    %vm3731 = vcmp.gt.f32.partialorder %v3723, 0.0
    %vm3732 = vcmp.gt.f32.partialorder %v3724, 0.0
    %vm3733 = vcmp.gt.f32.partialorder %v3725, 0.0
    %vm3734 = vcmp.gt.f32.partialorder %v3726, 0.0
    %vm3735 = vcmp.gt.f32.partialorder %v3727, 0.0
    %vm3736 = vcmp.gt.f32.partialorder %v3728, 0.0
    %vm3737 = vcmp.gt.f32.partialorder %v3729, 0.0
    %vm3738 = vcmp.gt.f32.partialorder %v3730, 0.0
    %v3739 = vmul.f32 %v3723, 0.2
    %v3740 = vmul.f32 %v3724, 0.2
    %v3741 = vmul.f32 %v3725, 0.2
    %v3742 = vmul.f32 %v3726, 0.2
    %v3743 = vmul.f32 %v3727, 0.2
    %v3744 = vmul.f32 %v3728, 0.2
    %v3745 = vmul.f32 %v3729, 0.2
    %v3746 = vmul.f32 %v3730, 0.2
    %v3747 = vsel %vm3731, %v3723, %v3739
    %v3748 = vsel %vm3732, %v3724, %v3740
    %v3749 = vsel %vm3733, %v3725, %v3741
    %v3750 = vsel %vm3734, %v3726, %v3742
    %v3751 = vsel %vm3735, %v3727, %v3743
    %v3752 = vsel %vm3736, %v3728, %v3744
    %v3753 = vsel %vm3737, %v3729, %v3745
    %v3754 = vsel %vm3738, %v3730, %v3746
    %s3755 = smul.u32 4, 128
    %s3756 = smul.u32 %s3755, 2
    %s3757 = sshll.u32 %s3756, 4
    %3758 = dma.done %s224, %s3757
    %v3759 = vld [vmem:[#allocation3] sm:$0xff]
    %v3760 = vld [vmem:[#allocation3 + $0x8] sm:$0xff]
    %v3761 = vld [vmem:[#allocation3 + $0x10] sm:$0xff]
    %v3762 = vld [vmem:[#allocation3 + $0x18] sm:$0xff]
    %v3763 = vld [vmem:[#allocation3 + $0x20] sm:$0xff]
    %v3764 = vld [vmem:[#allocation3 + $0x28] sm:$0xff]
    %v3765 = vld [vmem:[#allocation3 + $0x30] sm:$0xff]
    %v3766 = vld [vmem:[#allocation3 + $0x38] sm:$0xff]
    %v3767 = vld [vmem:[#allocation3 + $0x40] sm:$0xff]
    %v3768 = vld [vmem:[#allocation3 + $0x48] sm:$0xff]
    %v3769 = vld [vmem:[#allocation3 + $0x50] sm:$0xff]
    %v3770 = vld [vmem:[#allocation3 + $0x58] sm:$0xff]
    %v3771 = vld [vmem:[#allocation3 + $0x60] sm:$0xff]
    %v3772 = vld [vmem:[#allocation3 + $0x68] sm:$0xff]
    %v3773 = vld [vmem:[#allocation3 + $0x70] sm:$0xff]
    %v3774 = vld [vmem:[#allocation3 + $0x78] sm:$0xff]
    %v3775 = vld [vmem:[#allocation3 + $0x80] sm:$0xff]
    %v3776 = vld [vmem:[#allocation3 + $0x88] sm:$0xff]
    %v3777 = vld [vmem:[#allocation3 + $0x90] sm:$0xff]
    %v3778 = vld [vmem:[#allocation3 + $0x98] sm:$0xff]
    %v3779 = vld [vmem:[#allocation3 + $0xa0] sm:$0xff]
    %v3780 = vld [vmem:[#allocation3 + $0xa8] sm:$0xff]
    %v3781 = vld [vmem:[#allocation3 + $0xb0] sm:$0xff]
    %v3782 = vld [vmem:[#allocation3 + $0xb8] sm:$0xff]
    %v3783 = vld [vmem:[#allocation3 + $0xc0] sm:$0xff]
    %v3784 = vld [vmem:[#allocation3 + $0xc8] sm:$0xff]
    %v3785 = vld [vmem:[#allocation3 + $0xd0] sm:$0xff]
    %v3786 = vld [vmem:[#allocation3 + $0xd8] sm:$0xff]
    %v3787 = vld [vmem:[#allocation3 + $0xe0] sm:$0xff]
    %v3788 = vld [vmem:[#allocation3 + $0xe8] sm:$0xff]
    %v3789 = vld [vmem:[#allocation3 + $0xf0] sm:$0xff]
    %v3790 = vld [vmem:[#allocation3 + $0xf8] sm:$0xff]
    %v3791 = vld [vmem:[#allocation3 + $0x100] sm:$0xff]
    %v3792 = vld [vmem:[#allocation3 + $0x108] sm:$0xff]
    %v3793 = vld [vmem:[#allocation3 + $0x110] sm:$0xff]
    %v3794 = vld [vmem:[#allocation3 + $0x118] sm:$0xff]
    %v3795 = vld [vmem:[#allocation3 + $0x120] sm:$0xff]
    %v3796 = vld [vmem:[#allocation3 + $0x128] sm:$0xff]
    %v3797 = vld [vmem:[#allocation3 + $0x130] sm:$0xff]
    %v3798 = vld [vmem:[#allocation3 + $0x138] sm:$0xff]
    %v3799 = vld [vmem:[#allocation3 + $0x140] sm:$0xff]
    %v3800 = vld [vmem:[#allocation3 + $0x148] sm:$0xff]
    %v3801 = vld [vmem:[#allocation3 + $0x150] sm:$0xff]
    %v3802 = vld [vmem:[#allocation3 + $0x158] sm:$0xff]
    %v3803 = vld [vmem:[#allocation3 + $0x160] sm:$0xff]
    %v3804 = vld [vmem:[#allocation3 + $0x168] sm:$0xff]
    %v3805 = vld [vmem:[#allocation3 + $0x170] sm:$0xff]
    %v3806 = vld [vmem:[#allocation3 + $0x178] sm:$0xff]
    %v3807 = vld [vmem:[#allocation3 + $0x180] sm:$0xff]
    %v3808 = vld [vmem:[#allocation3 + $0x188] sm:$0xff]
    %v3809 = vld [vmem:[#allocation3 + $0x190] sm:$0xff]
    %v3810 = vld [vmem:[#allocation3 + $0x198] sm:$0xff]
    %v3811 = vld [vmem:[#allocation3 + $0x1a0] sm:$0xff]
    %v3812 = vld [vmem:[#allocation3 + $0x1a8] sm:$0xff]
    %v3813 = vld [vmem:[#allocation3 + $0x1b0] sm:$0xff]
    %v3814 = vld [vmem:[#allocation3 + $0x1b8] sm:$0xff]
    %v3815 = vld [vmem:[#allocation3 + $0x1c0] sm:$0xff]
    %v3816 = vld [vmem:[#allocation3 + $0x1c8] sm:$0xff]
    %v3817 = vld [vmem:[#allocation3 + $0x1d0] sm:$0xff]
    %v3818 = vld [vmem:[#allocation3 + $0x1d8] sm:$0xff]
    %v3819 = vld [vmem:[#allocation3 + $0x1e0] sm:$0xff]
    %v3820 = vld [vmem:[#allocation3 + $0x1e8] sm:$0xff]
    %v3821 = vld [vmem:[#allocation3 + $0x1f0] sm:$0xff]
    %v3822 = vld [vmem:[#allocation3 + $0x1f8] sm:$0xff]
    %v3823 = vld [vmem:[#allocation3 + $0x200] sm:$0xff]
    %v3824 = vld [vmem:[#allocation3 + $0x208] sm:$0xff]
    %v3825 = vld [vmem:[#allocation3 + $0x210] sm:$0xff]
    %v3826 = vld [vmem:[#allocation3 + $0x218] sm:$0xff]
    %v3827 = vld [vmem:[#allocation3 + $0x220] sm:$0xff]
    %v3828 = vld [vmem:[#allocation3 + $0x228] sm:$0xff]
    %v3829 = vld [vmem:[#allocation3 + $0x230] sm:$0xff]
    %v3830 = vld [vmem:[#allocation3 + $0x238] sm:$0xff]
    %v3831 = vld [vmem:[#allocation3 + $0x240] sm:$0xff]
    %v3832 = vld [vmem:[#allocation3 + $0x248] sm:$0xff]
    %v3833 = vld [vmem:[#allocation3 + $0x250] sm:$0xff]
    %v3834 = vld [vmem:[#allocation3 + $0x258] sm:$0xff]
    %v3835 = vld [vmem:[#allocation3 + $0x260] sm:$0xff]
    %v3836 = vld [vmem:[#allocation3 + $0x268] sm:$0xff]
    %v3837 = vld [vmem:[#allocation3 + $0x270] sm:$0xff]
    %v3838 = vld [vmem:[#allocation3 + $0x278] sm:$0xff]
    %v3839 = vld [vmem:[#allocation3 + $0x280] sm:$0xff]
    %v3840 = vld [vmem:[#allocation3 + $0x288] sm:$0xff]
    %v3841 = vld [vmem:[#allocation3 + $0x290] sm:$0xff]
    %v3842 = vld [vmem:[#allocation3 + $0x298] sm:$0xff]
    %v3843 = vld [vmem:[#allocation3 + $0x2a0] sm:$0xff]
    %v3844 = vld [vmem:[#allocation3 + $0x2a8] sm:$0xff]
    %v3845 = vld [vmem:[#allocation3 + $0x2b0] sm:$0xff]
    %v3846 = vld [vmem:[#allocation3 + $0x2b8] sm:$0xff]
    %v3847 = vld [vmem:[#allocation3 + $0x2c0] sm:$0xff]
    %v3848 = vld [vmem:[#allocation3 + $0x2c8] sm:$0xff]
    %v3849 = vld [vmem:[#allocation3 + $0x2d0] sm:$0xff]
    %v3850 = vld [vmem:[#allocation3 + $0x2d8] sm:$0xff]
    %v3851 = vld [vmem:[#allocation3 + $0x2e0] sm:$0xff]
    %v3852 = vld [vmem:[#allocation3 + $0x2e8] sm:$0xff]
    %v3853 = vld [vmem:[#allocation3 + $0x2f0] sm:$0xff]
    %v3854 = vld [vmem:[#allocation3 + $0x2f8] sm:$0xff]
    %v3855 = vld [vmem:[#allocation3 + $0x300] sm:$0xff]
    %v3856 = vld [vmem:[#allocation3 + $0x308] sm:$0xff]
    %v3857 = vld [vmem:[#allocation3 + $0x310] sm:$0xff]
    %v3858 = vld [vmem:[#allocation3 + $0x318] sm:$0xff]
    %v3859 = vld [vmem:[#allocation3 + $0x320] sm:$0xff]
    %v3860 = vld [vmem:[#allocation3 + $0x328] sm:$0xff]
    %v3861 = vld [vmem:[#allocation3 + $0x330] sm:$0xff]
    %v3862 = vld [vmem:[#allocation3 + $0x338] sm:$0xff]
    %v3863 = vld [vmem:[#allocation3 + $0x340] sm:$0xff]
    %v3864 = vld [vmem:[#allocation3 + $0x348] sm:$0xff]
    %v3865 = vld [vmem:[#allocation3 + $0x350] sm:$0xff]
    %v3866 = vld [vmem:[#allocation3 + $0x358] sm:$0xff]
    %v3867 = vld [vmem:[#allocation3 + $0x360] sm:$0xff]
    %v3868 = vld [vmem:[#allocation3 + $0x368] sm:$0xff]
    %v3869 = vld [vmem:[#allocation3 + $0x370] sm:$0xff]
    %v3870 = vld [vmem:[#allocation3 + $0x378] sm:$0xff]
    %v3871 = vld [vmem:[#allocation3 + $0x380] sm:$0xff]
    %v3872 = vld [vmem:[#allocation3 + $0x388] sm:$0xff]
    %v3873 = vld [vmem:[#allocation3 + $0x390] sm:$0xff]
    %v3874 = vld [vmem:[#allocation3 + $0x398] sm:$0xff]
    %v3875 = vld [vmem:[#allocation3 + $0x3a0] sm:$0xff]
    %v3876 = vld [vmem:[#allocation3 + $0x3a8] sm:$0xff]
    %v3877 = vld [vmem:[#allocation3 + $0x3b0] sm:$0xff]
    %v3878 = vld [vmem:[#allocation3 + $0x3b8] sm:$0xff]
    %v3879 = vld [vmem:[#allocation3 + $0x3c0] sm:$0xff]
    %v3880 = vld [vmem:[#allocation3 + $0x3c8] sm:$0xff]
    %v3881 = vld [vmem:[#allocation3 + $0x3d0] sm:$0xff]
    %v3882 = vld [vmem:[#allocation3 + $0x3d8] sm:$0xff]
    %v3883 = vld [vmem:[#allocation3 + $0x3e0] sm:$0xff]
    %v3884 = vld [vmem:[#allocation3 + $0x3e8] sm:$0xff]
    %v3885 = vld [vmem:[#allocation3 + $0x3f0] sm:$0xff]
    %v3886 = vld [vmem:[#allocation3 + $0x3f8] sm:$0xff]
    %v3887 = vpack.c.bf16 %v3747, %v3747
    %v3888 = vpack.c.bf16 %v3748, %v3748
    %v3889 = vpack.c.bf16 %v3749, %v3749
    %v3890 = vpack.c.bf16 %v3750, %v3750
    %v3891 = vpack.c.bf16 %v3751, %v3751
    %v3892 = vpack.c.bf16 %v3752, %v3752
    %v3893 = vpack.c.bf16 %v3753, %v3753
    %v3894 = vpack.c.bf16 %v3754, %v3754
    %v3895 = vld [vmem:[#allocation24] sm:$0x3]
    %v3897 = vlaneseq
    %v3898 = vshrl.u32 %v3897, 7
    %v3899 = vsub.s32 0, %v3898
    %v3900 = vrot.slane %v3895, %v3899
    %v3901 = vlaneseq
    %v3902 = vshrl.u32 %v3901, 7
    %v3903 = vsub.s32 1, %v3902
    %v3904 = vrot.slane %v3895, %v3903
    %v4035 = vunpack.c.l.b16 %v3759
    %v4036 = vunpack.c.h.b16 %v3759
    %v4037 = vunpack.c.l.b16 %v3760
    %v4038 = vunpack.c.h.b16 %v3760
    %v4039 = vunpack.c.l.b16 %v3761
    %v4040 = vunpack.c.h.b16 %v3761
    %v4041 = vunpack.c.l.b16 %v3762
    %v4042 = vunpack.c.h.b16 %v3762
    %v4043 = vunpack.c.l.b16 %v3763
    %v4044 = vunpack.c.h.b16 %v3763
    %v4045 = vunpack.c.l.b16 %v3764
    %v4046 = vunpack.c.h.b16 %v3764
    %v4047 = vunpack.c.l.b16 %v3765
    %v4048 = vunpack.c.h.b16 %v3765
    %v4049 = vunpack.c.l.b16 %v3766
    %v4050 = vunpack.c.h.b16 %v3766
    %v4051 = vunpack.c.l.b16 %v3767
    %v4052 = vunpack.c.h.b16 %v3767
    %v4053 = vunpack.c.l.b16 %v3768
    %v4054 = vunpack.c.h.b16 %v3768
    %v4055 = vunpack.c.l.b16 %v3769
    %v4056 = vunpack.c.h.b16 %v3769
    %v4057 = vunpack.c.l.b16 %v3770
    %v4058 = vunpack.c.h.b16 %v3770
    %v4059 = vunpack.c.l.b16 %v3771
    %v4060 = vunpack.c.h.b16 %v3771
    %v4061 = vunpack.c.l.b16 %v3772
    %v4062 = vunpack.c.h.b16 %v3772
    %v4063 = vunpack.c.l.b16 %v3773
    %v4064 = vunpack.c.h.b16 %v3773
    %v4065 = vunpack.c.l.b16 %v3774
    %v4066 = vunpack.c.h.b16 %v3774
    %v4067 = vunpack.c.l.b16 %v3775
    %v4068 = vunpack.c.h.b16 %v3775
    %v4069 = vunpack.c.l.b16 %v3776
    %v4070 = vunpack.c.h.b16 %v3776
    %v4071 = vunpack.c.l.b16 %v3777
    %v4072 = vunpack.c.h.b16 %v3777
    %v4073 = vunpack.c.l.b16 %v3778
    %v4074 = vunpack.c.h.b16 %v3778
    %v4075 = vunpack.c.l.b16 %v3779
    %v4076 = vunpack.c.h.b16 %v3779
    %v4077 = vunpack.c.l.b16 %v3780
    %v4078 = vunpack.c.h.b16 %v3780
    %v4079 = vunpack.c.l.b16 %v3781
    %v4080 = vunpack.c.h.b16 %v3781
    %v4081 = vunpack.c.l.b16 %v3782
    %v4082 = vunpack.c.h.b16 %v3782
    %v4083 = vunpack.c.l.b16 %v3783
    %v4084 = vunpack.c.h.b16 %v3783
    %v4085 = vunpack.c.l.b16 %v3784
    %v4086 = vunpack.c.h.b16 %v3784
    %v4087 = vunpack.c.l.b16 %v3785
    %v4088 = vunpack.c.h.b16 %v3785
    %v4089 = vunpack.c.l.b16 %v3786
    %v4090 = vunpack.c.h.b16 %v3786
    %v4091 = vunpack.c.l.b16 %v3787
    %v4092 = vunpack.c.h.b16 %v3787
    %v4093 = vunpack.c.l.b16 %v3788
    %v4094 = vunpack.c.h.b16 %v3788
    %v4095 = vunpack.c.l.b16 %v3789
    %v4096 = vunpack.c.h.b16 %v3789
    %v4097 = vunpack.c.l.b16 %v3790
    %v4098 = vunpack.c.h.b16 %v3790
    %v4099 = vunpack.c.l.b16 %v3791
    %v4100 = vunpack.c.h.b16 %v3791
    %v4101 = vunpack.c.l.b16 %v3792
    %v4102 = vunpack.c.h.b16 %v3792
    %v4103 = vunpack.c.l.b16 %v3793
    %v4104 = vunpack.c.h.b16 %v3793
    %v4105 = vunpack.c.l.b16 %v3794
    %v4106 = vunpack.c.h.b16 %v3794
    %v4107 = vunpack.c.l.b16 %v3795
    %v4108 = vunpack.c.h.b16 %v3795
    %v4109 = vunpack.c.l.b16 %v3796
    %v4110 = vunpack.c.h.b16 %v3796
    %v4111 = vunpack.c.l.b16 %v3797
    %v4112 = vunpack.c.h.b16 %v3797
    %v4113 = vunpack.c.l.b16 %v3798
    %v4114 = vunpack.c.h.b16 %v3798
    %v4115 = vunpack.c.l.b16 %v3799
    %v4116 = vunpack.c.h.b16 %v3799
    %v4117 = vunpack.c.l.b16 %v3800
    %v4118 = vunpack.c.h.b16 %v3800
    %v4119 = vunpack.c.l.b16 %v3801
    %v4120 = vunpack.c.h.b16 %v3801
    %v4121 = vunpack.c.l.b16 %v3802
    %v4122 = vunpack.c.h.b16 %v3802
    %v4123 = vunpack.c.l.b16 %v3803
    %v4124 = vunpack.c.h.b16 %v3803
    %v4125 = vunpack.c.l.b16 %v3804
    %v4126 = vunpack.c.h.b16 %v3804
    %v4127 = vunpack.c.l.b16 %v3805
    %v4128 = vunpack.c.h.b16 %v3805
    %v4129 = vunpack.c.l.b16 %v3806
    %v4130 = vunpack.c.h.b16 %v3806
    %v4131 = vunpack.c.l.b16 %v3807
    %v4132 = vunpack.c.h.b16 %v3807
    %v4133 = vunpack.c.l.b16 %v3808
    %v4134 = vunpack.c.h.b16 %v3808
    %v4135 = vunpack.c.l.b16 %v3809
    %v4136 = vunpack.c.h.b16 %v3809
    %v4137 = vunpack.c.l.b16 %v3810
    %v4138 = vunpack.c.h.b16 %v3810
    %v4139 = vunpack.c.l.b16 %v3811
    %v4140 = vunpack.c.h.b16 %v3811
    %v4141 = vunpack.c.l.b16 %v3812
    %v4142 = vunpack.c.h.b16 %v3812
    %v4143 = vunpack.c.l.b16 %v3813
    %v4144 = vunpack.c.h.b16 %v3813
    %v4145 = vunpack.c.l.b16 %v3814
    %v4146 = vunpack.c.h.b16 %v3814
    %v4147 = vunpack.c.l.b16 %v3815
    %v4148 = vunpack.c.h.b16 %v3815
    %v4149 = vunpack.c.l.b16 %v3816
    %v4150 = vunpack.c.h.b16 %v3816
    %v4151 = vunpack.c.l.b16 %v3817
    %v4152 = vunpack.c.h.b16 %v3817
    %v4153 = vunpack.c.l.b16 %v3818
    %v4154 = vunpack.c.h.b16 %v3818
    %v4155 = vunpack.c.l.b16 %v3819
    %v4156 = vunpack.c.h.b16 %v3819
    %v4157 = vunpack.c.l.b16 %v3820
    %v4158 = vunpack.c.h.b16 %v3820
    %v4159 = vunpack.c.l.b16 %v3821
    %v4160 = vunpack.c.h.b16 %v3821
    %v4161 = vunpack.c.l.b16 %v3822
    %v4162 = vunpack.c.h.b16 %v3822
    %v4163 = vunpack.c.l.b16 %v3823
    %v4164 = vunpack.c.h.b16 %v3823
    %v4165 = vunpack.c.l.b16 %v3824
    %v4166 = vunpack.c.h.b16 %v3824
    %v4167 = vunpack.c.l.b16 %v3825
    %v4168 = vunpack.c.h.b16 %v3825
    %v4169 = vunpack.c.l.b16 %v3826
    %v4170 = vunpack.c.h.b16 %v3826
    %v4171 = vunpack.c.l.b16 %v3827
    %v4172 = vunpack.c.h.b16 %v3827
    %v4173 = vunpack.c.l.b16 %v3828
    %v4174 = vunpack.c.h.b16 %v3828
    %v4175 = vunpack.c.l.b16 %v3829
    %v4176 = vunpack.c.h.b16 %v3829
    %v4177 = vunpack.c.l.b16 %v3830
    %v4178 = vunpack.c.h.b16 %v3830
    %v4179 = vunpack.c.l.b16 %v3831
    %v4180 = vunpack.c.h.b16 %v3831
    %v4181 = vunpack.c.l.b16 %v3832
    %v4182 = vunpack.c.h.b16 %v3832
    %v4183 = vunpack.c.l.b16 %v3833
    %v4184 = vunpack.c.h.b16 %v3833
    %v4185 = vunpack.c.l.b16 %v3834
    %v4186 = vunpack.c.h.b16 %v3834
    %v4187 = vunpack.c.l.b16 %v3835
    %v4188 = vunpack.c.h.b16 %v3835
    %v4189 = vunpack.c.l.b16 %v3836
    %v4190 = vunpack.c.h.b16 %v3836
    %v4191 = vunpack.c.l.b16 %v3837
    %v4192 = vunpack.c.h.b16 %v3837
    %v4193 = vunpack.c.l.b16 %v3838
    %v4194 = vunpack.c.h.b16 %v3838
    %v4195 = vunpack.c.l.b16 %v3839
    %v4196 = vunpack.c.h.b16 %v3839
    %v4197 = vunpack.c.l.b16 %v3840
    %v4198 = vunpack.c.h.b16 %v3840
    %v4199 = vunpack.c.l.b16 %v3841
    %v4200 = vunpack.c.h.b16 %v3841
    %v4201 = vunpack.c.l.b16 %v3842
    %v4202 = vunpack.c.h.b16 %v3842
    %v4203 = vunpack.c.l.b16 %v3843
    %v4204 = vunpack.c.h.b16 %v3843
    %v4205 = vunpack.c.l.b16 %v3844
    %v4206 = vunpack.c.h.b16 %v3844
    %v4207 = vunpack.c.l.b16 %v3845
    %v4208 = vunpack.c.h.b16 %v3845
    %v4209 = vunpack.c.l.b16 %v3846
    %v4210 = vunpack.c.h.b16 %v3846
    %v4211 = vunpack.c.l.b16 %v3847
    %v4212 = vunpack.c.h.b16 %v3847
    %v4213 = vunpack.c.l.b16 %v3848
    %v4214 = vunpack.c.h.b16 %v3848
    %v4215 = vunpack.c.l.b16 %v3849
    %v4216 = vunpack.c.h.b16 %v3849
    %v4217 = vunpack.c.l.b16 %v3850
    %v4218 = vunpack.c.h.b16 %v3850
    %v4219 = vunpack.c.l.b16 %v3851
    %v4220 = vunpack.c.h.b16 %v3851
    %v4221 = vunpack.c.l.b16 %v3852
    %v4222 = vunpack.c.h.b16 %v3852
    %v4223 = vunpack.c.l.b16 %v3853
    %v4224 = vunpack.c.h.b16 %v3853
    %v4225 = vunpack.c.l.b16 %v3854
    %v4226 = vunpack.c.h.b16 %v3854
    %v4227 = vunpack.c.l.b16 %v3855
    %v4228 = vunpack.c.h.b16 %v3855
    %v4229 = vunpack.c.l.b16 %v3856
    %v4230 = vunpack.c.h.b16 %v3856
    %v4231 = vunpack.c.l.b16 %v3857
    %v4232 = vunpack.c.h.b16 %v3857
    %v4233 = vunpack.c.l.b16 %v3858
    %v4234 = vunpack.c.h.b16 %v3858
    %v4235 = vunpack.c.l.b16 %v3859
    %v4236 = vunpack.c.h.b16 %v3859
    %v4237 = vunpack.c.l.b16 %v3860
    %v4238 = vunpack.c.h.b16 %v3860
    %v4239 = vunpack.c.l.b16 %v3861
    %v4240 = vunpack.c.h.b16 %v3861
    %v4241 = vunpack.c.l.b16 %v3862
    %v4242 = vunpack.c.h.b16 %v3862
    %v4243 = vunpack.c.l.b16 %v3863
    %v4244 = vunpack.c.h.b16 %v3863
    %v4245 = vunpack.c.l.b16 %v3864
    %v4246 = vunpack.c.h.b16 %v3864
    %v4247 = vunpack.c.l.b16 %v3865
    %v4248 = vunpack.c.h.b16 %v3865
    %v4249 = vunpack.c.l.b16 %v3866
    %v4250 = vunpack.c.h.b16 %v3866
    %v4251 = vunpack.c.l.b16 %v3867
    %v4252 = vunpack.c.h.b16 %v3867
    %v4253 = vunpack.c.l.b16 %v3868
    %v4254 = vunpack.c.h.b16 %v3868
    %v4255 = vunpack.c.l.b16 %v3869
    %v4256 = vunpack.c.h.b16 %v3869
    %v4257 = vunpack.c.l.b16 %v3870
    %v4258 = vunpack.c.h.b16 %v3870
    %v4259 = vunpack.c.l.b16 %v3871
    %v4260 = vunpack.c.h.b16 %v3871
    %v4261 = vunpack.c.l.b16 %v3872
    %v4262 = vunpack.c.h.b16 %v3872
    %v4263 = vunpack.c.l.b16 %v3873
    %v4264 = vunpack.c.h.b16 %v3873
    %v4265 = vunpack.c.l.b16 %v3874
    %v4266 = vunpack.c.h.b16 %v3874
    %v4267 = vunpack.c.l.b16 %v3875
    %v4268 = vunpack.c.h.b16 %v3875
    %v4269 = vunpack.c.l.b16 %v3876
    %v4270 = vunpack.c.h.b16 %v3876
    %v4271 = vunpack.c.l.b16 %v3877
    %v4272 = vunpack.c.h.b16 %v3877
    %v4273 = vunpack.c.l.b16 %v3878
    %v4274 = vunpack.c.h.b16 %v3878
    %v4275 = vunpack.c.l.b16 %v3879
    %v4276 = vunpack.c.h.b16 %v3879
    %v4277 = vunpack.c.l.b16 %v3880
    %v4278 = vunpack.c.h.b16 %v3880
    %v4279 = vunpack.c.l.b16 %v3881
    %v4280 = vunpack.c.h.b16 %v3881
    %v4281 = vunpack.c.l.b16 %v3882
    %v4282 = vunpack.c.h.b16 %v3882
    %v4283 = vunpack.c.l.b16 %v3883
    %v4284 = vunpack.c.h.b16 %v3883
    %v4285 = vunpack.c.l.b16 %v3884
    %v4286 = vunpack.c.h.b16 %v3884
    %v4287 = vunpack.c.l.b16 %v3885
    %v4288 = vunpack.c.h.b16 %v3885
    %v4289 = vunpack.c.l.b16 %v3886
    %v4290 = vunpack.c.h.b16 %v3886
    %v4291 = vpack.c.b16 %v4037, %v4035
    %v4292 = vpack.c.b16 %v4038, %v4036
    %v4293 = vpack.c.b16 %v4041, %v4039
    %v4294 = vpack.c.b16 %v4042, %v4040
    %v4295 = vpack.c.b16 %v4045, %v4043
    %v4296 = vpack.c.b16 %v4046, %v4044
    %v4297 = vpack.c.b16 %v4049, %v4047
    %v4298 = vpack.c.b16 %v4050, %v4048
    %v4299 = vpack.c.b16 %v4053, %v4051
    %v4300 = vpack.c.b16 %v4054, %v4052
    %v4301 = vpack.c.b16 %v4057, %v4055
    %v4302 = vpack.c.b16 %v4058, %v4056
    %v4303 = vpack.c.b16 %v4061, %v4059
    %v4304 = vpack.c.b16 %v4062, %v4060
    %v4305 = vpack.c.b16 %v4065, %v4063
    %v4306 = vpack.c.b16 %v4066, %v4064
    %v4307 = vpack.c.b16 %v4069, %v4067
    %v4308 = vpack.c.b16 %v4070, %v4068
    %v4309 = vpack.c.b16 %v4073, %v4071
    %v4310 = vpack.c.b16 %v4074, %v4072
    %v4311 = vpack.c.b16 %v4077, %v4075
    %v4312 = vpack.c.b16 %v4078, %v4076
    %v4313 = vpack.c.b16 %v4081, %v4079
    %v4314 = vpack.c.b16 %v4082, %v4080
    %v4315 = vpack.c.b16 %v4085, %v4083
    %v4316 = vpack.c.b16 %v4086, %v4084
    %v4317 = vpack.c.b16 %v4089, %v4087
    %v4318 = vpack.c.b16 %v4090, %v4088
    %v4319 = vpack.c.b16 %v4093, %v4091
    %v4320 = vpack.c.b16 %v4094, %v4092
    %v4321 = vpack.c.b16 %v4097, %v4095
    %v4322 = vpack.c.b16 %v4098, %v4096
    %v4323 = vpack.c.b16 %v4101, %v4099
    %v4324 = vpack.c.b16 %v4102, %v4100
    %v4325 = vpack.c.b16 %v4105, %v4103
    %v4326 = vpack.c.b16 %v4106, %v4104
    %v4327 = vpack.c.b16 %v4109, %v4107
    %v4328 = vpack.c.b16 %v4110, %v4108
    %v4329 = vpack.c.b16 %v4113, %v4111
    %v4330 = vpack.c.b16 %v4114, %v4112
    %v4331 = vpack.c.b16 %v4117, %v4115
    %v4332 = vpack.c.b16 %v4118, %v4116
    %v4333 = vpack.c.b16 %v4121, %v4119
    %v4334 = vpack.c.b16 %v4122, %v4120
    %v4335 = vpack.c.b16 %v4125, %v4123
    %v4336 = vpack.c.b16 %v4126, %v4124
    %v4337 = vpack.c.b16 %v4129, %v4127
    %v4338 = vpack.c.b16 %v4130, %v4128
    %v4339 = vpack.c.b16 %v4133, %v4131
    %v4340 = vpack.c.b16 %v4134, %v4132
    %v4341 = vpack.c.b16 %v4137, %v4135
    %v4342 = vpack.c.b16 %v4138, %v4136
    %v4343 = vpack.c.b16 %v4141, %v4139
    %v4344 = vpack.c.b16 %v4142, %v4140
    %v4345 = vpack.c.b16 %v4145, %v4143
    %v4346 = vpack.c.b16 %v4146, %v4144
    %v4347 = vpack.c.b16 %v4149, %v4147
    %v4348 = vpack.c.b16 %v4150, %v4148
    %v4349 = vpack.c.b16 %v4153, %v4151
    %v4350 = vpack.c.b16 %v4154, %v4152
    %v4351 = vpack.c.b16 %v4157, %v4155
    %v4352 = vpack.c.b16 %v4158, %v4156
    %v4353 = vpack.c.b16 %v4161, %v4159
    %v4354 = vpack.c.b16 %v4162, %v4160
    %v4355 = vpack.c.b16 %v4165, %v4163
    %v4356 = vpack.c.b16 %v4166, %v4164
    %v4357 = vpack.c.b16 %v4169, %v4167
    %v4358 = vpack.c.b16 %v4170, %v4168
    %v4359 = vpack.c.b16 %v4173, %v4171
    %v4360 = vpack.c.b16 %v4174, %v4172
    %v4361 = vpack.c.b16 %v4177, %v4175
    %v4362 = vpack.c.b16 %v4178, %v4176
    %v4363 = vpack.c.b16 %v4181, %v4179
    %v4364 = vpack.c.b16 %v4182, %v4180
    %v4365 = vpack.c.b16 %v4185, %v4183
    %v4366 = vpack.c.b16 %v4186, %v4184
    %v4367 = vpack.c.b16 %v4189, %v4187
    %v4368 = vpack.c.b16 %v4190, %v4188
    %v4369 = vpack.c.b16 %v4193, %v4191
    %v4370 = vpack.c.b16 %v4194, %v4192
    %v4371 = vpack.c.b16 %v4197, %v4195
    %v4372 = vpack.c.b16 %v4198, %v4196
    %v4373 = vpack.c.b16 %v4201, %v4199
    %v4374 = vpack.c.b16 %v4202, %v4200
    %v4375 = vpack.c.b16 %v4205, %v4203
    %v4376 = vpack.c.b16 %v4206, %v4204
    %v4377 = vpack.c.b16 %v4209, %v4207
    %v4378 = vpack.c.b16 %v4210, %v4208
    %v4379 = vpack.c.b16 %v4213, %v4211
    %v4380 = vpack.c.b16 %v4214, %v4212
    %v4381 = vpack.c.b16 %v4217, %v4215
    %v4382 = vpack.c.b16 %v4218, %v4216
    %v4383 = vpack.c.b16 %v4221, %v4219
    %v4384 = vpack.c.b16 %v4222, %v4220
    %v4385 = vpack.c.b16 %v4225, %v4223
    %v4386 = vpack.c.b16 %v4226, %v4224
    %v4387 = vpack.c.b16 %v4229, %v4227
    %v4388 = vpack.c.b16 %v4230, %v4228
    %v4389 = vpack.c.b16 %v4233, %v4231
    %v4390 = vpack.c.b16 %v4234, %v4232
    %v4391 = vpack.c.b16 %v4237, %v4235
    %v4392 = vpack.c.b16 %v4238, %v4236
    %v4393 = vpack.c.b16 %v4241, %v4239
    %v4394 = vpack.c.b16 %v4242, %v4240
    %v4395 = vpack.c.b16 %v4245, %v4243
    %v4396 = vpack.c.b16 %v4246, %v4244
    %v4397 = vpack.c.b16 %v4249, %v4247
    %v4398 = vpack.c.b16 %v4250, %v4248
    %v4399 = vpack.c.b16 %v4253, %v4251
    %v4400 = vpack.c.b16 %v4254, %v4252
    %v4401 = vpack.c.b16 %v4257, %v4255
    %v4402 = vpack.c.b16 %v4258, %v4256
    %v4403 = vpack.c.b16 %v4261, %v4259
    %v4404 = vpack.c.b16 %v4262, %v4260
    %v4405 = vpack.c.b16 %v4265, %v4263
    %v4406 = vpack.c.b16 %v4266, %v4264
    %v4407 = vpack.c.b16 %v4269, %v4267
    %v4408 = vpack.c.b16 %v4270, %v4268
    %v4409 = vpack.c.b16 %v4273, %v4271
    %v4410 = vpack.c.b16 %v4274, %v4272
    %v4411 = vpack.c.b16 %v4277, %v4275
    %v4412 = vpack.c.b16 %v4278, %v4276
    %v4413 = vpack.c.b16 %v4281, %v4279
    %v4414 = vpack.c.b16 %v4282, %v4280
    %v4415 = vpack.c.b16 %v4285, %v4283
    %v4416 = vpack.c.b16 %v4286, %v4284
    %v4417 = vpack.c.b16 %v4289, %v4287
    %v4418 = vpack.c.b16 %v4290, %v4288
    %4547 = vmatprep.subr.bf16.mxu0 %v4306
    %4548 = vmatpush1.bf16.msra.mxu0 %v4305
    %4549 = vmatprep.subr.bf16.mxu0 %v4304
    %4550 = vmatpush1.bf16.msra.mxu0 %v4303
    %4551 = vmatprep.subr.bf16.mxu0 %v4302
    %4552 = vmatpush1.bf16.msra.mxu0 %v4301
    %4553 = vmatprep.subr.bf16.mxu0 %v4300
    %4554 = vmatpush1.bf16.msra.mxu0 %v4299
    %4555 = vmatprep.subr.bf16.mxu0 %v4298
    %4556 = vmatpush1.bf16.msra.mxu0 %v4297
    %4557 = vmatprep.subr.bf16.mxu0 %v4296
    %4558 = vmatpush1.bf16.msra.mxu0 %v4295
    %4559 = vmatprep.subr.bf16.mxu0 %v4294
    %4560 = vmatpush1.bf16.msra.mxu0 %v4293
    %4561 = vmatprep.subr.bf16.mxu0 %v4292
    %4562 = vmatpush1.bf16.msra.mxu0 %v4291
    %4563 = vmatprep.subr.bf16.mxu0 %v4322
    %4564 = vmatpush2.bf16.msra.mxu0 %v4321
    %4565 = vmatprep.subr.bf16.mxu0 %v4320
    %4566 = vmatpush2.bf16.msra.mxu0 %v4319
    %4567 = vmatprep.subr.bf16.mxu0 %v4318
    %4568 = vmatpush2.bf16.msra.mxu0 %v4317
    %4569 = vmatprep.subr.bf16.mxu0 %v4316
    %4570 = vmatpush2.bf16.msra.mxu0 %v4315
    %4571 = vmatprep.subr.bf16.mxu0 %v4314
    %4572 = vmatpush2.bf16.msra.mxu0 %v4313
    %4573 = vmatprep.subr.bf16.mxu0 %v4312
    %4574 = vmatpush2.bf16.msra.mxu0 %v4311
    %4575 = vmatprep.subr.bf16.mxu0 %v4310
    %4576 = vmatpush2.bf16.msra.mxu0 %v4309
    %4577 = vmatprep.subr.bf16.mxu0 %v4308
    %4578 = vmatpush2.bf16.msra.mxu0 %v4307
    %4579 = vmatprep.mubr.bf16.mxu0 %v3888
    %4580 = vmatmul.mubr.bf16.gmra.mxu0 %v3887
    %v4581 = vpop.f32.mrf.mxu0
    %v4582 = vadd.f32 %v3900, %v4581
    %v4583 = vpop.f32.mrf.mxu0
    %v4584 = vadd.f32 %v3904, %v4583
    %v4585 = vpop.f32.mrf.mxu0
    %v4586 = vpop.f32.mrf.mxu0
    %4587 = vdwg.mxu0
    %4588 = vmatprep.subr.bf16.mxu0 %v4338
    %4589 = vmatpush1.bf16.msra.mxu0 %v4337
    %4590 = vmatprep.subr.bf16.mxu0 %v4336
    %4591 = vmatpush1.bf16.msra.mxu0 %v4335
    %4592 = vmatprep.subr.bf16.mxu0 %v4334
    %4593 = vmatpush1.bf16.msra.mxu0 %v4333
    %4594 = vmatprep.subr.bf16.mxu0 %v4332
    %4595 = vmatpush1.bf16.msra.mxu0 %v4331
    %4596 = vmatprep.subr.bf16.mxu0 %v4330
    %4597 = vmatpush1.bf16.msra.mxu0 %v4329
    %4598 = vmatprep.subr.bf16.mxu0 %v4328
    %4599 = vmatpush1.bf16.msra.mxu0 %v4327
    %4600 = vmatprep.subr.bf16.mxu0 %v4326
    %4601 = vmatpush1.bf16.msra.mxu0 %v4325
    %4602 = vmatprep.subr.bf16.mxu0 %v4324
    %4603 = vmatpush1.bf16.msra.mxu0 %v4323
    %4604 = vmatprep.subr.bf16.mxu0 %v4354
    %4605 = vmatpush2.bf16.msra.mxu0 %v4353
    %4606 = vmatprep.subr.bf16.mxu0 %v4352
    %4607 = vmatpush2.bf16.msra.mxu0 %v4351
    %4608 = vmatprep.subr.bf16.mxu0 %v4350
    %4609 = vmatpush2.bf16.msra.mxu0 %v4349
    %4610 = vmatprep.subr.bf16.mxu0 %v4348
    %4611 = vmatpush2.bf16.msra.mxu0 %v4347
    %4612 = vmatprep.subr.bf16.mxu0 %v4346
    %4613 = vmatpush2.bf16.msra.mxu0 %v4345
    %4614 = vmatprep.subr.bf16.mxu0 %v4344
    %4615 = vmatpush2.bf16.msra.mxu0 %v4343
    %4616 = vmatprep.subr.bf16.mxu0 %v4342
    %4617 = vmatpush2.bf16.msra.mxu0 %v4341
    %4618 = vmatprep.subr.bf16.mxu0 %v4340
    %4619 = vmatpush2.bf16.msra.mxu0 %v4339
    %4620 = vmatprep.mubr.bf16.mxu0 %v3890
    %4621 = vmatmul.mubr.bf16.gmra.mxu0 %v3889
    %v4622 = vpop.f32.mrf.mxu0
    %v4623 = vadd.f32 %v4582, %v4622
    %v4624 = vpop.f32.mrf.mxu0
    %v4625 = vadd.f32 %v4584, %v4624
    %v4626 = vpop.f32.mrf.mxu0
    %v4627 = vpop.f32.mrf.mxu0
    %4628 = vdwg.mxu0
    %4629 = vmatprep.subr.bf16.mxu0 %v4370
    %4630 = vmatpush1.bf16.msra.mxu0 %v4369
    %4631 = vmatprep.subr.bf16.mxu0 %v4368
    %4632 = vmatpush1.bf16.msra.mxu0 %v4367
    %4633 = vmatprep.subr.bf16.mxu0 %v4366
    %4634 = vmatpush1.bf16.msra.mxu0 %v4365
    %4635 = vmatprep.subr.bf16.mxu0 %v4364
    %4636 = vmatpush1.bf16.msra.mxu0 %v4363
    %4637 = vmatprep.subr.bf16.mxu0 %v4362
    %4638 = vmatpush1.bf16.msra.mxu0 %v4361
    %4639 = vmatprep.subr.bf16.mxu0 %v4360
    %4640 = vmatpush1.bf16.msra.mxu0 %v4359
    %4641 = vmatprep.subr.bf16.mxu0 %v4358
    %4642 = vmatpush1.bf16.msra.mxu0 %v4357
    %4643 = vmatprep.subr.bf16.mxu0 %v4356
    %4644 = vmatpush1.bf16.msra.mxu0 %v4355
    %4645 = vmatprep.subr.bf16.mxu0 %v4386
    %4646 = vmatpush2.bf16.msra.mxu0 %v4385
    %4647 = vmatprep.subr.bf16.mxu0 %v4384
    %4648 = vmatpush2.bf16.msra.mxu0 %v4383
    %4649 = vmatprep.subr.bf16.mxu0 %v4382
    %4650 = vmatpush2.bf16.msra.mxu0 %v4381
    %4651 = vmatprep.subr.bf16.mxu0 %v4380
    %4652 = vmatpush2.bf16.msra.mxu0 %v4379
    %4653 = vmatprep.subr.bf16.mxu0 %v4378
    %4654 = vmatpush2.bf16.msra.mxu0 %v4377
    %4655 = vmatprep.subr.bf16.mxu0 %v4376
    %4656 = vmatpush2.bf16.msra.mxu0 %v4375
    %4657 = vmatprep.subr.bf16.mxu0 %v4374
    %4658 = vmatpush2.bf16.msra.mxu0 %v4373
    %4659 = vmatprep.subr.bf16.mxu0 %v4372
    %4660 = vmatpush2.bf16.msra.mxu0 %v4371
    %4661 = vmatprep.mubr.bf16.mxu0 %v3892
    %4662 = vmatmul.mubr.bf16.gmra.mxu0 %v3891
    %v4663 = vpop.f32.mrf.mxu0
    %v4664 = vadd.f32 %v4623, %v4663
    %v4665 = vpop.f32.mrf.mxu0
    %v4666 = vadd.f32 %v4625, %v4665
    %v4667 = vpop.f32.mrf.mxu0
    %v4668 = vpop.f32.mrf.mxu0
    %4669 = vdwg.mxu0
    %4670 = vmatprep.subr.bf16.mxu0 %v4402
    %4671 = vmatpush1.bf16.msra.mxu0 %v4401
    %4672 = vmatprep.subr.bf16.mxu0 %v4400
    %4673 = vmatpush1.bf16.msra.mxu0 %v4399
    %4674 = vmatprep.subr.bf16.mxu0 %v4398
    %4675 = vmatpush1.bf16.msra.mxu0 %v4397
    %4676 = vmatprep.subr.bf16.mxu0 %v4396
    %4677 = vmatpush1.bf16.msra.mxu0 %v4395
    %4678 = vmatprep.subr.bf16.mxu0 %v4394
    %4679 = vmatpush1.bf16.msra.mxu0 %v4393
    %4680 = vmatprep.subr.bf16.mxu0 %v4392
    %4681 = vmatpush1.bf16.msra.mxu0 %v4391
    %4682 = vmatprep.subr.bf16.mxu0 %v4390
    %4683 = vmatpush1.bf16.msra.mxu0 %v4389
    %4684 = vmatprep.subr.bf16.mxu0 %v4388
    %4685 = vmatpush1.bf16.msra.mxu0 %v4387
    %4686 = vmatprep.subr.bf16.mxu0 %v4418
    %4687 = vmatpush2.bf16.msra.mxu0 %v4417
    %4688 = vmatprep.subr.bf16.mxu0 %v4416
    %4689 = vmatpush2.bf16.msra.mxu0 %v4415
    %4690 = vmatprep.subr.bf16.mxu0 %v4414
    %4691 = vmatpush2.bf16.msra.mxu0 %v4413
    %4692 = vmatprep.subr.bf16.mxu0 %v4412
    %4693 = vmatpush2.bf16.msra.mxu0 %v4411
    %4694 = vmatprep.subr.bf16.mxu0 %v4410
    %4695 = vmatpush2.bf16.msra.mxu0 %v4409
    %4696 = vmatprep.subr.bf16.mxu0 %v4408
    %4697 = vmatpush2.bf16.msra.mxu0 %v4407
    %4698 = vmatprep.subr.bf16.mxu0 %v4406
    %4699 = vmatpush2.bf16.msra.mxu0 %v4405
    %4700 = vmatprep.subr.bf16.mxu0 %v4404
    %4701 = vmatpush2.bf16.msra.mxu0 %v4403
    %4702 = vmatprep.mubr.bf16.mxu0 %v3894
    %4703 = vmatmul.mubr.bf16.gmra.mxu0 %v3893
    %v4704 = vpop.f32.mrf.mxu0
    %v4705 = vadd.f32 %v4664, %v4704
    %v4706 = vpop.f32.mrf.mxu0
    %v4707 = vadd.f32 %v4666, %v4706
    %v4708 = vpop.f32.mrf.mxu0
    %v4709 = vpop.f32.mrf.mxu0
    %4710 = vdwg.mxu0
    %v4711 = vtanh.pop %v4705
    %v4712 = vtanh.pop %v4707
    %4713 = vst [vmem:[%s19] sm:$0xff] %v4711
    %4714 = vst [vmem:[%s19 + $0x8] sm:$0xff] %v4712
    // Predicated region
    $region130: #{generator_forward.1} parent=1 // pred_check
      _
    $region131: #{generator_forward.1} parent=1 // pred_check_branch
      %4716 = sbr.rel (0) target = $region133
    $region132: #{generator_forward.1} parent=1 // pred_region
      _
    $region133: #{generator_forward.1} parent=1 // pred_fallthru
      _
    // Predicated region
    $region134: #{generator_forward.1} parent=1 // pred_check
      _
    $region135: #{generator_forward.1} parent=1 // pred_check_branch
      %4718 = sbr.rel (0) target = $region137
    $region136: #{generator_forward.1} parent=1 // pred_region
      _
    $region137: #{generator_forward.1} parent=1 // pred_fallthru
      _
    %4719 = vsyncpa [#allocation6], 1
    %4720 = vsyncpa [#allocation8], 1
    %4721 = vsyncpa [#allocation11], 1
    %4722 = vsyncpa [#allocation14], 1
    %4723 = vsyncpa [#allocation17], 1
    %4724 = vsyncpa [#allocation20], 1
    %4725 = vsyncpa [#allocation23], 1
  %4726 = vsyncmov [#allocation4]
  %s4727 = vpop.sfrf %4726
  %p4728 = scmp.eq.s32.totalorder %s4727, 0
  %p4729 = pneg %p4728
  %4731 = shalt.err (%p4729)
  %s4732 = scalar_lea.sflag [#allocation4], 1
  %4733 = vsyncmov %s4732
  %s4734 = vpop.sfrf %4733
  %p4735 = scmp.eq.s32.totalorder %s4734, 0
  %p4736 = pneg %p4735
  %4738 = shalt.err (%p4736)

</llo_original>
